<compile_context>
chip_gen: v5e
topology: v5e:2x2
jax: 0.10.0
libtpu: 0.0.40
codegen_flags: <defaults>
</compile_context>

<pallas_src>
import jax
import jax.numpy as jnp
import numpy as np
from jax.experimental import pallas as pl
from jax.experimental.pallas import tpu as pltpu

EMBED_D = 128
HIDDEN = 64          # true LSTM hidden size
HP = 128             # lane-padded per-gate width (one full 128-lane block)
DEC1 = 32
OUT = 5
VOCAB = 32786
BP = 8               # sublane-padded batch


def _make_kernel(B, T):
    """Kernel closure over the static real batch size B and seq length T."""

    def kernel(idb_ref, pcont_ref,                 # scalar prefetch (SMEM, int32)
               embed_hbm,                          # [VOCAB, EMBED_D] f32, stays in HBM
               wih_ref, whh_ref, blstm_ref,        # LSTM weights (reordered/padded)
               w1_ref, b1_ref, w2_ref, b2_ref,     # decoders
               out_ref,                            # [BP, OUT]
               x_vmem, xproj_ref, dma_sems):       # scratch
        # ---- 1. Fused embedding gather.  For each real (t, b) token, DMA its
        #         512-B embedding row from HBM into the seq-major VMEM slab at
        #         row t*BP + b.  Token ids come from SMEM scalars:
        #         tok = p_content[id_batch[b] * T + t].
        copies = []
        for t in range(T):
            for b in range(B):
                tok = pcont_ref[idb_ref[b] * T + t]
                r = t * BP + b
                cp = pltpu.make_async_copy(
                    embed_hbm.at[pl.ds(tok, 1), :],     # (1, EMBED_D) HBM row
                    x_vmem.at[pl.ds(r, 1), :],          # (1, EMBED_D) VMEM row
                    dma_sems.at[len(copies)])
                cp.start()
                copies.append(cp)
        # Rows with b >= B are never DMA'd and stay uninitialized.  Every op
        # below is row-wise in the batch dim (matmuls contract over features,
        # elementwise ops are per-row), so pad rows can never leak into real
        # rows; the wrapper slices them off the output.
        for cp in copies:
            cp.wait()

        # ---- 2. Hoisted input projection for ALL timesteps in one MXU matmul,
        #         LSTM bias folded in.  bf16 weights, f32 accumulate.
        xproj_ref[...] = (
            jnp.dot(x_vmem[...], wih_ref[...].astype(jnp.float32),
                    preferred_element_type=jnp.float32)
            + blstm_ref[...])                                   # [T*BP, 4*HP]

        # ---- 3. Recurrence.  h/c live in vregs as [BP, HIDDEN]; the loop is
        #         fully unrolled (static T) so the 8-step chain stays visible
        #         to the scheduler.  whh convert hoisted out of the loop.
        whh = whh_ref[...].astype(jnp.float32)                  # [HIDDEN, 4*HP]
        h = jnp.zeros((BP, HIDDEN), jnp.float32)
        c = jnp.zeros((BP, HIDDEN), jnp.float32)
        for t in range(T):
            gates = (jnp.dot(h, whh, preferred_element_type=jnp.float32)
                     + xproj_ref[t * BP:(t + 1) * BP, :])       # [BP, 4*HP]
            # Gate blocks are 128-lane aligned, order (i, f, o, g); the real
            # HIDDEN=64 columns are the lane-offset-0 prefix of each block.
            # The 0.5 prescale of i/f/o is folded into the weights/bias, so
            # sigmoid(x) = 0.5*(tanh(0.5*x)+1) costs one tanh EUP pass.
            i_g = 0.5 * (jnp.tanh(gates[:, 0 * HP:0 * HP + HIDDEN]) + 1.0)
            f_g = 0.5 * (jnp.tanh(gates[:, 1 * HP:1 * HP + HIDDEN]) + 1.0)
            o_g = 0.5 * (jnp.tanh(gates[:, 2 * HP:2 * HP + HIDDEN]) + 1.0)
            g_g = jnp.tanh(gates[:, 3 * HP:3 * HP + HIDDEN])
            c = f_g * c + i_g * g_g
            h = o_g * jnp.tanh(c)

        # ---- 4. decoder1 -> relu -> decoder2 -> sigmoid (runs once; tiny).
        z1 = jnp.dot(h, w1_ref[...], preferred_element_type=jnp.float32) + b1_ref[...]
        z1 = jnp.maximum(z1, 0.0)
        z2 = jnp.dot(z1, w2_ref[...], preferred_element_type=jnp.float32) + b2_ref[...]
        out_ref[...] = jax.nn.sigmoid(z2)

    return kernel


def prepare_text_encoder_params(p_content, wih_t, whh_t, b_lstm, w1_t, b1, w2_t, b2):
    """One-time (parameter-load-time) prep, hoisted out of the per-call path:
       * LSTM gate columns reordered (i, f, g, o) -> (i, f, o, g),
       * 0.5 prescale folded into the i/f/o columns (sigmoid-as-single-tanh),
       * each gate lane-padded 64 -> 128 so gate slices are vreg-aligned,
       * wih/whh cast to bf16 (halves weight HBM->VMEM DMA),
       * p_content flattened to 1-D int32 for SMEM scalar prefetch."""
    def prep_gates(w):
        gi, gf, gg, go = (w[:, k * HIDDEN:(k + 1) * HIDDEN] for k in range(4))
        blocks = (0.5 * gi, 0.5 * gf, 0.5 * go, gg)            # reorder + fold 0.5
        return jnp.concatenate(
            [jnp.pad(blk, ((0, 0), (0, HP - HIDDEN))) for blk in blocks], axis=1)

    seq_len = int(p_content.shape[1])
    pcont_flat = jnp.asarray(p_content, jnp.int32).reshape(-1)  # [num_items*T]
    wih_p = prep_gates(wih_t).astype(jnp.bfloat16)              # [EMBED_D, 4*HP]
    whh_p = prep_gates(whh_t).astype(jnp.bfloat16)              # [HIDDEN, 4*HP]
    b_p = prep_gates(b_lstm).astype(jnp.float32)                # [1, 4*HP]
    return (pcont_flat, seq_len, wih_p, whh_p, b_p,
            jnp.asarray(w1_t, jnp.float32), jnp.asarray(b1, jnp.float32),
            jnp.asarray(w2_t, jnp.float32), jnp.asarray(b2, jnp.float32))


def text_encoder_forward(id_batch, embed_table, prepared):
    """Full Text_Encoder.forward(id_batch) as one pallas_call.  Returns [B, OUT]."""
    (pcont_flat, T, wih_p, whh_p, b_p, w1_p, b1_p, w2_p, b2_p) = prepared
    B = int(id_batch.shape[0])
    assert B <= BP
    idb = jnp.pad(jnp.asarray(id_batch, jnp.int32), (0, BP - B))  # pad with item 0

    const2 = lambda i, *_: (0, 0)          # whole-array blocks, single grid point
    grid_spec = pltpu.PrefetchScalarGridSpec(
        num_scalar_prefetch=2,             # id_batch (padded), p_content (flat)
        grid=(1,),
        in_specs=[
            pl.BlockSpec(memory_space=pl.ANY),                  # embed table (HBM)
            pl.BlockSpec((EMBED_D, 4 * HP), const2),            # wih  (bf16)
            pl.BlockSpec((HIDDEN, 4 * HP), const2),             # whh  (bf16)
            pl.BlockSpec((1, 4 * HP), const2),                  # lstm bias
            pl.BlockSpec((HIDDEN, DEC1), const2),               # w1
            pl.BlockSpec((1, DEC1), const2),                    # b1
            pl.BlockSpec((DEC1, OUT), const2),                  # w2
            pl.BlockSpec((1, OUT), const2),                     # b2
        ],
        out_specs=pl.BlockSpec((BP, OUT), const2),
        scratch_shapes=[
            pltpu.VMEM((T * BP, EMBED_D), jnp.float32),         # gathered x
            pltpu.VMEM((T * BP, 4 * HP), jnp.float32),          # hoisted projection
            pltpu.SemaphoreType.DMA((T * B,)),                  # one sem per row DMA
        ])

    out = pl.pallas_call(
        _make_kernel(B, T),
        out_shape=jax.ShapeDtypeStruct((BP, OUT), jnp.float32),
        grid_spec=grid_spec,
        compiler_params=pltpu.CompilerParams(
            dimension_semantics=("arbitrary",)),
    )(idb, pcont_flat, embed_table, wih_p, whh_p, b_p, w1_p, b1_p, w2_p, b2_p)
    return out[:B]


def text_encoder_reference(x_seq, wih_t, whh_t, b_lstm, w1_t, b1, w2_t, b2):
    """Pure-JAX f32 reference (mirrors torch nn.LSTM + decoders), unpadded."""
    T, B, _ = x_seq.shape
    h = jnp.zeros((B, HIDDEN), jnp.float32)
    c = jnp.zeros((B, HIDDEN), jnp.float32)
    for t in range(T):
        gates = x_seq[t] @ wih_t + h @ whh_t + b_lstm
        i_g = jax.nn.sigmoid(gates[:, 0 * HIDDEN:1 * HIDDEN])
        f_g = jax.nn.sigmoid(gates[:, 1 * HIDDEN:2 * HIDDEN])
        g_g = jnp.tanh(gates[:, 2 * HIDDEN:3 * HIDDEN])
        o_g = jax.nn.sigmoid(gates[:, 3 * HIDDEN:4 * HIDDEN])
        c = f_g * c + i_g * g_g
        h = o_g * jnp.tanh(c)
    z1 = jnp.maximum(h @ w1_t + b1, 0.0)
    return jax.nn.sigmoid(z1 @ w2_t + b2)


if __name__ == "__main__":
    key = jax.random.PRNGKey(0)
    ks = jax.random.split(key, 10)

    # Synthetic module state (deterministic init; shapes from __init__).
    num_items, seq_len, batch = 20, 8, 2
    p_content = jax.random.randint(ks[0], (num_items, seq_len), 0, VOCAB)
    embed_table = 0.02 * jax.random.normal(ks[1], (VOCAB, EMBED_D), jnp.float32)

    # LSTM(128 -> 64) params, stored pre-transposed [in, out], gate order (i,f,g,o).
    wih_t = 0.1 * jax.random.normal(ks[2], (EMBED_D, 4 * HIDDEN), jnp.float32)
    whh_t = 0.1 * jax.random.normal(ks[3], (HIDDEN, 4 * HIDDEN), jnp.float32)
    b_lstm = 0.1 * jax.random.normal(ks[4], (1, 4 * HIDDEN), jnp.float32)  # b_ih+b_hh

    # decoder1: Linear(64, 32), decoder2: Linear(32, 5)
    w1_t = 0.1 * jax.random.normal(ks[5], (HIDDEN, DEC1), jnp.float32)
    b1 = 0.1 * jax.random.normal(ks[6], (1, DEC1), jnp.float32)
    w2_t = 0.1 * jax.random.normal(ks[7], (DEC1, OUT), jnp.float32)
    b2 = 0.1 * jax.random.normal(ks[8], (1, OUT), jnp.float32)

    # One-time weight prep (hoisted out of the per-call path).
    prepared = prepare_text_encoder_params(p_content, wih_t, whh_t, b_lstm,
                                           w1_t, b1, w2_t, b2)

    # forward(id_batch): p_content[id_batch] -> embed -> permute -> LSTM -> decoders
    id_batch = jax.random.randint(ks[9], (batch,), 0, num_items)
    out = text_encoder_forward(id_batch, embed_table, prepared)
    out = jax.block_until_ready(out)

    # Reference path (plain JAX, f32, original gate order / unpadded weights).
    inputs = jnp.take(p_content, id_batch, axis=0)               # [B, T] int
    x = jnp.take(embed_table, inputs, axis=0)                    # [B, T, 128]
    x_seq = jnp.transpose(x, (1, 0, 2)).astype(jnp.float32)      # [T, B, 128]
    ref = text_encoder_reference(x_seq, wih_t, whh_t, b_lstm, w1_t, b1, w2_t, b2)

    # bf16 LSTM weights in the kernel -> slightly loosened tolerance vs f32 ref.
    np.testing.assert_allclose(np.asarray(out), np.asarray(ref),
                               rtol=1e-2, atol=2e-3)
    assert out.shape == (batch, OUT)
    print("KERNEL_OK")
</pallas_src>

<mosaic_0001>
module attributes {stable_mosaic.version = 11 : i64} {
  func.func @kernel(%arg0: i32, %arg1: memref<8xi32, #tpu.memory_space<smem>>, %arg2: memref<160xi32, #tpu.memory_space<smem>>, %arg3: memref<32786x128xf32, #tpu.memory_space<any>>, %arg4: memref<128x512xbf16, #tpu.memory_space<vmem>>, %arg5: memref<64x512xbf16, #tpu.memory_space<vmem>>, %arg6: memref<1x512xf32, #tpu.memory_space<vmem>>, %arg7: memref<64x32xf32, #tpu.memory_space<vmem>>, %arg8: memref<1x32xf32, #tpu.memory_space<vmem>>, %arg9: memref<32x5xf32, #tpu.memory_space<vmem>>, %arg10: memref<1x5xf32, #tpu.memory_space<vmem>>, %arg11: memref<8x5xf32, #tpu.memory_space<vmem>>, %arg12: memref<64x128xf32, #tpu.memory_space<vmem>>, %arg13: memref<64x512xf32, #tpu.memory_space<vmem>>, %arg14: memref<16x!tpu.dma_semaphore, #tpu.memory_space<semaphore_mem>>) attributes {dimension_semantics = [#tpu.dimension_semantics<arbitrary>], iteration_bounds = array<i64: 1>, scalar_prefetch = 2 : i64, scratch_operands = 3 : i64, tpu.core_type = #tpu.core_type<tc>, window_params = [{}, {pipeline_mode = #tpu.pipeline_mode<synchronous>, transform_indices = @transform_1, window_bounds = array<i64: 128, 512>}, {pipeline_mode = #tpu.pipeline_mode<synchronous>, transform_indices = @transform_2, window_bounds = array<i64: 64, 512>}, {pipeline_mode = #tpu.pipeline_mode<synchronous>, transform_indices = @transform_3, window_bounds = array<i64: 1, 512>}, {pipeline_mode = #tpu.pipeline_mode<synchronous>, transform_indices = @transform_4, window_bounds = array<i64: 64, 32>}, {pipeline_mode = #tpu.pipeline_mode<synchronous>, transform_indices = @transform_5, window_bounds = array<i64: 1, 32>}, {pipeline_mode = #tpu.pipeline_mode<synchronous>, transform_indices = @transform_6, window_bounds = array<i64: 32, 5>}, {pipeline_mode = #tpu.pipeline_mode<synchronous>, transform_indices = @transform_7, window_bounds = array<i64: 1, 5>}, {pipeline_mode = #tpu.pipeline_mode<synchronous>, transform_indices = @transform_8, window_bounds = array<i64: 8, 5>}]} {
    %c0 = arith.constant 0 : index
    %0 = memref.load %arg1[%c0] : memref<8xi32, #tpu.memory_space<smem>>
    %c8_i32 = arith.constant 8 : i32
    %1 = arith.muli %0, %c8_i32 : i32
    %c0_i32 = arith.constant 0 : i32
    %2 = arith.addi %1, %c0_i32 : i32
    %3 = arith.index_cast %2 : i32 to index
    %4 = memref.load %arg2[%3] : memref<160xi32, #tpu.memory_space<smem>>
    %c0_i32_0 = arith.constant 0 : i32
    %c0_i32_1 = arith.constant 0 : i32
    %5 = tpu.memref_slice %arg3[%4, %c0_i32_1] : memref<32786x128xf32, #tpu.memory_space<any>> -> memref<1x128xf32, #tpu.memory_space<any>>
    %c0_i32_2 = arith.constant 0 : i32
    %c0_i32_3 = arith.constant 0 : i32
    %6 = tpu.memref_slice %arg12[%c0_i32_2, %c0_i32_3] : memref<64x128xf32, #tpu.memory_space<vmem>> -> memref<1x128xf32, #tpu.memory_space<vmem>>
    %7 = tpu.memref_slice %arg14[%c0_i32_0] : memref<16x!tpu.dma_semaphore, #tpu.memory_space<semaphore_mem>> -> memref<1x!tpu.dma_semaphore, #tpu.memory_space<semaphore_mem>>
    %8 = tpu.memref_squeeze %7 : memref<1x!tpu.dma_semaphore, #tpu.memory_space<semaphore_mem>> -> memref<!tpu.dma_semaphore, #tpu.memory_space<semaphore_mem>>
    tpu.enqueue_dma source(%5 : memref<1x128xf32, #tpu.memory_space<any>>) target(%6 : memref<1x128xf32, #tpu.memory_space<vmem>>) target_semaphore(%8 : memref<!tpu.dma_semaphore, #tpu.memory_space<semaphore_mem>>)
    %c1 = arith.constant 1 : index
    %9 = memref.load %arg1[%c1] : memref<8xi32, #tpu.memory_space<smem>>
    %c8_i32_4 = arith.constant 8 : i32
    %10 = arith.muli %9, %c8_i32_4 : i32
    %c0_i32_5 = arith.constant 0 : i32
    %11 = arith.addi %10, %c0_i32_5 : i32
    %12 = arith.index_cast %11 : i32 to index
    %13 = memref.load %arg2[%12] : memref<160xi32, #tpu.memory_space<smem>>
    %c1_i32 = arith.constant 1 : i32
    %c0_i32_6 = arith.constant 0 : i32
    %14 = tpu.memref_slice %arg3[%13, %c0_i32_6] : memref<32786x128xf32, #tpu.memory_space<any>> -> memref<1x128xf32, #tpu.memory_space<any>>
    %c1_i32_7 = arith.constant 1 : i32
    %c0_i32_8 = arith.constant 0 : i32
    %15 = tpu.memref_slice %arg12[%c1_i32_7, %c0_i32_8] : memref<64x128xf32, #tpu.memory_space<vmem>> -> memref<1x128xf32, #tpu.memory_space<vmem>>
    %16 = tpu.memref_slice %arg14[%c1_i32] : memref<16x!tpu.dma_semaphore, #tpu.memory_space<semaphore_mem>> -> memref<1x!tpu.dma_semaphore, #tpu.memory_space<semaphore_mem>>
    %17 = tpu.memref_squeeze %16 : memref<1x!tpu.dma_semaphore, #tpu.memory_space<semaphore_mem>> -> memref<!tpu.dma_semaphore, #tpu.memory_space<semaphore_mem>>
    tpu.enqueue_dma source(%14 : memref<1x128xf32, #tpu.memory_space<any>>) target(%15 : memref<1x128xf32, #tpu.memory_space<vmem>>) target_semaphore(%17 : memref<!tpu.dma_semaphore, #tpu.memory_space<semaphore_mem>>)
    %c0_9 = arith.constant 0 : index
    %18 = memref.load %arg1[%c0_9] : memref<8xi32, #tpu.memory_space<smem>>
    %c8_i32_10 = arith.constant 8 : i32
    %19 = arith.muli %18, %c8_i32_10 : i32
    %c1_i32_11 = arith.constant 1 : i32
    %20 = arith.addi %19, %c1_i32_11 : i32
    %21 = arith.index_cast %20 : i32 to index
    %22 = memref.load %arg2[%21] : memref<160xi32, #tpu.memory_space<smem>>
    %c2_i32 = arith.constant 2 : i32
    %c0_i32_12 = arith.constant 0 : i32
    %23 = tpu.memref_slice %arg3[%22, %c0_i32_12] : memref<32786x128xf32, #tpu.memory_space<any>> -> memref<1x128xf32, #tpu.memory_space<any>>
    %c8_i32_13 = arith.constant 8 : i32
    %c0_i32_14 = arith.constant 0 : i32
    %24 = tpu.memref_slice %arg12[%c8_i32_13, %c0_i32_14] : memref<64x128xf32, #tpu.memory_space<vmem>> -> memref<1x128xf32, #tpu.memory_space<vmem>>
    %25 = tpu.memref_slice %arg14[%c2_i32] : memref<16x!tpu.dma_semaphore, #tpu.memory_space<semaphore_mem>> -> memref<1x!tpu.dma_semaphore, #tpu.memory_space<semaphore_mem>>
    %26 = tpu.memref_squeeze %25 : memref<1x!tpu.dma_semaphore, #tpu.memory_space<semaphore_mem>> -> memref<!tpu.dma_semaphore, #tpu.memory_space<semaphore_mem>>
    tpu.enqueue_dma source(%23 : memref<1x128xf32, #tpu.memory_space<any>>) target(%24 : memref<1x128xf32, #tpu.memory_space<vmem>>) target_semaphore(%26 : memref<!tpu.dma_semaphore, #tpu.memory_space<semaphore_mem>>)
    %c1_15 = arith.constant 1 : index
    %27 = memref.load %arg1[%c1_15] : memref<8xi32, #tpu.memory_space<smem>>
    %c8_i32_16 = arith.constant 8 : i32
    %28 = arith.muli %27, %c8_i32_16 : i32
    %c1_i32_17 = arith.constant 1 : i32
    %29 = arith.addi %28, %c1_i32_17 : i32
    %30 = arith.index_cast %29 : i32 to index
    %31 = memref.load %arg2[%30] : memref<160xi32, #tpu.memory_space<smem>>
    %c3_i32 = arith.constant 3 : i32
    %c0_i32_18 = arith.constant 0 : i32
    %32 = tpu.memref_slice %arg3[%31, %c0_i32_18] : memref<32786x128xf32, #tpu.memory_space<any>> -> memref<1x128xf32, #tpu.memory_space<any>>
    %c9_i32 = arith.constant 9 : i32
    %c0_i32_19 = arith.constant 0 : i32
    %33 = tpu.memref_slice %arg12[%c9_i32, %c0_i32_19] : memref<64x128xf32, #tpu.memory_space<vmem>> -> memref<1x128xf32, #tpu.memory_space<vmem>>
    %34 = tpu.memref_slice %arg14[%c3_i32] : memref<16x!tpu.dma_semaphore, #tpu.memory_space<semaphore_mem>> -> memref<1x!tpu.dma_semaphore, #tpu.memory_space<semaphore_mem>>
    %35 = tpu.memref_squeeze %34 : memref<1x!tpu.dma_semaphore, #tpu.memory_space<semaphore_mem>> -> memref<!tpu.dma_semaphore, #tpu.memory_space<semaphore_mem>>
    tpu.enqueue_dma source(%32 : memref<1x128xf32, #tpu.memory_space<any>>) target(%33 : memref<1x128xf32, #tpu.memory_space<vmem>>) target_semaphore(%35 : memref<!tpu.dma_semaphore, #tpu.memory_space<semaphore_mem>>)
    %c0_20 = arith.constant 0 : index
    %36 = memref.load %arg1[%c0_20] : memref<8xi32, #tpu.memory_space<smem>>
    %c8_i32_21 = arith.constant 8 : i32
    %37 = arith.muli %36, %c8_i32_21 : i32
    %c2_i32_22 = arith.constant 2 : i32
    %38 = arith.addi %37, %c2_i32_22 : i32
    %39 = arith.index_cast %38 : i32 to index
    %40 = memref.load %arg2[%39] : memref<160xi32, #tpu.memory_space<smem>>
    %c4_i32 = arith.constant 4 : i32
    %c0_i32_23 = arith.constant 0 : i32
    %41 = tpu.memref_slice %arg3[%40, %c0_i32_23] : memref<32786x128xf32, #tpu.memory_space<any>> -> memref<1x128xf32, #tpu.memory_space<any>>
    %c16_i32 = arith.constant 16 : i32
    %c0_i32_24 = arith.constant 0 : i32
    %42 = tpu.memref_slice %arg12[%c16_i32, %c0_i32_24] : memref<64x128xf32, #tpu.memory_space<vmem>> -> memref<1x128xf32, #tpu.memory_space<vmem>>
    %43 = tpu.memref_slice %arg14[%c4_i32] : memref<16x!tpu.dma_semaphore, #tpu.memory_space<semaphore_mem>> -> memref<1x!tpu.dma_semaphore, #tpu.memory_space<semaphore_mem>>
    %44 = tpu.memref_squeeze %43 : memref<1x!tpu.dma_semaphore, #tpu.memory_space<semaphore_mem>> -> memref<!tpu.dma_semaphore, #tpu.memory_space<semaphore_mem>>
    tpu.enqueue_dma source(%41 : memref<1x128xf32, #tpu.memory_space<any>>) target(%42 : memref<1x128xf32, #tpu.memory_space<vmem>>) target_semaphore(%44 : memref<!tpu.dma_semaphore, #tpu.memory_space<semaphore_mem>>)
    %c1_25 = arith.constant 1 : index
    %45 = memref.load %arg1[%c1_25] : memref<8xi32, #tpu.memory_space<smem>>
    %c8_i32_26 = arith.constant 8 : i32
    %46 = arith.muli %45, %c8_i32_26 : i32
    %c2_i32_27 = arith.constant 2 : i32
    %47 = arith.addi %46, %c2_i32_27 : i32
    %48 = arith.index_cast %47 : i32 to index
    %49 = memref.load %arg2[%48] : memref<160xi32, #tpu.memory_space<smem>>
    %c5_i32 = arith.constant 5 : i32
    %c0_i32_28 = arith.constant 0 : i32
    %50 = tpu.memref_slice %arg3[%49, %c0_i32_28] : memref<32786x128xf32, #tpu.memory_space<any>> -> memref<1x128xf32, #tpu.memory_space<any>>
    %c17_i32 = arith.constant 17 : i32
    %c0_i32_29 = arith.constant 0 : i32
    %51 = tpu.memref_slice %arg12[%c17_i32, %c0_i32_29] : memref<64x128xf32, #tpu.memory_space<vmem>> -> memref<1x128xf32, #tpu.memory_space<vmem>>
    %52 = tpu.memref_slice %arg14[%c5_i32] : memref<16x!tpu.dma_semaphore, #tpu.memory_space<semaphore_mem>> -> memref<1x!tpu.dma_semaphore, #tpu.memory_space<semaphore_mem>>
    %53 = tpu.memref_squeeze %52 : memref<1x!tpu.dma_semaphore, #tpu.memory_space<semaphore_mem>> -> memref<!tpu.dma_semaphore, #tpu.memory_space<semaphore_mem>>
    tpu.enqueue_dma source(%50 : memref<1x128xf32, #tpu.memory_space<any>>) target(%51 : memref<1x128xf32, #tpu.memory_space<vmem>>) target_semaphore(%53 : memref<!tpu.dma_semaphore, #tpu.memory_space<semaphore_mem>>)
    %c0_30 = arith.constant 0 : index
    %54 = memref.load %arg1[%c0_30] : memref<8xi32, #tpu.memory_space<smem>>
    %c8_i32_31 = arith.constant 8 : i32
    %55 = arith.muli %54, %c8_i32_31 : i32
    %c3_i32_32 = arith.constant 3 : i32
    %56 = arith.addi %55, %c3_i32_32 : i32
    %57 = arith.index_cast %56 : i32 to index
    %58 = memref.load %arg2[%57] : memref<160xi32, #tpu.memory_space<smem>>
    %c6_i32 = arith.constant 6 : i32
    %c0_i32_33 = arith.constant 0 : i32
    %59 = tpu.memref_slice %arg3[%58, %c0_i32_33] : memref<32786x128xf32, #tpu.memory_space<any>> -> memref<1x128xf32, #tpu.memory_space<any>>
    %c24_i32 = arith.constant 24 : i32
    %c0_i32_34 = arith.constant 0 : i32
    %60 = tpu.memref_slice %arg12[%c24_i32, %c0_i32_34] : memref<64x128xf32, #tpu.memory_space<vmem>> -> memref<1x128xf32, #tpu.memory_space<vmem>>
    %61 = tpu.memref_slice %arg14[%c6_i32] : memref<16x!tpu.dma_semaphore, #tpu.memory_space<semaphore_mem>> -> memref<1x!tpu.dma_semaphore, #tpu.memory_space<semaphore_mem>>
    %62 = tpu.memref_squeeze %61 : memref<1x!tpu.dma_semaphore, #tpu.memory_space<semaphore_mem>> -> memref<!tpu.dma_semaphore, #tpu.memory_space<semaphore_mem>>
    tpu.enqueue_dma source(%59 : memref<1x128xf32, #tpu.memory_space<any>>) target(%60 : memref<1x128xf32, #tpu.memory_space<vmem>>) target_semaphore(%62 : memref<!tpu.dma_semaphore, #tpu.memory_space<semaphore_mem>>)
    %c1_35 = arith.constant 1 : index
    %63 = memref.load %arg1[%c1_35] : memref<8xi32, #tpu.memory_space<smem>>
    %c8_i32_36 = arith.constant 8 : i32
    %64 = arith.muli %63, %c8_i32_36 : i32
    %c3_i32_37 = arith.constant 3 : i32
    %65 = arith.addi %64, %c3_i32_37 : i32
    %66 = arith.index_cast %65 : i32 to index
    %67 = memref.load %arg2[%66] : memref<160xi32, #tpu.memory_space<smem>>
    %c7_i32 = arith.constant 7 : i32
    %c0_i32_38 = arith.constant 0 : i32
    %68 = tpu.memref_slice %arg3[%67, %c0_i32_38] : memref<32786x128xf32, #tpu.memory_space<any>> -> memref<1x128xf32, #tpu.memory_space<any>>
    %c25_i32 = arith.constant 25 : i32
    %c0_i32_39 = arith.constant 0 : i32
    %69 = tpu.memref_slice %arg12[%c25_i32, %c0_i32_39] : memref<64x128xf32, #tpu.memory_space<vmem>> -> memref<1x128xf32, #tpu.memory_space<vmem>>
    %70 = tpu.memref_slice %arg14[%c7_i32] : memref<16x!tpu.dma_semaphore, #tpu.memory_space<semaphore_mem>> -> memref<1x!tpu.dma_semaphore, #tpu.memory_space<semaphore_mem>>
    %71 = tpu.memref_squeeze %70 : memref<1x!tpu.dma_semaphore, #tpu.memory_space<semaphore_mem>> -> memref<!tpu.dma_semaphore, #tpu.memory_space<semaphore_mem>>
    tpu.enqueue_dma source(%68 : memref<1x128xf32, #tpu.memory_space<any>>) target(%69 : memref<1x128xf32, #tpu.memory_space<vmem>>) target_semaphore(%71 : memref<!tpu.dma_semaphore, #tpu.memory_space<semaphore_mem>>)
    %c0_40 = arith.constant 0 : index
    %72 = memref.load %arg1[%c0_40] : memref<8xi32, #tpu.memory_space<smem>>
    %c8_i32_41 = arith.constant 8 : i32
    %73 = arith.muli %72, %c8_i32_41 : i32
    %c4_i32_42 = arith.constant 4 : i32
    %74 = arith.addi %73, %c4_i32_42 : i32
    %75 = arith.index_cast %74 : i32 to index
    %76 = memref.load %arg2[%75] : memref<160xi32, #tpu.memory_space<smem>>
    %c8_i32_43 = arith.constant 8 : i32
    %c0_i32_44 = arith.constant 0 : i32
    %77 = tpu.memref_slice %arg3[%76, %c0_i32_44] : memref<32786x128xf32, #tpu.memory_space<any>> -> memref<1x128xf32, #tpu.memory_space<any>>
    %c32_i32 = arith.constant 32 : i32
    %c0_i32_45 = arith.constant 0 : i32
    %78 = tpu.memref_slice %arg12[%c32_i32, %c0_i32_45] : memref<64x128xf32, #tpu.memory_space<vmem>> -> memref<1x128xf32, #tpu.memory_space<vmem>>
    %79 = tpu.memref_slice %arg14[%c8_i32_43] : memref<16x!tpu.dma_semaphore, #tpu.memory_space<semaphore_mem>> -> memref<1x!tpu.dma_semaphore, #tpu.memory_space<semaphore_mem>>
    %80 = tpu.memref_squeeze %79 : memref<1x!tpu.dma_semaphore, #tpu.memory_space<semaphore_mem>> -> memref<!tpu.dma_semaphore, #tpu.memory_space<semaphore_mem>>
    tpu.enqueue_dma source(%77 : memref<1x128xf32, #tpu.memory_space<any>>) target(%78 : memref<1x128xf32, #tpu.memory_space<vmem>>) target_semaphore(%80 : memref<!tpu.dma_semaphore, #tpu.memory_space<semaphore_mem>>)
    %c1_46 = arith.constant 1 : index
    %81 = memref.load %arg1[%c1_46] : memref<8xi32, #tpu.memory_space<smem>>
    %c8_i32_47 = arith.constant 8 : i32
    %82 = arith.muli %81, %c8_i32_47 : i32
    %c4_i32_48 = arith.constant 4 : i32
    %83 = arith.addi %82, %c4_i32_48 : i32
    %84 = arith.index_cast %83 : i32 to index
    %85 = memref.load %arg2[%84] : memref<160xi32, #tpu.memory_space<smem>>
    %c9_i32_49 = arith.constant 9 : i32
    %c0_i32_50 = arith.constant 0 : i32
    %86 = tpu.memref_slice %arg3[%85, %c0_i32_50] : memref<32786x128xf32, #tpu.memory_space<any>> -> memref<1x128xf32, #tpu.memory_space<any>>
    %c33_i32 = arith.constant 33 : i32
    %c0_i32_51 = arith.constant 0 : i32
    %87 = tpu.memref_slice %arg12[%c33_i32, %c0_i32_51] : memref<64x128xf32, #tpu.memory_space<vmem>> -> memref<1x128xf32, #tpu.memory_space<vmem>>
    %88 = tpu.memref_slice %arg14[%c9_i32_49] : memref<16x!tpu.dma_semaphore, #tpu.memory_space<semaphore_mem>> -> memref<1x!tpu.dma_semaphore, #tpu.memory_space<semaphore_mem>>
    %89 = tpu.memref_squeeze %88 : memref<1x!tpu.dma_semaphore, #tpu.memory_space<semaphore_mem>> -> memref<!tpu.dma_semaphore, #tpu.memory_space<semaphore_mem>>
    tpu.enqueue_dma source(%86 : memref<1x128xf32, #tpu.memory_space<any>>) target(%87 : memref<1x128xf32, #tpu.memory_space<vmem>>) target_semaphore(%89 : memref<!tpu.dma_semaphore, #tpu.memory_space<semaphore_mem>>)
    %c0_52 = arith.constant 0 : index
    %90 = memref.load %arg1[%c0_52] : memref<8xi32, #tpu.memory_space<smem>>
    %c8_i32_53 = arith.constant 8 : i32
    %91 = arith.muli %90, %c8_i32_53 : i32
    %c5_i32_54 = arith.constant 5 : i32
    %92 = arith.addi %91, %c5_i32_54 : i32
    %93 = arith.index_cast %92 : i32 to index
    %94 = memref.load %arg2[%93] : memref<160xi32, #tpu.memory_space<smem>>
    %c10_i32 = arith.constant 10 : i32
    %c0_i32_55 = arith.constant 0 : i32
    %95 = tpu.memref_slice %arg3[%94, %c0_i32_55] : memref<32786x128xf32, #tpu.memory_space<any>> -> memref<1x128xf32, #tpu.memory_space<any>>
    %c40_i32 = arith.constant 40 : i32
    %c0_i32_56 = arith.constant 0 : i32
    %96 = tpu.memref_slice %arg12[%c40_i32, %c0_i32_56] : memref<64x128xf32, #tpu.memory_space<vmem>> -> memref<1x128xf32, #tpu.memory_space<vmem>>
    %97 = tpu.memref_slice %arg14[%c10_i32] : memref<16x!tpu.dma_semaphore, #tpu.memory_space<semaphore_mem>> -> memref<1x!tpu.dma_semaphore, #tpu.memory_space<semaphore_mem>>
    %98 = tpu.memref_squeeze %97 : memref<1x!tpu.dma_semaphore, #tpu.memory_space<semaphore_mem>> -> memref<!tpu.dma_semaphore, #tpu.memory_space<semaphore_mem>>
    tpu.enqueue_dma source(%95 : memref<1x128xf32, #tpu.memory_space<any>>) target(%96 : memref<1x128xf32, #tpu.memory_space<vmem>>) target_semaphore(%98 : memref<!tpu.dma_semaphore, #tpu.memory_space<semaphore_mem>>)
    %c1_57 = arith.constant 1 : index
    %99 = memref.load %arg1[%c1_57] : memref<8xi32, #tpu.memory_space<smem>>
    %c8_i32_58 = arith.constant 8 : i32
    %100 = arith.muli %99, %c8_i32_58 : i32
    %c5_i32_59 = arith.constant 5 : i32
    %101 = arith.addi %100, %c5_i32_59 : i32
    %102 = arith.index_cast %101 : i32 to index
    %103 = memref.load %arg2[%102] : memref<160xi32, #tpu.memory_space<smem>>
    %c11_i32 = arith.constant 11 : i32
    %c0_i32_60 = arith.constant 0 : i32
    %104 = tpu.memref_slice %arg3[%103, %c0_i32_60] : memref<32786x128xf32, #tpu.memory_space<any>> -> memref<1x128xf32, #tpu.memory_space<any>>
    %c41_i32 = arith.constant 41 : i32
    %c0_i32_61 = arith.constant 0 : i32
    %105 = tpu.memref_slice %arg12[%c41_i32, %c0_i32_61] : memref<64x128xf32, #tpu.memory_space<vmem>> -> memref<1x128xf32, #tpu.memory_space<vmem>>
    %106 = tpu.memref_slice %arg14[%c11_i32] : memref<16x!tpu.dma_semaphore, #tpu.memory_space<semaphore_mem>> -> memref<1x!tpu.dma_semaphore, #tpu.memory_space<semaphore_mem>>
    %107 = tpu.memref_squeeze %106 : memref<1x!tpu.dma_semaphore, #tpu.memory_space<semaphore_mem>> -> memref<!tpu.dma_semaphore, #tpu.memory_space<semaphore_mem>>
    tpu.enqueue_dma source(%104 : memref<1x128xf32, #tpu.memory_space<any>>) target(%105 : memref<1x128xf32, #tpu.memory_space<vmem>>) target_semaphore(%107 : memref<!tpu.dma_semaphore, #tpu.memory_space<semaphore_mem>>)
    %c0_62 = arith.constant 0 : index
    %108 = memref.load %arg1[%c0_62] : memref<8xi32, #tpu.memory_space<smem>>
    %c8_i32_63 = arith.constant 8 : i32
    %109 = arith.muli %108, %c8_i32_63 : i32
    %c6_i32_64 = arith.constant 6 : i32
    %110 = arith.addi %109, %c6_i32_64 : i32
    %111 = arith.index_cast %110 : i32 to index
    %112 = memref.load %arg2[%111] : memref<160xi32, #tpu.memory_space<smem>>
    %c12_i32 = arith.constant 12 : i32
    %c0_i32_65 = arith.constant 0 : i32
    %113 = tpu.memref_slice %arg3[%112, %c0_i32_65] : memref<32786x128xf32, #tpu.memory_space<any>> -> memref<1x128xf32, #tpu.memory_space<any>>
    %c48_i32 = arith.constant 48 : i32
    %c0_i32_66 = arith.constant 0 : i32
    %114 = tpu.memref_slice %arg12[%c48_i32, %c0_i32_66] : memref<64x128xf32, #tpu.memory_space<vmem>> -> memref<1x128xf32, #tpu.memory_space<vmem>>
    %115 = tpu.memref_slice %arg14[%c12_i32] : memref<16x!tpu.dma_semaphore, #tpu.memory_space<semaphore_mem>> -> memref<1x!tpu.dma_semaphore, #tpu.memory_space<semaphore_mem>>
    %116 = tpu.memref_squeeze %115 : memref<1x!tpu.dma_semaphore, #tpu.memory_space<semaphore_mem>> -> memref<!tpu.dma_semaphore, #tpu.memory_space<semaphore_mem>>
    tpu.enqueue_dma source(%113 : memref<1x128xf32, #tpu.memory_space<any>>) target(%114 : memref<1x128xf32, #tpu.memory_space<vmem>>) target_semaphore(%116 : memref<!tpu.dma_semaphore, #tpu.memory_space<semaphore_mem>>)
    %c1_67 = arith.constant 1 : index
    %117 = memref.load %arg1[%c1_67] : memref<8xi32, #tpu.memory_space<smem>>
    %c8_i32_68 = arith.constant 8 : i32
    %118 = arith.muli %117, %c8_i32_68 : i32
    %c6_i32_69 = arith.constant 6 : i32
    %119 = arith.addi %118, %c6_i32_69 : i32
    %120 = arith.index_cast %119 : i32 to index
    %121 = memref.load %arg2[%120] : memref<160xi32, #tpu.memory_space<smem>>
    %c13_i32 = arith.constant 13 : i32
    %c0_i32_70 = arith.constant 0 : i32
    %122 = tpu.memref_slice %arg3[%121, %c0_i32_70] : memref<32786x128xf32, #tpu.memory_space<any>> -> memref<1x128xf32, #tpu.memory_space<any>>
    %c49_i32 = arith.constant 49 : i32
    %c0_i32_71 = arith.constant 0 : i32
    %123 = tpu.memref_slice %arg12[%c49_i32, %c0_i32_71] : memref<64x128xf32, #tpu.memory_space<vmem>> -> memref<1x128xf32, #tpu.memory_space<vmem>>
    %124 = tpu.memref_slice %arg14[%c13_i32] : memref<16x!tpu.dma_semaphore, #tpu.memory_space<semaphore_mem>> -> memref<1x!tpu.dma_semaphore, #tpu.memory_space<semaphore_mem>>
    %125 = tpu.memref_squeeze %124 : memref<1x!tpu.dma_semaphore, #tpu.memory_space<semaphore_mem>> -> memref<!tpu.dma_semaphore, #tpu.memory_space<semaphore_mem>>
    tpu.enqueue_dma source(%122 : memref<1x128xf32, #tpu.memory_space<any>>) target(%123 : memref<1x128xf32, #tpu.memory_space<vmem>>) target_semaphore(%125 : memref<!tpu.dma_semaphore, #tpu.memory_space<semaphore_mem>>)
    %c0_72 = arith.constant 0 : index
    %126 = memref.load %arg1[%c0_72] : memref<8xi32, #tpu.memory_space<smem>>
    %c8_i32_73 = arith.constant 8 : i32
    %127 = arith.muli %126, %c8_i32_73 : i32
    %c7_i32_74 = arith.constant 7 : i32
    %128 = arith.addi %127, %c7_i32_74 : i32
    %129 = arith.index_cast %128 : i32 to index
    %130 = memref.load %arg2[%129] : memref<160xi32, #tpu.memory_space<smem>>
    %c14_i32 = arith.constant 14 : i32
    %c0_i32_75 = arith.constant 0 : i32
    %131 = tpu.memref_slice %arg3[%130, %c0_i32_75] : memref<32786x128xf32, #tpu.memory_space<any>> -> memref<1x128xf32, #tpu.memory_space<any>>
    %c56_i32 = arith.constant 56 : i32
    %c0_i32_76 = arith.constant 0 : i32
    %132 = tpu.memref_slice %arg12[%c56_i32, %c0_i32_76] : memref<64x128xf32, #tpu.memory_space<vmem>> -> memref<1x128xf32, #tpu.memory_space<vmem>>
    %133 = tpu.memref_slice %arg14[%c14_i32] : memref<16x!tpu.dma_semaphore, #tpu.memory_space<semaphore_mem>> -> memref<1x!tpu.dma_semaphore, #tpu.memory_space<semaphore_mem>>
    %134 = tpu.memref_squeeze %133 : memref<1x!tpu.dma_semaphore, #tpu.memory_space<semaphore_mem>> -> memref<!tpu.dma_semaphore, #tpu.memory_space<semaphore_mem>>
    tpu.enqueue_dma source(%131 : memref<1x128xf32, #tpu.memory_space<any>>) target(%132 : memref<1x128xf32, #tpu.memory_space<vmem>>) target_semaphore(%134 : memref<!tpu.dma_semaphore, #tpu.memory_space<semaphore_mem>>)
    %c1_77 = arith.constant 1 : index
    %135 = memref.load %arg1[%c1_77] : memref<8xi32, #tpu.memory_space<smem>>
    %c8_i32_78 = arith.constant 8 : i32
    %136 = arith.muli %135, %c8_i32_78 : i32
    %c7_i32_79 = arith.constant 7 : i32
    %137 = arith.addi %136, %c7_i32_79 : i32
    %138 = arith.index_cast %137 : i32 to index
    %139 = memref.load %arg2[%138] : memref<160xi32, #tpu.memory_space<smem>>
    %c15_i32 = arith.constant 15 : i32
    %c0_i32_80 = arith.constant 0 : i32
    %140 = tpu.memref_slice %arg3[%139, %c0_i32_80] : memref<32786x128xf32, #tpu.memory_space<any>> -> memref<1x128xf32, #tpu.memory_space<any>>
    %c57_i32 = arith.constant 57 : i32
    %c0_i32_81 = arith.constant 0 : i32
    %141 = tpu.memref_slice %arg12[%c57_i32, %c0_i32_81] : memref<64x128xf32, #tpu.memory_space<vmem>> -> memref<1x128xf32, #tpu.memory_space<vmem>>
    %142 = tpu.memref_slice %arg14[%c15_i32] : memref<16x!tpu.dma_semaphore, #tpu.memory_space<semaphore_mem>> -> memref<1x!tpu.dma_semaphore, #tpu.memory_space<semaphore_mem>>
    %143 = tpu.memref_squeeze %142 : memref<1x!tpu.dma_semaphore, #tpu.memory_space<semaphore_mem>> -> memref<!tpu.dma_semaphore, #tpu.memory_space<semaphore_mem>>
    tpu.enqueue_dma source(%140 : memref<1x128xf32, #tpu.memory_space<any>>) target(%141 : memref<1x128xf32, #tpu.memory_space<vmem>>) target_semaphore(%143 : memref<!tpu.dma_semaphore, #tpu.memory_space<semaphore_mem>>)
    %c0_i32_82 = arith.constant 0 : i32
    %c0_i32_83 = arith.constant 0 : i32
    %144 = tpu.memref_slice %arg3[%4, %c0_i32_83] : memref<32786x128xf32, #tpu.memory_space<any>> -> memref<1x128xf32, #tpu.memory_space<any>>
    %c0_i32_84 = arith.constant 0 : i32
    %c0_i32_85 = arith.constant 0 : i32
    %145 = tpu.memref_slice %arg12[%c0_i32_84, %c0_i32_85] : memref<64x128xf32, #tpu.memory_space<vmem>> -> memref<1x128xf32, #tpu.memory_space<vmem>>
    %146 = tpu.memref_slice %arg14[%c0_i32_82] : memref<16x!tpu.dma_semaphore, #tpu.memory_space<semaphore_mem>> -> memref<1x!tpu.dma_semaphore, #tpu.memory_space<semaphore_mem>>
    %147 = tpu.memref_squeeze %146 : memref<1x!tpu.dma_semaphore, #tpu.memory_space<semaphore_mem>> -> memref<!tpu.dma_semaphore, #tpu.memory_space<semaphore_mem>>
    tpu.wait_dma2 semaphore(%147 : memref<!tpu.dma_semaphore, #tpu.memory_space<semaphore_mem>>) src(%144 : memref<1x128xf32, #tpu.memory_space<any>>) dst(%145 : memref<1x128xf32, #tpu.memory_space<vmem>>)
    %c1_i32_86 = arith.constant 1 : i32
    %c0_i32_87 = arith.constant 0 : i32
    %148 = tpu.memref_slice %arg3[%13, %c0_i32_87] : memref<32786x128xf32, #tpu.memory_space<any>> -> memref<1x128xf32, #tpu.memory_space<any>>
    %c1_i32_88 = arith.constant 1 : i32
    %c0_i32_89 = arith.constant 0 : i32
    %149 = tpu.memref_slice %arg12[%c1_i32_88, %c0_i32_89] : memref<64x128xf32, #tpu.memory_space<vmem>> -> memref<1x128xf32, #tpu.memory_space<vmem>>
    %150 = tpu.memref_slice %arg14[%c1_i32_86] : memref<16x!tpu.dma_semaphore, #tpu.memory_space<semaphore_mem>> -> memref<1x!tpu.dma_semaphore, #tpu.memory_space<semaphore_mem>>
    %151 = tpu.memref_squeeze %150 : memref<1x!tpu.dma_semaphore, #tpu.memory_space<semaphore_mem>> -> memref<!tpu.dma_semaphore, #tpu.memory_space<semaphore_mem>>
    tpu.wait_dma2 semaphore(%151 : memref<!tpu.dma_semaphore, #tpu.memory_space<semaphore_mem>>) src(%148 : memref<1x128xf32, #tpu.memory_space<any>>) dst(%149 : memref<1x128xf32, #tpu.memory_space<vmem>>)
    %c2_i32_90 = arith.constant 2 : i32
    %c0_i32_91 = arith.constant 0 : i32
    %152 = tpu.memref_slice %arg3[%22, %c0_i32_91] : memref<32786x128xf32, #tpu.memory_space<any>> -> memref<1x128xf32, #tpu.memory_space<any>>
    %c8_i32_92 = arith.constant 8 : i32
    %c0_i32_93 = arith.constant 0 : i32
    %153 = tpu.memref_slice %arg12[%c8_i32_92, %c0_i32_93] : memref<64x128xf32, #tpu.memory_space<vmem>> -> memref<1x128xf32, #tpu.memory_space<vmem>>
    %154 = tpu.memref_slice %arg14[%c2_i32_90] : memref<16x!tpu.dma_semaphore, #tpu.memory_space<semaphore_mem>> -> memref<1x!tpu.dma_semaphore, #tpu.memory_space<semaphore_mem>>
    %155 = tpu.memref_squeeze %154 : memref<1x!tpu.dma_semaphore, #tpu.memory_space<semaphore_mem>> -> memref<!tpu.dma_semaphore, #tpu.memory_space<semaphore_mem>>
    tpu.wait_dma2 semaphore(%155 : memref<!tpu.dma_semaphore, #tpu.memory_space<semaphore_mem>>) src(%152 : memref<1x128xf32, #tpu.memory_space<any>>) dst(%153 : memref<1x128xf32, #tpu.memory_space<vmem>>)
    %c3_i32_94 = arith.constant 3 : i32
    %c0_i32_95 = arith.constant 0 : i32
    %156 = tpu.memref_slice %arg3[%31, %c0_i32_95] : memref<32786x128xf32, #tpu.memory_space<any>> -> memref<1x128xf32, #tpu.memory_space<any>>
    %c9_i32_96 = arith.constant 9 : i32
    %c0_i32_97 = arith.constant 0 : i32
    %157 = tpu.memref_slice %arg12[%c9_i32_96, %c0_i32_97] : memref<64x128xf32, #tpu.memory_space<vmem>> -> memref<1x128xf32, #tpu.memory_space<vmem>>
    %158 = tpu.memref_slice %arg14[%c3_i32_94] : memref<16x!tpu.dma_semaphore, #tpu.memory_space<semaphore_mem>> -> memref<1x!tpu.dma_semaphore, #tpu.memory_space<semaphore_mem>>
    %159 = tpu.memref_squeeze %158 : memref<1x!tpu.dma_semaphore, #tpu.memory_space<semaphore_mem>> -> memref<!tpu.dma_semaphore, #tpu.memory_space<semaphore_mem>>
    tpu.wait_dma2 semaphore(%159 : memref<!tpu.dma_semaphore, #tpu.memory_space<semaphore_mem>>) src(%156 : memref<1x128xf32, #tpu.memory_space<any>>) dst(%157 : memref<1x128xf32, #tpu.memory_space<vmem>>)
    %c4_i32_98 = arith.constant 4 : i32
    %c0_i32_99 = arith.constant 0 : i32
    %160 = tpu.memref_slice %arg3[%40, %c0_i32_99] : memref<32786x128xf32, #tpu.memory_space<any>> -> memref<1x128xf32, #tpu.memory_space<any>>
    %c16_i32_100 = arith.constant 16 : i32
    %c0_i32_101 = arith.constant 0 : i32
    %161 = tpu.memref_slice %arg12[%c16_i32_100, %c0_i32_101] : memref<64x128xf32, #tpu.memory_space<vmem>> -> memref<1x128xf32, #tpu.memory_space<vmem>>
    %162 = tpu.memref_slice %arg14[%c4_i32_98] : memref<16x!tpu.dma_semaphore, #tpu.memory_space<semaphore_mem>> -> memref<1x!tpu.dma_semaphore, #tpu.memory_space<semaphore_mem>>
    %163 = tpu.memref_squeeze %162 : memref<1x!tpu.dma_semaphore, #tpu.memory_space<semaphore_mem>> -> memref<!tpu.dma_semaphore, #tpu.memory_space<semaphore_mem>>
    tpu.wait_dma2 semaphore(%163 : memref<!tpu.dma_semaphore, #tpu.memory_space<semaphore_mem>>) src(%160 : memref<1x128xf32, #tpu.memory_space<any>>) dst(%161 : memref<1x128xf32, #tpu.memory_space<vmem>>)
    %c5_i32_102 = arith.constant 5 : i32
    %c0_i32_103 = arith.constant 0 : i32
    %164 = tpu.memref_slice %arg3[%49, %c0_i32_103] : memref<32786x128xf32, #tpu.memory_space<any>> -> memref<1x128xf32, #tpu.memory_space<any>>
    %c17_i32_104 = arith.constant 17 : i32
    %c0_i32_105 = arith.constant 0 : i32
    %165 = tpu.memref_slice %arg12[%c17_i32_104, %c0_i32_105] : memref<64x128xf32, #tpu.memory_space<vmem>> -> memref<1x128xf32, #tpu.memory_space<vmem>>
    %166 = tpu.memref_slice %arg14[%c5_i32_102] : memref<16x!tpu.dma_semaphore, #tpu.memory_space<semaphore_mem>> -> memref<1x!tpu.dma_semaphore, #tpu.memory_space<semaphore_mem>>
    %167 = tpu.memref_squeeze %166 : memref<1x!tpu.dma_semaphore, #tpu.memory_space<semaphore_mem>> -> memref<!tpu.dma_semaphore, #tpu.memory_space<semaphore_mem>>
    tpu.wait_dma2 semaphore(%167 : memref<!tpu.dma_semaphore, #tpu.memory_space<semaphore_mem>>) src(%164 : memref<1x128xf32, #tpu.memory_space<any>>) dst(%165 : memref<1x128xf32, #tpu.memory_space<vmem>>)
    %c6_i32_106 = arith.constant 6 : i32
    %c0_i32_107 = arith.constant 0 : i32
    %168 = tpu.memref_slice %arg3[%58, %c0_i32_107] : memref<32786x128xf32, #tpu.memory_space<any>> -> memref<1x128xf32, #tpu.memory_space<any>>
    %c24_i32_108 = arith.constant 24 : i32
    %c0_i32_109 = arith.constant 0 : i32
    %169 = tpu.memref_slice %arg12[%c24_i32_108, %c0_i32_109] : memref<64x128xf32, #tpu.memory_space<vmem>> -> memref<1x128xf32, #tpu.memory_space<vmem>>
    %170 = tpu.memref_slice %arg14[%c6_i32_106] : memref<16x!tpu.dma_semaphore, #tpu.memory_space<semaphore_mem>> -> memref<1x!tpu.dma_semaphore, #tpu.memory_space<semaphore_mem>>
    %171 = tpu.memref_squeeze %170 : memref<1x!tpu.dma_semaphore, #tpu.memory_space<semaphore_mem>> -> memref<!tpu.dma_semaphore, #tpu.memory_space<semaphore_mem>>
    tpu.wait_dma2 semaphore(%171 : memref<!tpu.dma_semaphore, #tpu.memory_space<semaphore_mem>>) src(%168 : memref<1x128xf32, #tpu.memory_space<any>>) dst(%169 : memref<1x128xf32, #tpu.memory_space<vmem>>)
    %c7_i32_110 = arith.constant 7 : i32
    %c0_i32_111 = arith.constant 0 : i32
    %172 = tpu.memref_slice %arg3[%67, %c0_i32_111] : memref<32786x128xf32, #tpu.memory_space<any>> -> memref<1x128xf32, #tpu.memory_space<any>>
    %c25_i32_112 = arith.constant 25 : i32
    %c0_i32_113 = arith.constant 0 : i32
    %173 = tpu.memref_slice %arg12[%c25_i32_112, %c0_i32_113] : memref<64x128xf32, #tpu.memory_space<vmem>> -> memref<1x128xf32, #tpu.memory_space<vmem>>
    %174 = tpu.memref_slice %arg14[%c7_i32_110] : memref<16x!tpu.dma_semaphore, #tpu.memory_space<semaphore_mem>> -> memref<1x!tpu.dma_semaphore, #tpu.memory_space<semaphore_mem>>
    %175 = tpu.memref_squeeze %174 : memref<1x!tpu.dma_semaphore, #tpu.memory_space<semaphore_mem>> -> memref<!tpu.dma_semaphore, #tpu.memory_space<semaphore_mem>>
    tpu.wait_dma2 semaphore(%175 : memref<!tpu.dma_semaphore, #tpu.memory_space<semaphore_mem>>) src(%172 : memref<1x128xf32, #tpu.memory_space<any>>) dst(%173 : memref<1x128xf32, #tpu.memory_space<vmem>>)
    %c8_i32_114 = arith.constant 8 : i32
    %c0_i32_115 = arith.constant 0 : i32
    %176 = tpu.memref_slice %arg3[%76, %c0_i32_115] : memref<32786x128xf32, #tpu.memory_space<any>> -> memref<1x128xf32, #tpu.memory_space<any>>
    %c32_i32_116 = arith.constant 32 : i32
    %c0_i32_117 = arith.constant 0 : i32
    %177 = tpu.memref_slice %arg12[%c32_i32_116, %c0_i32_117] : memref<64x128xf32, #tpu.memory_space<vmem>> -> memref<1x128xf32, #tpu.memory_space<vmem>>
    %178 = tpu.memref_slice %arg14[%c8_i32_114] : memref<16x!tpu.dma_semaphore, #tpu.memory_space<semaphore_mem>> -> memref<1x!tpu.dma_semaphore, #tpu.memory_space<semaphore_mem>>
    %179 = tpu.memref_squeeze %178 : memref<1x!tpu.dma_semaphore, #tpu.memory_space<semaphore_mem>> -> memref<!tpu.dma_semaphore, #tpu.memory_space<semaphore_mem>>
    tpu.wait_dma2 semaphore(%179 : memref<!tpu.dma_semaphore, #tpu.memory_space<semaphore_mem>>) src(%176 : memref<1x128xf32, #tpu.memory_space<any>>) dst(%177 : memref<1x128xf32, #tpu.memory_space<vmem>>)
    %c9_i32_118 = arith.constant 9 : i32
    %c0_i32_119 = arith.constant 0 : i32
    %180 = tpu.memref_slice %arg3[%85, %c0_i32_119] : memref<32786x128xf32, #tpu.memory_space<any>> -> memref<1x128xf32, #tpu.memory_space<any>>
    %c33_i32_120 = arith.constant 33 : i32
    %c0_i32_121 = arith.constant 0 : i32
    %181 = tpu.memref_slice %arg12[%c33_i32_120, %c0_i32_121] : memref<64x128xf32, #tpu.memory_space<vmem>> -> memref<1x128xf32, #tpu.memory_space<vmem>>
    %182 = tpu.memref_slice %arg14[%c9_i32_118] : memref<16x!tpu.dma_semaphore, #tpu.memory_space<semaphore_mem>> -> memref<1x!tpu.dma_semaphore, #tpu.memory_space<semaphore_mem>>
    %183 = tpu.memref_squeeze %182 : memref<1x!tpu.dma_semaphore, #tpu.memory_space<semaphore_mem>> -> memref<!tpu.dma_semaphore, #tpu.memory_space<semaphore_mem>>
    tpu.wait_dma2 semaphore(%183 : memref<!tpu.dma_semaphore, #tpu.memory_space<semaphore_mem>>) src(%180 : memref<1x128xf32, #tpu.memory_space<any>>) dst(%181 : memref<1x128xf32, #tpu.memory_space<vmem>>)
    %c10_i32_122 = arith.constant 10 : i32
    %c0_i32_123 = arith.constant 0 : i32
    %184 = tpu.memref_slice %arg3[%94, %c0_i32_123] : memref<32786x128xf32, #tpu.memory_space<any>> -> memref<1x128xf32, #tpu.memory_space<any>>
    %c40_i32_124 = arith.constant 40 : i32
    %c0_i32_125 = arith.constant 0 : i32
    %185 = tpu.memref_slice %arg12[%c40_i32_124, %c0_i32_125] : memref<64x128xf32, #tpu.memory_space<vmem>> -> memref<1x128xf32, #tpu.memory_space<vmem>>
    %186 = tpu.memref_slice %arg14[%c10_i32_122] : memref<16x!tpu.dma_semaphore, #tpu.memory_space<semaphore_mem>> -> memref<1x!tpu.dma_semaphore, #tpu.memory_space<semaphore_mem>>
    %187 = tpu.memref_squeeze %186 : memref<1x!tpu.dma_semaphore, #tpu.memory_space<semaphore_mem>> -> memref<!tpu.dma_semaphore, #tpu.memory_space<semaphore_mem>>
    tpu.wait_dma2 semaphore(%187 : memref<!tpu.dma_semaphore, #tpu.memory_space<semaphore_mem>>) src(%184 : memref<1x128xf32, #tpu.memory_space<any>>) dst(%185 : memref<1x128xf32, #tpu.memory_space<vmem>>)
    %c11_i32_126 = arith.constant 11 : i32
    %c0_i32_127 = arith.constant 0 : i32
    %188 = tpu.memref_slice %arg3[%103, %c0_i32_127] : memref<32786x128xf32, #tpu.memory_space<any>> -> memref<1x128xf32, #tpu.memory_space<any>>
    %c41_i32_128 = arith.constant 41 : i32
    %c0_i32_129 = arith.constant 0 : i32
    %189 = tpu.memref_slice %arg12[%c41_i32_128, %c0_i32_129] : memref<64x128xf32, #tpu.memory_space<vmem>> -> memref<1x128xf32, #tpu.memory_space<vmem>>
    %190 = tpu.memref_slice %arg14[%c11_i32_126] : memref<16x!tpu.dma_semaphore, #tpu.memory_space<semaphore_mem>> -> memref<1x!tpu.dma_semaphore, #tpu.memory_space<semaphore_mem>>
    %191 = tpu.memref_squeeze %190 : memref<1x!tpu.dma_semaphore, #tpu.memory_space<semaphore_mem>> -> memref<!tpu.dma_semaphore, #tpu.memory_space<semaphore_mem>>
    tpu.wait_dma2 semaphore(%191 : memref<!tpu.dma_semaphore, #tpu.memory_space<semaphore_mem>>) src(%188 : memref<1x128xf32, #tpu.memory_space<any>>) dst(%189 : memref<1x128xf32, #tpu.memory_space<vmem>>)
    %c12_i32_130 = arith.constant 12 : i32
    %c0_i32_131 = arith.constant 0 : i32
    %192 = tpu.memref_slice %arg3[%112, %c0_i32_131] : memref<32786x128xf32, #tpu.memory_space<any>> -> memref<1x128xf32, #tpu.memory_space<any>>
    %c48_i32_132 = arith.constant 48 : i32
    %c0_i32_133 = arith.constant 0 : i32
    %193 = tpu.memref_slice %arg12[%c48_i32_132, %c0_i32_133] : memref<64x128xf32, #tpu.memory_space<vmem>> -> memref<1x128xf32, #tpu.memory_space<vmem>>
    %194 = tpu.memref_slice %arg14[%c12_i32_130] : memref<16x!tpu.dma_semaphore, #tpu.memory_space<semaphore_mem>> -> memref<1x!tpu.dma_semaphore, #tpu.memory_space<semaphore_mem>>
    %195 = tpu.memref_squeeze %194 : memref<1x!tpu.dma_semaphore, #tpu.memory_space<semaphore_mem>> -> memref<!tpu.dma_semaphore, #tpu.memory_space<semaphore_mem>>
    tpu.wait_dma2 semaphore(%195 : memref<!tpu.dma_semaphore, #tpu.memory_space<semaphore_mem>>) src(%192 : memref<1x128xf32, #tpu.memory_space<any>>) dst(%193 : memref<1x128xf32, #tpu.memory_space<vmem>>)
    %c13_i32_134 = arith.constant 13 : i32
    %c0_i32_135 = arith.constant 0 : i32
    %196 = tpu.memref_slice %arg3[%121, %c0_i32_135] : memref<32786x128xf32, #tpu.memory_space<any>> -> memref<1x128xf32, #tpu.memory_space<any>>
    %c49_i32_136 = arith.constant 49 : i32
    %c0_i32_137 = arith.constant 0 : i32
    %197 = tpu.memref_slice %arg12[%c49_i32_136, %c0_i32_137] : memref<64x128xf32, #tpu.memory_space<vmem>> -> memref<1x128xf32, #tpu.memory_space<vmem>>
    %198 = tpu.memref_slice %arg14[%c13_i32_134] : memref<16x!tpu.dma_semaphore, #tpu.memory_space<semaphore_mem>> -> memref<1x!tpu.dma_semaphore, #tpu.memory_space<semaphore_mem>>
    %199 = tpu.memref_squeeze %198 : memref<1x!tpu.dma_semaphore, #tpu.memory_space<semaphore_mem>> -> memref<!tpu.dma_semaphore, #tpu.memory_space<semaphore_mem>>
    tpu.wait_dma2 semaphore(%199 : memref<!tpu.dma_semaphore, #tpu.memory_space<semaphore_mem>>) src(%196 : memref<1x128xf32, #tpu.memory_space<any>>) dst(%197 : memref<1x128xf32, #tpu.memory_space<vmem>>)
    %c14_i32_138 = arith.constant 14 : i32
    %c0_i32_139 = arith.constant 0 : i32
    %200 = tpu.memref_slice %arg3[%130, %c0_i32_139] : memref<32786x128xf32, #tpu.memory_space<any>> -> memref<1x128xf32, #tpu.memory_space<any>>
    %c56_i32_140 = arith.constant 56 : i32
    %c0_i32_141 = arith.constant 0 : i32
    %201 = tpu.memref_slice %arg12[%c56_i32_140, %c0_i32_141] : memref<64x128xf32, #tpu.memory_space<vmem>> -> memref<1x128xf32, #tpu.memory_space<vmem>>
    %202 = tpu.memref_slice %arg14[%c14_i32_138] : memref<16x!tpu.dma_semaphore, #tpu.memory_space<semaphore_mem>> -> memref<1x!tpu.dma_semaphore, #tpu.memory_space<semaphore_mem>>
    %203 = tpu.memref_squeeze %202 : memref<1x!tpu.dma_semaphore, #tpu.memory_space<semaphore_mem>> -> memref<!tpu.dma_semaphore, #tpu.memory_space<semaphore_mem>>
    tpu.wait_dma2 semaphore(%203 : memref<!tpu.dma_semaphore, #tpu.memory_space<semaphore_mem>>) src(%200 : memref<1x128xf32, #tpu.memory_space<any>>) dst(%201 : memref<1x128xf32, #tpu.memory_space<vmem>>)
    %c15_i32_142 = arith.constant 15 : i32
    %c0_i32_143 = arith.constant 0 : i32
    %204 = tpu.memref_slice %arg3[%139, %c0_i32_143] : memref<32786x128xf32, #tpu.memory_space<any>> -> memref<1x128xf32, #tpu.memory_space<any>>
    %c57_i32_144 = arith.constant 57 : i32
    %c0_i32_145 = arith.constant 0 : i32
    %205 = tpu.memref_slice %arg12[%c57_i32_144, %c0_i32_145] : memref<64x128xf32, #tpu.memory_space<vmem>> -> memref<1x128xf32, #tpu.memory_space<vmem>>
    %206 = tpu.memref_slice %arg14[%c15_i32_142] : memref<16x!tpu.dma_semaphore, #tpu.memory_space<semaphore_mem>> -> memref<1x!tpu.dma_semaphore, #tpu.memory_space<semaphore_mem>>
    %207 = tpu.memref_squeeze %206 : memref<1x!tpu.dma_semaphore, #tpu.memory_space<semaphore_mem>> -> memref<!tpu.dma_semaphore, #tpu.memory_space<semaphore_mem>>
    tpu.wait_dma2 semaphore(%207 : memref<!tpu.dma_semaphore, #tpu.memory_space<semaphore_mem>>) src(%204 : memref<1x128xf32, #tpu.memory_space<any>>) dst(%205 : memref<1x128xf32, #tpu.memory_space<vmem>>)
    %c0_146 = arith.constant 0 : index
    %c0_147 = arith.constant 0 : index
    %208 = vector.load %arg12[%c0_146, %c0_147] : memref<64x128xf32, #tpu.memory_space<vmem>>, vector<64x128xf32>
    %c0_148 = arith.constant 0 : index
    %c0_149 = arith.constant 0 : index
    %209 = vector.load %arg4[%c0_148, %c0_149] : memref<128x512xbf16, #tpu.memory_space<vmem>>, vector<128x512xbf16>
    %210 = arith.extf %209 : vector<128x512xbf16> to vector<128x512xf32>
    %cst = arith.constant dense<0.000000e+00> : vector<64x512xf32>
    %211 = tpu.matmul %208, %210, %cst {dimension_numbers = #tpu.dot_dimension_numbers<[1], [0], [0], [1], [0, 0, 1, 1], [], []>} : vector<64x128xf32>, vector<128x512xf32>, vector<64x512xf32> -> vector<64x512xf32>
    %c0_150 = arith.constant 0 : index
    %c0_151 = arith.constant 0 : index
    %212 = vector.load %arg6[%c0_150, %c0_151] : memref<1x512xf32, #tpu.memory_space<vmem>>, vector<1x512xf32>
    %213 = vector.broadcast %212 : vector<1x512xf32> to vector<64x512xf32>
    %214 = arith.addf %211, %213 : vector<64x512xf32>
    %c0_152 = arith.constant 0 : index
    %c0_153 = arith.constant 0 : index
    %215 = vector.load %arg13[%c0_152, %c0_153] : memref<64x512xf32, #tpu.memory_space<vmem>>, vector<64x512xf32>
    tpu.vector_store %arg13[%c0_152, %c0_153], %214 {strides = array<i32>} : memref<64x512xf32, #tpu.memory_space<vmem>>, vector<64x512xf32>,
    %c0_154 = arith.constant 0 : index
    %c0_155 = arith.constant 0 : index
    %216 = vector.load %arg5[%c0_154, %c0_155] : memref<64x512xbf16, #tpu.memory_space<vmem>>, vector<64x512xbf16>
    %217 = arith.extf %216 : vector<64x512xbf16> to vector<64x512xf32>
    %cst_156 = arith.constant 0.000000e+00 : f32
    %218 = vector.broadcast %cst_156 : f32 to vector<8x64xf32>
    %cst_157 = arith.constant 0.000000e+00 : f32
    %219 = vector.broadcast %cst_157 : f32 to vector<8x64xf32>
    %cst_158 = arith.constant dense<0.000000e+00> : vector<8x512xf32>
    %220 = tpu.matmul %218, %217, %cst_158 {dimension_numbers = #tpu.dot_dimension_numbers<[1], [0], [0], [1], [0, 0, 1, 1], [], []>} : vector<8x64xf32>, vector<64x512xf32>, vector<8x512xf32> -> vector<8x512xf32>
    %c0_159 = arith.constant 0 : index
    %c0_160 = arith.constant 0 : index
    %221 = vector.load %arg13[%c0_159, %c0_160] : memref<64x512xf32, #tpu.memory_space<vmem>>, vector<8x512xf32>
    %222 = arith.addf %220, %221 : vector<8x512xf32>
    %223 = vector.extract_strided_slice %222 {offsets = [0, 0], sizes = [8, 64], strides = [1, 1]} : vector<8x512xf32> to vector<8x64xf32>
    %224 = math.tanh %223 : vector<8x64xf32>
    %cst_161 = arith.constant 1.000000e+00 : f32
    %225 = vector.broadcast %cst_161 : f32 to vector<8x64xf32>
    %226 = arith.addf %224, %225 : vector<8x64xf32>
    %cst_162 = arith.constant 5.000000e-01 : f32
    %227 = vector.broadcast %cst_162 : f32 to vector<8x64xf32>
    %228 = arith.mulf %227, %226 : vector<8x64xf32>
    %229 = vector.extract_strided_slice %222 {offsets = [0, 128], sizes = [8, 64], strides = [1, 1]} : vector<8x512xf32> to vector<8x64xf32>
    %230 = math.tanh %229 : vector<8x64xf32>
    %cst_163 = arith.constant 1.000000e+00 : f32
    %231 = vector.broadcast %cst_163 : f32 to vector<8x64xf32>
    %232 = arith.addf %230, %231 : vector<8x64xf32>
    %cst_164 = arith.constant 5.000000e-01 : f32
    %233 = vector.broadcast %cst_164 : f32 to vector<8x64xf32>
    %234 = arith.mulf %233, %232 : vector<8x64xf32>
    %235 = vector.extract_strided_slice %222 {offsets = [0, 256], sizes = [8, 64], strides = [1, 1]} : vector<8x512xf32> to vector<8x64xf32>
    %236 = math.tanh %235 : vector<8x64xf32>
    %cst_165 = arith.constant 1.000000e+00 : f32
    %237 = vector.broadcast %cst_165 : f32 to vector<8x64xf32>
    %238 = arith.addf %236, %237 : vector<8x64xf32>
    %cst_166 = arith.constant 5.000000e-01 : f32
    %239 = vector.broadcast %cst_166 : f32 to vector<8x64xf32>
    %240 = arith.mulf %239, %238 : vector<8x64xf32>
    %241 = vector.extract_strided_slice %222 {offsets = [0, 384], sizes = [8, 64], strides = [1, 1]} : vector<8x512xf32> to vector<8x64xf32>
    %242 = math.tanh %241 : vector<8x64xf32>
    %243 = arith.mulf %234, %219 : vector<8x64xf32>
    %244 = arith.mulf %228, %242 : vector<8x64xf32>
    %245 = arith.addf %243, %244 : vector<8x64xf32>
    %246 = math.tanh %245 : vector<8x64xf32>
    %247 = arith.mulf %240, %246 : vector<8x64xf32>
    %cst_167 = arith.constant dense<0.000000e+00> : vector<8x512xf32>
    %248 = tpu.matmul %247, %217, %cst_167 {dimension_numbers = #tpu.dot_dimension_numbers<[1], [0], [0], [1], [0, 0, 1, 1], [], []>} : vector<8x64xf32>, vector<64x512xf32>, vector<8x512xf32> -> vector<8x512xf32>
    %c8 = arith.constant 8 : index
    %c0_168 = arith.constant 0 : index
    %249 = vector.load %arg13[%c8, %c0_168] : memref<64x512xf32, #tpu.memory_space<vmem>>, vector<8x512xf32>
    %250 = arith.addf %248, %249 : vector<8x512xf32>
    %251 = vector.extract_strided_slice %250 {offsets = [0, 0], sizes = [8, 64], strides = [1, 1]} : vector<8x512xf32> to vector<8x64xf32>
    %252 = math.tanh %251 : vector<8x64xf32>
    %cst_169 = arith.constant 1.000000e+00 : f32
    %253 = vector.broadcast %cst_169 : f32 to vector<8x64xf32>
    %254 = arith.addf %252, %253 : vector<8x64xf32>
    %cst_170 = arith.constant 5.000000e-01 : f32
    %255 = vector.broadcast %cst_170 : f32 to vector<8x64xf32>
    %256 = arith.mulf %255, %254 : vector<8x64xf32>
    %257 = vector.extract_strided_slice %250 {offsets = [0, 128], sizes = [8, 64], strides = [1, 1]} : vector<8x512xf32> to vector<8x64xf32>
    %258 = math.tanh %257 : vector<8x64xf32>
    %cst_171 = arith.constant 1.000000e+00 : f32
    %259 = vector.broadcast %cst_171 : f32 to vector<8x64xf32>
    %260 = arith.addf %258, %259 : vector<8x64xf32>
    %cst_172 = arith.constant 5.000000e-01 : f32
    %261 = vector.broadcast %cst_172 : f32 to vector<8x64xf32>
    %262 = arith.mulf %261, %260 : vector<8x64xf32>
    %263 = vector.extract_strided_slice %250 {offsets = [0, 256], sizes = [8, 64], strides = [1, 1]} : vector<8x512xf32> to vector<8x64xf32>
    %264 = math.tanh %263 : vector<8x64xf32>
    %cst_173 = arith.constant 1.000000e+00 : f32
    %265 = vector.broadcast %cst_173 : f32 to vector<8x64xf32>
    %266 = arith.addf %264, %265 : vector<8x64xf32>
    %cst_174 = arith.constant 5.000000e-01 : f32
    %267 = vector.broadcast %cst_174 : f32 to vector<8x64xf32>
    %268 = arith.mulf %267, %266 : vector<8x64xf32>
    %269 = vector.extract_strided_slice %250 {offsets = [0, 384], sizes = [8, 64], strides = [1, 1]} : vector<8x512xf32> to vector<8x64xf32>
    %270 = math.tanh %269 : vector<8x64xf32>
    %271 = arith.mulf %262, %245 : vector<8x64xf32>
    %272 = arith.mulf %256, %270 : vector<8x64xf32>
    %273 = arith.addf %271, %272 : vector<8x64xf32>
    %274 = math.tanh %273 : vector<8x64xf32>
    %275 = arith.mulf %268, %274 : vector<8x64xf32>
    %cst_175 = arith.constant dense<0.000000e+00> : vector<8x512xf32>
    %276 = tpu.matmul %275, %217, %cst_175 {dimension_numbers = #tpu.dot_dimension_numbers<[1], [0], [0], [1], [0, 0, 1, 1], [], []>} : vector<8x64xf32>, vector<64x512xf32>, vector<8x512xf32> -> vector<8x512xf32>
    %c16 = arith.constant 16 : index
    %c0_176 = arith.constant 0 : index
    %277 = vector.load %arg13[%c16, %c0_176] : memref<64x512xf32, #tpu.memory_space<vmem>>, vector<8x512xf32>
    %278 = arith.addf %276, %277 : vector<8x512xf32>
    %279 = vector.extract_strided_slice %278 {offsets = [0, 0], sizes = [8, 64], strides = [1, 1]} : vector<8x512xf32> to vector<8x64xf32>
    %280 = math.tanh %279 : vector<8x64xf32>
    %cst_177 = arith.constant 1.000000e+00 : f32
    %281 = vector.broadcast %cst_177 : f32 to vector<8x64xf32>
    %282 = arith.addf %280, %281 : vector<8x64xf32>
    %cst_178 = arith.constant 5.000000e-01 : f32
    %283 = vector.broadcast %cst_178 : f32 to vector<8x64xf32>
    %284 = arith.mulf %283, %282 : vector<8x64xf32>
    %285 = vector.extract_strided_slice %278 {offsets = [0, 128], sizes = [8, 64], strides = [1, 1]} : vector<8x512xf32> to vector<8x64xf32>
    %286 = math.tanh %285 : vector<8x64xf32>
    %cst_179 = arith.constant 1.000000e+00 : f32
    %287 = vector.broadcast %cst_179 : f32 to vector<8x64xf32>
    %288 = arith.addf %286, %287 : vector<8x64xf32>
    %cst_180 = arith.constant 5.000000e-01 : f32
    %289 = vector.broadcast %cst_180 : f32 to vector<8x64xf32>
    %290 = arith.mulf %289, %288 : vector<8x64xf32>
    %291 = vector.extract_strided_slice %278 {offsets = [0, 256], sizes = [8, 64], strides = [1, 1]} : vector<8x512xf32> to vector<8x64xf32>
    %292 = math.tanh %291 : vector<8x64xf32>
    %cst_181 = arith.constant 1.000000e+00 : f32
    %293 = vector.broadcast %cst_181 : f32 to vector<8x64xf32>
    %294 = arith.addf %292, %293 : vector<8x64xf32>
    %cst_182 = arith.constant 5.000000e-01 : f32
    %295 = vector.broadcast %cst_182 : f32 to vector<8x64xf32>
    %296 = arith.mulf %295, %294 : vector<8x64xf32>
    %297 = vector.extract_strided_slice %278 {offsets = [0, 384], sizes = [8, 64], strides = [1, 1]} : vector<8x512xf32> to vector<8x64xf32>
    %298 = math.tanh %297 : vector<8x64xf32>
    %299 = arith.mulf %290, %273 : vector<8x64xf32>
    %300 = arith.mulf %284, %298 : vector<8x64xf32>
    %301 = arith.addf %299, %300 : vector<8x64xf32>
    %302 = math.tanh %301 : vector<8x64xf32>
    %303 = arith.mulf %296, %302 : vector<8x64xf32>
    %cst_183 = arith.constant dense<0.000000e+00> : vector<8x512xf32>
    %304 = tpu.matmul %303, %217, %cst_183 {dimension_numbers = #tpu.dot_dimension_numbers<[1], [0], [0], [1], [0, 0, 1, 1], [], []>} : vector<8x64xf32>, vector<64x512xf32>, vector<8x512xf32> -> vector<8x512xf32>
    %c24 = arith.constant 24 : index
    %c0_184 = arith.constant 0 : index
    %305 = vector.load %arg13[%c24, %c0_184] : memref<64x512xf32, #tpu.memory_space<vmem>>, vector<8x512xf32>
    %306 = arith.addf %304, %305 : vector<8x512xf32>
    %307 = vector.extract_strided_slice %306 {offsets = [0, 0], sizes = [8, 64], strides = [1, 1]} : vector<8x512xf32> to vector<8x64xf32>
    %308 = math.tanh %307 : vector<8x64xf32>
    %cst_185 = arith.constant 1.000000e+00 : f32
    %309 = vector.broadcast %cst_185 : f32 to vector<8x64xf32>
    %310 = arith.addf %308, %309 : vector<8x64xf32>
    %cst_186 = arith.constant 5.000000e-01 : f32
    %311 = vector.broadcast %cst_186 : f32 to vector<8x64xf32>
    %312 = arith.mulf %311, %310 : vector<8x64xf32>
    %313 = vector.extract_strided_slice %306 {offsets = [0, 128], sizes = [8, 64], strides = [1, 1]} : vector<8x512xf32> to vector<8x64xf32>
    %314 = math.tanh %313 : vector<8x64xf32>
    %cst_187 = arith.constant 1.000000e+00 : f32
    %315 = vector.broadcast %cst_187 : f32 to vector<8x64xf32>
    %316 = arith.addf %314, %315 : vector<8x64xf32>
    %cst_188 = arith.constant 5.000000e-01 : f32
    %317 = vector.broadcast %cst_188 : f32 to vector<8x64xf32>
    %318 = arith.mulf %317, %316 : vector<8x64xf32>
    %319 = vector.extract_strided_slice %306 {offsets = [0, 256], sizes = [8, 64], strides = [1, 1]} : vector<8x512xf32> to vector<8x64xf32>
    %320 = math.tanh %319 : vector<8x64xf32>
    %cst_189 = arith.constant 1.000000e+00 : f32
    %321 = vector.broadcast %cst_189 : f32 to vector<8x64xf32>
    %322 = arith.addf %320, %321 : vector<8x64xf32>
    %cst_190 = arith.constant 5.000000e-01 : f32
    %323 = vector.broadcast %cst_190 : f32 to vector<8x64xf32>
    %324 = arith.mulf %323, %322 : vector<8x64xf32>
    %325 = vector.extract_strided_slice %306 {offsets = [0, 384], sizes = [8, 64], strides = [1, 1]} : vector<8x512xf32> to vector<8x64xf32>
    %326 = math.tanh %325 : vector<8x64xf32>
    %327 = arith.mulf %318, %301 : vector<8x64xf32>
    %328 = arith.mulf %312, %326 : vector<8x64xf32>
    %329 = arith.addf %327, %328 : vector<8x64xf32>
    %330 = math.tanh %329 : vector<8x64xf32>
    %331 = arith.mulf %324, %330 : vector<8x64xf32>
    %cst_191 = arith.constant dense<0.000000e+00> : vector<8x512xf32>
    %332 = tpu.matmul %331, %217, %cst_191 {dimension_numbers = #tpu.dot_dimension_numbers<[1], [0], [0], [1], [0, 0, 1, 1], [], []>} : vector<8x64xf32>, vector<64x512xf32>, vector<8x512xf32> -> vector<8x512xf32>
    %c32 = arith.constant 32 : index
    %c0_192 = arith.constant 0 : index
    %333 = vector.load %arg13[%c32, %c0_192] : memref<64x512xf32, #tpu.memory_space<vmem>>, vector<8x512xf32>
    %334 = arith.addf %332, %333 : vector<8x512xf32>
    %335 = vector.extract_strided_slice %334 {offsets = [0, 0], sizes = [8, 64], strides = [1, 1]} : vector<8x512xf32> to vector<8x64xf32>
    %336 = math.tanh %335 : vector<8x64xf32>
    %cst_193 = arith.constant 1.000000e+00 : f32
    %337 = vector.broadcast %cst_193 : f32 to vector<8x64xf32>
    %338 = arith.addf %336, %337 : vector<8x64xf32>
    %cst_194 = arith.constant 5.000000e-01 : f32
    %339 = vector.broadcast %cst_194 : f32 to vector<8x64xf32>
    %340 = arith.mulf %339, %338 : vector<8x64xf32>
    %341 = vector.extract_strided_slice %334 {offsets = [0, 128], sizes = [8, 64], strides = [1, 1]} : vector<8x512xf32> to vector<8x64xf32>
    %342 = math.tanh %341 : vector<8x64xf32>
    %cst_195 = arith.constant 1.000000e+00 : f32
    %343 = vector.broadcast %cst_195 : f32 to vector<8x64xf32>
    %344 = arith.addf %342, %343 : vector<8x64xf32>
    %cst_196 = arith.constant 5.000000e-01 : f32
    %345 = vector.broadcast %cst_196 : f32 to vector<8x64xf32>
    %346 = arith.mulf %345, %344 : vector<8x64xf32>
    %347 = vector.extract_strided_slice %334 {offsets = [0, 256], sizes = [8, 64], strides = [1, 1]} : vector<8x512xf32> to vector<8x64xf32>
    %348 = math.tanh %347 : vector<8x64xf32>
    %cst_197 = arith.constant 1.000000e+00 : f32
    %349 = vector.broadcast %cst_197 : f32 to vector<8x64xf32>
    %350 = arith.addf %348, %349 : vector<8x64xf32>
    %cst_198 = arith.constant 5.000000e-01 : f32
    %351 = vector.broadcast %cst_198 : f32 to vector<8x64xf32>
    %352 = arith.mulf %351, %350 : vector<8x64xf32>
    %353 = vector.extract_strided_slice %334 {offsets = [0, 384], sizes = [8, 64], strides = [1, 1]} : vector<8x512xf32> to vector<8x64xf32>
    %354 = math.tanh %353 : vector<8x64xf32>
    %355 = arith.mulf %346, %329 : vector<8x64xf32>
    %356 = arith.mulf %340, %354 : vector<8x64xf32>
    %357 = arith.addf %355, %356 : vector<8x64xf32>
    %358 = math.tanh %357 : vector<8x64xf32>
    %359 = arith.mulf %352, %358 : vector<8x64xf32>
    %cst_199 = arith.constant dense<0.000000e+00> : vector<8x512xf32>
    %360 = tpu.matmul %359, %217, %cst_199 {dimension_numbers = #tpu.dot_dimension_numbers<[1], [0], [0], [1], [0, 0, 1, 1], [], []>} : vector<8x64xf32>, vector<64x512xf32>, vector<8x512xf32> -> vector<8x512xf32>
    %c40 = arith.constant 40 : index
    %c0_200 = arith.constant 0 : index
    %361 = vector.load %arg13[%c40, %c0_200] : memref<64x512xf32, #tpu.memory_space<vmem>>, vector<8x512xf32>
    %362 = arith.addf %360, %361 : vector<8x512xf32>
    %363 = vector.extract_strided_slice %362 {offsets = [0, 0], sizes = [8, 64], strides = [1, 1]} : vector<8x512xf32> to vector<8x64xf32>
    %364 = math.tanh %363 : vector<8x64xf32>
    %cst_201 = arith.constant 1.000000e+00 : f32
    %365 = vector.broadcast %cst_201 : f32 to vector<8x64xf32>
    %366 = arith.addf %364, %365 : vector<8x64xf32>
    %cst_202 = arith.constant 5.000000e-01 : f32
    %367 = vector.broadcast %cst_202 : f32 to vector<8x64xf32>
    %368 = arith.mulf %367, %366 : vector<8x64xf32>
    %369 = vector.extract_strided_slice %362 {offsets = [0, 128], sizes = [8, 64], strides = [1, 1]} : vector<8x512xf32> to vector<8x64xf32>
    %370 = math.tanh %369 : vector<8x64xf32>
    %cst_203 = arith.constant 1.000000e+00 : f32
    %371 = vector.broadcast %cst_203 : f32 to vector<8x64xf32>
    %372 = arith.addf %370, %371 : vector<8x64xf32>
    %cst_204 = arith.constant 5.000000e-01 : f32
    %373 = vector.broadcast %cst_204 : f32 to vector<8x64xf32>
    %374 = arith.mulf %373, %372 : vector<8x64xf32>
    %375 = vector.extract_strided_slice %362 {offsets = [0, 256], sizes = [8, 64], strides = [1, 1]} : vector<8x512xf32> to vector<8x64xf32>
    %376 = math.tanh %375 : vector<8x64xf32>
    %cst_205 = arith.constant 1.000000e+00 : f32
    %377 = vector.broadcast %cst_205 : f32 to vector<8x64xf32>
    %378 = arith.addf %376, %377 : vector<8x64xf32>
    %cst_206 = arith.constant 5.000000e-01 : f32
    %379 = vector.broadcast %cst_206 : f32 to vector<8x64xf32>
    %380 = arith.mulf %379, %378 : vector<8x64xf32>
    %381 = vector.extract_strided_slice %362 {offsets = [0, 384], sizes = [8, 64], strides = [1, 1]} : vector<8x512xf32> to vector<8x64xf32>
    %382 = math.tanh %381 : vector<8x64xf32>
    %383 = arith.mulf %374, %357 : vector<8x64xf32>
    %384 = arith.mulf %368, %382 : vector<8x64xf32>
    %385 = arith.addf %383, %384 : vector<8x64xf32>
    %386 = math.tanh %385 : vector<8x64xf32>
    %387 = arith.mulf %380, %386 : vector<8x64xf32>
    %cst_207 = arith.constant dense<0.000000e+00> : vector<8x512xf32>
    %388 = tpu.matmul %387, %217, %cst_207 {dimension_numbers = #tpu.dot_dimension_numbers<[1], [0], [0], [1], [0, 0, 1, 1], [], []>} : vector<8x64xf32>, vector<64x512xf32>, vector<8x512xf32> -> vector<8x512xf32>
    %c48 = arith.constant 48 : index
    %c0_208 = arith.constant 0 : index
    %389 = vector.load %arg13[%c48, %c0_208] : memref<64x512xf32, #tpu.memory_space<vmem>>, vector<8x512xf32>
    %390 = arith.addf %388, %389 : vector<8x512xf32>
    %391 = vector.extract_strided_slice %390 {offsets = [0, 0], sizes = [8, 64], strides = [1, 1]} : vector<8x512xf32> to vector<8x64xf32>
    %392 = math.tanh %391 : vector<8x64xf32>
    %cst_209 = arith.constant 1.000000e+00 : f32
    %393 = vector.broadcast %cst_209 : f32 to vector<8x64xf32>
    %394 = arith.addf %392, %393 : vector<8x64xf32>
    %cst_210 = arith.constant 5.000000e-01 : f32
    %395 = vector.broadcast %cst_210 : f32 to vector<8x64xf32>
    %396 = arith.mulf %395, %394 : vector<8x64xf32>
    %397 = vector.extract_strided_slice %390 {offsets = [0, 128], sizes = [8, 64], strides = [1, 1]} : vector<8x512xf32> to vector<8x64xf32>
    %398 = math.tanh %397 : vector<8x64xf32>
    %cst_211 = arith.constant 1.000000e+00 : f32
    %399 = vector.broadcast %cst_211 : f32 to vector<8x64xf32>
    %400 = arith.addf %398, %399 : vector<8x64xf32>
    %cst_212 = arith.constant 5.000000e-01 : f32
    %401 = vector.broadcast %cst_212 : f32 to vector<8x64xf32>
    %402 = arith.mulf %401, %400 : vector<8x64xf32>
    %403 = vector.extract_strided_slice %390 {offsets = [0, 256], sizes = [8, 64], strides = [1, 1]} : vector<8x512xf32> to vector<8x64xf32>
    %404 = math.tanh %403 : vector<8x64xf32>
    %cst_213 = arith.constant 1.000000e+00 : f32
    %405 = vector.broadcast %cst_213 : f32 to vector<8x64xf32>
    %406 = arith.addf %404, %405 : vector<8x64xf32>
    %cst_214 = arith.constant 5.000000e-01 : f32
    %407 = vector.broadcast %cst_214 : f32 to vector<8x64xf32>
    %408 = arith.mulf %407, %406 : vector<8x64xf32>
    %409 = vector.extract_strided_slice %390 {offsets = [0, 384], sizes = [8, 64], strides = [1, 1]} : vector<8x512xf32> to vector<8x64xf32>
    %410 = math.tanh %409 : vector<8x64xf32>
    %411 = arith.mulf %402, %385 : vector<8x64xf32>
    %412 = arith.mulf %396, %410 : vector<8x64xf32>
    %413 = arith.addf %411, %412 : vector<8x64xf32>
    %414 = math.tanh %413 : vector<8x64xf32>
    %415 = arith.mulf %408, %414 : vector<8x64xf32>
    %cst_215 = arith.constant dense<0.000000e+00> : vector<8x512xf32>
    %416 = tpu.matmul %415, %217, %cst_215 {dimension_numbers = #tpu.dot_dimension_numbers<[1], [0], [0], [1], [0, 0, 1, 1], [], []>} : vector<8x64xf32>, vector<64x512xf32>, vector<8x512xf32> -> vector<8x512xf32>
    %c56 = arith.constant 56 : index
    %c0_216 = arith.constant 0 : index
    %417 = vector.load %arg13[%c56, %c0_216] : memref<64x512xf32, #tpu.memory_space<vmem>>, vector<8x512xf32>
    %418 = arith.addf %416, %417 : vector<8x512xf32>
    %419 = vector.extract_strided_slice %418 {offsets = [0, 0], sizes = [8, 64], strides = [1, 1]} : vector<8x512xf32> to vector<8x64xf32>
    %420 = math.tanh %419 : vector<8x64xf32>
    %cst_217 = arith.constant 1.000000e+00 : f32
    %421 = vector.broadcast %cst_217 : f32 to vector<8x64xf32>
    %422 = arith.addf %420, %421 : vector<8x64xf32>
    %cst_218 = arith.constant 5.000000e-01 : f32
    %423 = vector.broadcast %cst_218 : f32 to vector<8x64xf32>
    %424 = arith.mulf %423, %422 : vector<8x64xf32>
    %425 = vector.extract_strided_slice %418 {offsets = [0, 128], sizes = [8, 64], strides = [1, 1]} : vector<8x512xf32> to vector<8x64xf32>
    %426 = math.tanh %425 : vector<8x64xf32>
    %cst_219 = arith.constant 1.000000e+00 : f32
    %427 = vector.broadcast %cst_219 : f32 to vector<8x64xf32>
    %428 = arith.addf %426, %427 : vector<8x64xf32>
    %cst_220 = arith.constant 5.000000e-01 : f32
    %429 = vector.broadcast %cst_220 : f32 to vector<8x64xf32>
    %430 = arith.mulf %429, %428 : vector<8x64xf32>
    %431 = vector.extract_strided_slice %418 {offsets = [0, 256], sizes = [8, 64], strides = [1, 1]} : vector<8x512xf32> to vector<8x64xf32>
    %432 = math.tanh %431 : vector<8x64xf32>
    %cst_221 = arith.constant 1.000000e+00 : f32
    %433 = vector.broadcast %cst_221 : f32 to vector<8x64xf32>
    %434 = arith.addf %432, %433 : vector<8x64xf32>
    %cst_222 = arith.constant 5.000000e-01 : f32
    %435 = vector.broadcast %cst_222 : f32 to vector<8x64xf32>
    %436 = arith.mulf %435, %434 : vector<8x64xf32>
    %437 = vector.extract_strided_slice %418 {offsets = [0, 384], sizes = [8, 64], strides = [1, 1]} : vector<8x512xf32> to vector<8x64xf32>
    %438 = math.tanh %437 : vector<8x64xf32>
    %439 = arith.mulf %430, %413 : vector<8x64xf32>
    %440 = arith.mulf %424, %438 : vector<8x64xf32>
    %441 = arith.addf %439, %440 : vector<8x64xf32>
    %442 = math.tanh %441 : vector<8x64xf32>
    %443 = arith.mulf %436, %442 : vector<8x64xf32>
    %c0_223 = arith.constant 0 : index
    %c0_224 = arith.constant 0 : index
    %444 = vector.load %arg7[%c0_223, %c0_224] : memref<64x32xf32, #tpu.memory_space<vmem>>, vector<64x32xf32>
    %cst_225 = arith.constant dense<0.000000e+00> : vector<8x32xf32>
    %445 = tpu.matmul %443, %444, %cst_225 {dimension_numbers = #tpu.dot_dimension_numbers<[1], [0], [0], [1], [0, 0, 1, 1], [], []>} : vector<8x64xf32>, vector<64x32xf32>, vector<8x32xf32> -> vector<8x32xf32>
    %c0_226 = arith.constant 0 : index
    %c0_227 = arith.constant 0 : index
    %446 = vector.load %arg8[%c0_226, %c0_227] : memref<1x32xf32, #tpu.memory_space<vmem>>, vector<1x32xf32>
    %447 = vector.broadcast %446 : vector<1x32xf32> to vector<8x32xf32>
    %448 = arith.addf %445, %447 : vector<8x32xf32>
    %cst_228 = arith.constant 0.000000e+00 : f32
    %449 = vector.broadcast %cst_228 : f32 to vector<8x32xf32>
    %450 = arith.maximumf %448, %449 : vector<8x32xf32>
    %c0_229 = arith.constant 0 : index
    %c0_230 = arith.constant 0 : index
    %451 = vector.load %arg9[%c0_229, %c0_230] : memref<32x5xf32, #tpu.memory_space<vmem>>, vector<32x5xf32>
    %cst_231 = arith.constant dense<0.000000e+00> : vector<8x5xf32>
    %452 = tpu.matmul %450, %451, %cst_231 {dimension_numbers = #tpu.dot_dimension_numbers<[1], [0], [0], [1], [0, 0, 1, 1], [], []>} : vector<8x32xf32>, vector<32x5xf32>, vector<8x5xf32> -> vector<8x5xf32>
    %c0_232 = arith.constant 0 : index
    %c0_233 = arith.constant 0 : index
    %453 = vector.load %arg10[%c0_232, %c0_233] : memref<1x5xf32, #tpu.memory_space<vmem>>, vector<1x5xf32>
    %454 = vector.broadcast %453 : vector<1x5xf32> to vector<8x5xf32>
    %455 = arith.addf %452, %454 : vector<8x5xf32>
    %456 = arith.negf %455 : vector<8x5xf32>
    %457 = math.exp %456 : vector<8x5xf32>
    %cst_234 = arith.constant 1.000000e+00 : f32
    %458 = vector.broadcast %cst_234 : f32 to vector<8x5xf32>
    %459 = arith.addf %458, %457 : vector<8x5xf32>
    %460 = arith.divf %458, %459 : vector<8x5xf32>
    %c0_235 = arith.constant 0 : index
    %c0_236 = arith.constant 0 : index
    %461 = vector.load %arg11[%c0_235, %c0_236] : memref<8x5xf32, #tpu.memory_space<vmem>>, vector<8x5xf32>
    tpu.vector_store %arg11[%c0_235, %c0_236], %460 {strides = array<i32>} : memref<8x5xf32, #tpu.memory_space<vmem>>, vector<8x5xf32>,
    return
  }
  func.func @transform_1(%arg0: i32, %arg1: memref<8xi32, #tpu.memory_space<smem>>, %arg2: memref<160xi32, #tpu.memory_space<smem>>) -> (i32, i32) {
    %c0_i32 = arith.constant 0 : i32
    %c0_i32_0 = arith.constant 0 : i32
    %c0_i32_1 = arith.constant 0 : i32
    return %c0_i32, %c0_i32_0 : i32, i32
  }
  func.func @transform_2(%arg0: i32, %arg1: memref<8xi32, #tpu.memory_space<smem>>, %arg2: memref<160xi32, #tpu.memory_space<smem>>) -> (i32, i32) {
    %c0_i32 = arith.constant 0 : i32
    %c0_i32_0 = arith.constant 0 : i32
    %c0_i32_1 = arith.constant 0 : i32
    return %c0_i32, %c0_i32_0 : i32, i32
  }
  func.func @transform_3(%arg0: i32, %arg1: memref<8xi32, #tpu.memory_space<smem>>, %arg2: memref<160xi32, #tpu.memory_space<smem>>) -> (i32, i32) {
    %c0_i32 = arith.constant 0 : i32
    %c0_i32_0 = arith.constant 0 : i32
    %c0_i32_1 = arith.constant 0 : i32
    return %c0_i32, %c0_i32_0 : i32, i32
  }
  func.func @transform_4(%arg0: i32, %arg1: memref<8xi32, #tpu.memory_space<smem>>, %arg2: memref<160xi32, #tpu.memory_space<smem>>) -> (i32, i32) {
    %c0_i32 = arith.constant 0 : i32
    %c0_i32_0 = arith.constant 0 : i32
    %c0_i32_1 = arith.constant 0 : i32
    return %c0_i32, %c0_i32_0 : i32, i32
  }
  func.func @transform_5(%arg0: i32, %arg1: memref<8xi32, #tpu.memory_space<smem>>, %arg2: memref<160xi32, #tpu.memory_space<smem>>) -> (i32, i32) {
    %c0_i32 = arith.constant 0 : i32
    %c0_i32_0 = arith.constant 0 : i32
    %c0_i32_1 = arith.constant 0 : i32
    return %c0_i32, %c0_i32_0 : i32, i32
  }
  func.func @transform_6(%arg0: i32, %arg1: memref<8xi32, #tpu.memory_space<smem>>, %arg2: memref<160xi32, #tpu.memory_space<smem>>) -> (i32, i32) {
    %c0_i32 = arith.constant 0 : i32
    %c0_i32_0 = arith.constant 0 : i32
    %c0_i32_1 = arith.constant 0 : i32
    return %c0_i32, %c0_i32_0 : i32, i32
  }
  func.func @transform_7(%arg0: i32, %arg1: memref<8xi32, #tpu.memory_space<smem>>, %arg2: memref<160xi32, #tpu.memory_space<smem>>) -> (i32, i32) {
    %c0_i32 = arith.constant 0 : i32
    %c0_i32_0 = arith.constant 0 : i32
    %c0_i32_1 = arith.constant 0 : i32
    return %c0_i32, %c0_i32_0 : i32, i32
  }
  func.func @transform_8(%arg0: i32, %arg1: memref<8xi32, #tpu.memory_space<smem>>, %arg2: memref<160xi32, #tpu.memory_space<smem>>) -> (i32, i32) {
    %c0_i32 = arith.constant 0 : i32
    %c0_i32_0 = arith.constant 0 : i32
    %c0_i32_1 = arith.constant 0 : i32
    return %c0_i32, %c0_i32_0 : i32, i32
  }
}

</mosaic_0001>

<llo_original>
// kernel: tpu_custom_call.1
$region0: #{tpu_custom_call.1}
  #allocation0 [shape = 'u32[]', space=smem, size = 0x4, offset = 0x4, fixed_abs, tag = 'smem constant byte address 0x4 - core index']
  #allocation1 [shape = 'u32[72,128]{1,0:T(1,128)}', space=vmem, size = 0x9000, scoped, tag = 'internal scratch']
  #allocation2 [shape = 'f32[64,128]{1,0:T(8,128)}', space=vmem, size = 0x8000, scoped, tag = 'scratch operand']
  #allocation3 [shape = 'f32[64,512]{1,0:T(8,128)}', space=vmem, size = 0x20000, scoped, tag = 'scratch operand']
  #allocation4 [shape = 's32[16]{0}', space=sflag, size = 0x40, scoped, tag = 'scratch operand']
  #allocation5 [shape = 's32[1]{0}', space=sflag, size = 0x4, scoped, tag = 'scoped memory for tpu_custom_call.1']
  #allocation6 [shape = 'u8[512]{0}', space=smem, size = 0x200, scoped, tag = 'prefetched SMEM operand 0']
  #allocation7 [shape = 'u8[1024]{0}', space=smem, size = 0x400, scoped, tag = 'prefetched SMEM operand 1']
  #allocation18 [shape = 's32[]', space=sflag, size = 0x4, offset = 0, fixed_abs, tag = 'sflag constant byte address 0x0 - dummy sync flag']
  #allocation19 [shape = 's32[]', space=sflag, size = 0x4, offset = 0, fixed_abs, tag = 'sflag constant byte address 0x0 - dummy sync flag']
  #allocation20 [shape = 'u32[]', space=smem, size = 0x4, offset = 0x44, fixed_abs, tag = 'smem constant byte address 0x44 - assertion arg 0']
  #allocation21 [shape = 'u32[]', space=smem, size = 0x4, offset = 0x48, fixed_abs, tag = 'smem constant byte address 0x48 - assertion arg 1']
  #allocation22 [shape = 's32[]', space=sflag, size = 0x4, offset = 0, fixed_abs, tag = 'sflag constant byte address 0x0 - dummy sync flag']
  #allocation23 [shape = 's32[]', space=sflag, size = 0x4, offset = 0, fixed_abs, tag = 'sflag constant byte address 0x0 - dummy sync flag']
  #allocation24 [shape = 's32[]', space=sflag, size = 0x4, offset = 0, fixed_abs, tag = 'sflag constant byte address 0x0 - dummy sync flag']
  #allocation25 [shape = 's32[]', space=sflag, size = 0x4, offset = 0, fixed_abs, tag = 'sflag constant byte address 0x0 - dummy sync flag']
  #allocation26 [shape = 's32[]', space=sflag, size = 0x4, offset = 0, fixed_abs, tag = 'sflag constant byte address 0x0 - dummy sync flag']
  #allocation27 [shape = 's32[]', space=sflag, size = 0x4, offset = 0, fixed_abs, tag = 'sflag constant byte address 0x0 - dummy sync flag']
  #allocation28 [shape = 's32[]', space=sflag, size = 0x4, offset = 0, fixed_abs, tag = 'sflag constant byte address 0x0 - dummy sync flag']
  #allocation29 [shape = 's32[]', space=sflag, size = 0x4, offset = 0, fixed_abs, tag = 'sflag constant byte address 0x0 - dummy sync flag']
  #allocation30 [shape = 's32[]', space=sflag, size = 0x4, offset = 0, fixed_abs, tag = 'sflag constant byte address 0x0 - dummy sync flag']
  #allocation31 [shape = 's32[]', space=sflag, size = 0x4, offset = 0, fixed_abs, tag = 'sflag constant byte address 0x0 - dummy sync flag']
  #allocation32 [shape = 's32[]', space=sflag, size = 0x4, offset = 0, fixed_abs, tag = 'sflag constant byte address 0x0 - dummy sync flag']
  #allocation33 [shape = 's32[]', space=sflag, size = 0x4, offset = 0, fixed_abs, tag = 'sflag constant byte address 0x0 - dummy sync flag']
  #allocation34 [shape = 's32[]', space=sflag, size = 0x4, offset = 0, fixed_abs, tag = 'sflag constant byte address 0x0 - dummy sync flag']
  #allocation35 [shape = 's32[]', space=sflag, size = 0x4, offset = 0, fixed_abs, tag = 'sflag constant byte address 0x0 - dummy sync flag']
  #allocation36 [shape = 's32[]', space=sflag, size = 0x4, offset = 0, fixed_abs, tag = 'sflag constant byte address 0x0 - dummy sync flag']
  #allocation37 [shape = 's32[]', space=sflag, size = 0x4, offset = 0, fixed_abs, tag = 'sflag constant byte address 0x0 - dummy sync flag']
  #allocation38 [shape = 's32[]', space=sflag, size = 0x4, offset = 0, fixed_abs, tag = 'sflag constant byte address 0x0 - dummy sync flag']
  #allocation39 [shape = 's32[]', space=sflag, size = 0x4, offset = 0, fixed_abs, tag = 'sflag constant byte address 0x0 - dummy sync flag']
  #allocation40 [shape = 's32[]', space=sflag, size = 0x4, offset = 0, fixed_abs, tag = 'sflag constant byte address 0x0 - dummy sync flag']
  #allocation41 [shape = 's32[]', space=sflag, size = 0x4, offset = 0, fixed_abs, tag = 'sflag constant byte address 0x0 - dummy sync flag']
  #allocation42 [shape = 's32[]', space=sflag, size = 0x4, offset = 0, fixed_abs, tag = 'sflag constant byte address 0x0 - dummy sync flag']
  #allocation43 [shape = 's32[]', space=sflag, size = 0x4, offset = 0, fixed_abs, tag = 'sflag constant byte address 0x0 - dummy sync flag']
  #allocation44 [shape = 's32[]', space=sflag, size = 0x4, offset = 0, fixed_abs, tag = 'sflag constant byte address 0x0 - dummy sync flag']
  #allocation45 [shape = 's32[]', space=sflag, size = 0x4, offset = 0, fixed_abs, tag = 'sflag constant byte address 0x0 - dummy sync flag']
  #allocation46 [shape = 's32[]', space=sflag, size = 0x4, offset = 0, fixed_abs, tag = 'sflag constant byte address 0x0 - dummy sync flag']
  #allocation47 [shape = 's32[]', space=sflag, size = 0x4, offset = 0, fixed_abs, tag = 'sflag constant byte address 0x0 - dummy sync flag']
  #allocation48 [shape = 's32[]', space=sflag, size = 0x4, offset = 0, fixed_abs, tag = 'sflag constant byte address 0x0 - dummy sync flag']
  #allocation49 [shape = 's32[]', space=sflag, size = 0x4, offset = 0, fixed_abs, tag = 'sflag constant byte address 0x0 - dummy sync flag']
  #allocation50 [shape = 's32[]', space=sflag, size = 0x4, offset = 0, fixed_abs, tag = 'sflag constant byte address 0x0 - dummy sync flag']
  #allocation51 [shape = 's32[]', space=sflag, size = 0x4, offset = 0, fixed_abs, tag = 'sflag constant byte address 0x0 - dummy sync flag']
  %s0 = inlined_call_operand.hbm [shape: s32[8], index: 0, kind: input, shape index: {}]
  %s1 = inlined_call_operand.hbm [shape: s32[160], index: 1, kind: input, shape index: {}]
  %s2 = inlined_call_operand.hbm [shape: f32[32786,128], index: 2, kind: input, shape index: {}]
  %s3 = inlined_call_operand.hbm [shape: bf16[128,512], index: 3, kind: input, shape index: {}]
  %s4 = inlined_call_operand.hbm [shape: bf16[64,512], index: 4, kind: input, shape index: {}]
  %s5 = inlined_call_operand.hbm [shape: f32[1,512], index: 5, kind: input, shape index: {}]
  %s6 = inlined_call_operand.vmem [shape: f32[64,32], index: 6, kind: input, shape index: {}]
  %s7 = inlined_call_operand.hbm [shape: f32[1,32], index: 7, kind: input, shape index: {}]
  %s8 = inlined_call_operand.vmem [shape: f32[32,5], index: 8, kind: input, shape index: {}]
  %s9 = inlined_call_operand.hbm [shape: f32[1,5], index: 9, kind: input, shape index: {}]
  %s10 = inlined_call_operand.hbm [shape: f32[8,5], index: 10, kind: output, shape index: {}]
  %s11 = sld [smem:[#allocation0]]
  $region122: #{tpu_custom_call.1} parent=0
    _
  %s13 = ssub.s32 1, %s11
  %s14 = scalar_select 0, %s13, %s11
  %s16 = sshll.u32 %s0, 4
  %s17 = int_to_ptr.hbm [resolvable:$true] %s16
  %19 = dma.hbm_to_smem %s17, 16, [#allocation6], [#allocation5]
  %s21 = sshll.u32 %s1, 4
  %s22 = int_to_ptr.hbm [resolvable:$true] %s21
  %24 = dma.hbm_to_smem %s22, 32, [#allocation7], [#allocation5]
  %26 = dma.done [#allocation5], 48
  %27 = sfence
  $region1: #{tpu_custom_call.1} parent=0
    #allocation8 [shape = 'u8[131072]{0}', space=vmem, size = 0x20000, scoped, tag = 'input window, operand 3, single buffered']
    #allocation9 [shape = 's32[1]{0}', space=sflag, size = 0x4, scoped, tag = 'scoped memory for tpu_custom_call.1']
    #allocation10 [shape = 's32[1]{0}', space=sflag, size = 0x4, scoped, tag = 'scoped memory for tpu_custom_call.1']
    #allocation11 [shape = 'u8[65536]{0}', space=vmem, size = 0x10000, scoped, tag = 'input window, operand 4, single buffered']
    #allocation12 [shape = 's32[1]{0}', space=sflag, size = 0x4, scoped, tag = 'scoped memory for tpu_custom_call.1']
    #allocation13 [shape = 'u8[2048]{0}', space=vmem, size = 0x800, scoped, tag = 'input window, operand 5, single buffered']
    #allocation14 [shape = 'u8[512]{0}', space=vmem, size = 0x400, scoped, tag = 'input window, operand 7, single buffered']
    #allocation15 [shape = 's32[1]{0}', space=sflag, size = 0x4, scoped, tag = 'scoped memory for tpu_custom_call.1']
    #allocation16 [shape = 'u8[512]{0}', space=vmem, size = 0x400, scoped, tag = 'input window, operand 9, single buffered']
    #allocation17 [shape = 'u8[4096]{0}', space=vmem, size = 0x1000, scoped, tag = 'output window, operand 0, single buffered']
    %28 = vsyncpa [#allocation9], 0
    %29 = vsyncpa [#allocation12], 0
    %30 = vsyncpa [#allocation15], 0
    %31 = vsyncpa [#allocation10], 0
    // Predicated region
    $region2: #{tpu_custom_call.1} parent=1 // pred_check
      _
    $region3: #{tpu_custom_call.1} parent=1 // pred_check_branch
      %33 = sbr.rel (0) target = $region5
    $region4: #{tpu_custom_call.1} parent=1 // pred_region
      %35 = vsyncadd [#allocation9], 0
      %s36 = sshll.u32 %s3, 4
      %s37 = int_to_ptr.hbm [resolvable:$true] %s36
      %s38 = sshll.u32 [#allocation8], 4
      %s39 = int_to_ptr.vmem [resolvable:$true] %s38
      %44 = dma.hbm_to_vmem [thread:$0]  %s37, 4096, %s39, [#allocation9], 256, 256, 16
    $region5: #{tpu_custom_call.1} parent=1 // pred_fallthru
      _
    // Predicated region
    $region6: #{tpu_custom_call.1} parent=1 // pred_check
      _
    $region7: #{tpu_custom_call.1} parent=1 // pred_check_branch
      %46 = sbr.rel (0) target = $region9
    $region8: #{tpu_custom_call.1} parent=1 // pred_region
      %48 = vsyncadd [#allocation12], 0
      %s49 = sshll.u32 %s4, 4
      %s50 = int_to_ptr.hbm [resolvable:$true] %s49
      %s51 = sshll.u32 [#allocation11], 4
      %s52 = int_to_ptr.vmem [resolvable:$true] %s51
      %57 = dma.hbm_to_vmem [thread:$0]  %s50, 2048, %s52, [#allocation12], 256, 256, 16
    $region9: #{tpu_custom_call.1} parent=1 // pred_fallthru
      _
    // Predicated region
    $region10: #{tpu_custom_call.1} parent=1 // pred_check
      _
    $region11: #{tpu_custom_call.1} parent=1 // pred_check_branch
      %59 = sbr.rel (0) target = $region13
    $region12: #{tpu_custom_call.1} parent=1 // pred_region
      %61 = vsyncadd [#allocation12], 0
      %s63 = sshll.u32 %s5, 4
      %s64 = int_to_ptr.hbm [resolvable:$true] %s63
      %s65 = sshll.u32 [#allocation13], 4
      %s66 = int_to_ptr.vmem [resolvable:$true] %s65
      %68 = dma.hbm_to_vmem [thread:$0]  %s64, 64, %s66, [#allocation12]
    $region13: #{tpu_custom_call.1} parent=1 // pred_fallthru
      _
    // Predicated region
    $region14: #{tpu_custom_call.1} parent=1 // pred_check
      _
    $region15: #{tpu_custom_call.1} parent=1 // pred_check_branch
      %70 = sbr.rel (0) target = $region17
    $region16: #{tpu_custom_call.1} parent=1 // pred_region
      _
    $region17: #{tpu_custom_call.1} parent=1 // pred_fallthru
      _
    // Predicated region
    $region18: #{tpu_custom_call.1} parent=1 // pred_check
      _
    $region19: #{tpu_custom_call.1} parent=1 // pred_check_branch
      %72 = sbr.rel (0) target = $region21
    $region20: #{tpu_custom_call.1} parent=1 // pred_region
      %74 = vsyncadd [#allocation15], 0
      %s76 = sshll.u32 %s7, 4
      %s77 = int_to_ptr.hbm [resolvable:$true] %s76
      %s78 = sshll.u32 [#allocation14], 4
      %s79 = int_to_ptr.vmem [resolvable:$true] %s78
      %81 = dma.hbm_to_vmem [thread:$0]  %s77, 16, %s79, [#allocation15]
    $region21: #{tpu_custom_call.1} parent=1 // pred_fallthru
      _
    // Predicated region
    $region22: #{tpu_custom_call.1} parent=1 // pred_check
      _
    $region23: #{tpu_custom_call.1} parent=1 // pred_check_branch
      %83 = sbr.rel (0) target = $region25
    $region24: #{tpu_custom_call.1} parent=1 // pred_region
      _
    $region25: #{tpu_custom_call.1} parent=1 // pred_fallthru
      _
    // Predicated region
    $region26: #{tpu_custom_call.1} parent=1 // pred_check
      _
    $region27: #{tpu_custom_call.1} parent=1 // pred_check_branch
      %85 = sbr.rel (0) target = $region29
    $region28: #{tpu_custom_call.1} parent=1 // pred_region
      %87 = vsyncadd [#allocation15], 0
      %s89 = sshll.u32 %s9, 4
      %s90 = int_to_ptr.hbm [resolvable:$true] %s89
      %s91 = sshll.u32 [#allocation16], 4
      %s92 = int_to_ptr.vmem [resolvable:$true] %s91
      %94 = dma.hbm_to_vmem [thread:$0]  %s90, 16, %s92, [#allocation15]
    $region29: #{tpu_custom_call.1} parent=1 // pred_fallthru
      _
    // Predicated region
    $region30: #{tpu_custom_call.1} parent=1 // pred_check
      _
    $region31: #{tpu_custom_call.1} parent=1 // pred_check_branch
      %96 = sbr.rel (0) target = $region33
    $region32: #{tpu_custom_call.1} parent=1 // pred_region
      %98 = dma.done [#allocation9], 4096
    $region33: #{tpu_custom_call.1} parent=1 // pred_fallthru
      _
    // Predicated region
    $region34: #{tpu_custom_call.1} parent=1 // pred_check
      _
    $region35: #{tpu_custom_call.1} parent=1 // pred_check_branch
      %100 = sbr.rel (0) target = $region37
    $region36: #{tpu_custom_call.1} parent=1 // pred_region
      %102 = dma.done [#allocation12], 2048
    $region37: #{tpu_custom_call.1} parent=1 // pred_fallthru
      _
    // Predicated region
    $region38: #{tpu_custom_call.1} parent=1 // pred_check
      _
    $region39: #{tpu_custom_call.1} parent=1 // pred_check_branch
      %104 = sbr.rel (0) target = $region41
    $region40: #{tpu_custom_call.1} parent=1 // pred_region
      %106 = dma.done [#allocation12], 64
    $region41: #{tpu_custom_call.1} parent=1 // pred_fallthru
      _
    // Predicated region
    $region42: #{tpu_custom_call.1} parent=1 // pred_check
      _
    $region43: #{tpu_custom_call.1} parent=1 // pred_check_branch
      %108 = sbr.rel (0) target = $region45
    $region44: #{tpu_custom_call.1} parent=1 // pred_region
      %110 = dma.done [#allocation15], 16
    $region45: #{tpu_custom_call.1} parent=1 // pred_fallthru
      _
    // Predicated region
    $region46: #{tpu_custom_call.1} parent=1 // pred_check
      _
    $region47: #{tpu_custom_call.1} parent=1 // pred_check_branch
      %112 = sbr.rel (0) target = $region49
    $region48: #{tpu_custom_call.1} parent=1 // pred_region
      %114 = dma.done [#allocation15], 16
    $region49: #{tpu_custom_call.1} parent=1 // pred_fallthru
      _
    %s115 = sld [smem:[#allocation6]]
    %s116 = smul.u32 %s115, 8
    %s117 = sld [smem:[#allocation7 + %s116]]
    %s118 = scalar_lea.hbm %s2, %s117
    // Predicated region
    $region50: #{tpu_custom_call.1} parent=1 // pred_check
      _
    $region51: #{tpu_custom_call.1} parent=1 // pred_check_branch
      %120 = sbr.rel target = $region53
    $region52: #{tpu_custom_call.1} parent=1 // pred_region
      %121 = sst [smem:[#allocation20]] [#allocation19]
      %122 = sst [smem:[#allocation21]] [#allocation18]
    $region53: #{tpu_custom_call.1} parent=1 // pred_fallthru
      _
    %124 = shalt.err (0)
    %s126 = sshll.u32 %s118, 4
    %s127 = int_to_ptr.hbm [resolvable:$true] %s126
    %s128 = sshll.u32 [#allocation2], 4
    %s129 = int_to_ptr.vmem [resolvable:$true] %s128
    %131 = dma.hbm_to_vmem [thread:$0]  %s127, 16, %s129, [#allocation4]
    %s132 = sld [smem:[#allocation6 + $0x1]]
    %s133 = smul.u32 %s132, 8
    %s134 = sld [smem:[#allocation7 + %s133]]
    %s135 = scalar_lea.hbm %s2, %s134
    %s136 = scalar_lea.vmem [#allocation2], 1
    %s137 = scalar_lea.sflag [#allocation4], 1
    // Predicated region
    $region54: #{tpu_custom_call.1} parent=1 // pred_check
      _
    $region55: #{tpu_custom_call.1} parent=1 // pred_check_branch
      %139 = sbr.rel target = $region57
    $region56: #{tpu_custom_call.1} parent=1 // pred_region
      %140 = sst [smem:[#allocation20]] [#allocation23]
      %141 = sst [smem:[#allocation21]] [#allocation22]
    $region57: #{tpu_custom_call.1} parent=1 // pred_fallthru
      _
    %143 = shalt.err (0)
    %s145 = sshll.u32 %s135, 4
    %s146 = int_to_ptr.hbm [resolvable:$true] %s145
    %s147 = sshll.u32 %s136, 4
    %s148 = int_to_ptr.vmem [resolvable:$true] %s147
    %150 = dma.hbm_to_vmem [thread:$0]  %s146, 16, %s148, %s137
    %s151 = sld [smem:[#allocation6]]
    %s152 = smul.u32 %s151, 8
    %s153 = sadd.s32 %s152, 1
    %s154 = sld [smem:[#allocation7 + %s153]]
    %s155 = scalar_lea.hbm %s2, %s154
    %s156 = scalar_lea.vmem [#allocation2], 8
    %s157 = scalar_lea.sflag [#allocation4], 2
    // Predicated region
    $region58: #{tpu_custom_call.1} parent=1 // pred_check
      _
    $region59: #{tpu_custom_call.1} parent=1 // pred_check_branch
      %159 = sbr.rel target = $region61
    $region60: #{tpu_custom_call.1} parent=1 // pred_region
      %160 = sst [smem:[#allocation20]] [#allocation25]
      %161 = sst [smem:[#allocation21]] [#allocation24]
    $region61: #{tpu_custom_call.1} parent=1 // pred_fallthru
      _
    %163 = shalt.err (0)
    %s165 = sshll.u32 %s155, 4
    %s166 = int_to_ptr.hbm [resolvable:$true] %s165
    %s167 = sshll.u32 %s156, 4
    %s168 = int_to_ptr.vmem [resolvable:$true] %s167
    %170 = dma.hbm_to_vmem [thread:$0]  %s166, 16, %s168, %s157
    %s171 = sld [smem:[#allocation6 + $0x1]]
    %s172 = smul.u32 %s171, 8
    %s173 = sadd.s32 %s172, 1
    %s174 = sld [smem:[#allocation7 + %s173]]
    %s175 = scalar_lea.hbm %s2, %s174
    %s176 = scalar_lea.vmem [#allocation2], 9
    %s177 = scalar_lea.sflag [#allocation4], 3
    // Predicated region
    $region62: #{tpu_custom_call.1} parent=1 // pred_check
      _
    $region63: #{tpu_custom_call.1} parent=1 // pred_check_branch
      %179 = sbr.rel target = $region65
    $region64: #{tpu_custom_call.1} parent=1 // pred_region
      %180 = sst [smem:[#allocation20]] [#allocation27]
      %181 = sst [smem:[#allocation21]] [#allocation26]
    $region65: #{tpu_custom_call.1} parent=1 // pred_fallthru
      _
    %183 = shalt.err (0)
    %s185 = sshll.u32 %s175, 4
    %s186 = int_to_ptr.hbm [resolvable:$true] %s185
    %s187 = sshll.u32 %s176, 4
    %s188 = int_to_ptr.vmem [resolvable:$true] %s187
    %190 = dma.hbm_to_vmem [thread:$0]  %s186, 16, %s188, %s177
    %s191 = sld [smem:[#allocation6]]
    %s192 = smul.u32 %s191, 8
    %s193 = sadd.s32 %s192, 2
    %s194 = sld [smem:[#allocation7 + %s193]]
    %s195 = scalar_lea.hbm %s2, %s194
    %s196 = scalar_lea.vmem [#allocation2], 16
    %s197 = scalar_lea.sflag [#allocation4], 4
    // Predicated region
    $region66: #{tpu_custom_call.1} parent=1 // pred_check
      _
    $region67: #{tpu_custom_call.1} parent=1 // pred_check_branch
      %199 = sbr.rel target = $region69
    $region68: #{tpu_custom_call.1} parent=1 // pred_region
      %200 = sst [smem:[#allocation20]] [#allocation29]
      %201 = sst [smem:[#allocation21]] [#allocation28]
    $region69: #{tpu_custom_call.1} parent=1 // pred_fallthru
      _
    %203 = shalt.err (0)
    %s205 = sshll.u32 %s195, 4
    %s206 = int_to_ptr.hbm [resolvable:$true] %s205
    %s207 = sshll.u32 %s196, 4
    %s208 = int_to_ptr.vmem [resolvable:$true] %s207
    %210 = dma.hbm_to_vmem [thread:$0]  %s206, 16, %s208, %s197
    %s211 = sld [smem:[#allocation6 + $0x1]]
    %s212 = smul.u32 %s211, 8
    %s213 = sadd.s32 %s212, 2
    %s214 = sld [smem:[#allocation7 + %s213]]
    %s215 = scalar_lea.hbm %s2, %s214
    %s216 = scalar_lea.vmem [#allocation2], 17
    %s217 = scalar_lea.sflag [#allocation4], 5
    // Predicated region
    $region70: #{tpu_custom_call.1} parent=1 // pred_check
      _
    $region71: #{tpu_custom_call.1} parent=1 // pred_check_branch
      %219 = sbr.rel target = $region73
    $region72: #{tpu_custom_call.1} parent=1 // pred_region
      %220 = sst [smem:[#allocation20]] [#allocation31]
      %221 = sst [smem:[#allocation21]] [#allocation30]
    $region73: #{tpu_custom_call.1} parent=1 // pred_fallthru
      _
    %223 = shalt.err (0)
    %s225 = sshll.u32 %s215, 4
    %s226 = int_to_ptr.hbm [resolvable:$true] %s225
    %s227 = sshll.u32 %s216, 4
    %s228 = int_to_ptr.vmem [resolvable:$true] %s227
    %230 = dma.hbm_to_vmem [thread:$0]  %s226, 16, %s228, %s217
    %s231 = sld [smem:[#allocation6]]
    %s232 = smul.u32 %s231, 8
    %s233 = sadd.s32 %s232, 3
    %s234 = sld [smem:[#allocation7 + %s233]]
    %s235 = scalar_lea.hbm %s2, %s234
    %s236 = scalar_lea.vmem [#allocation2], 24
    %s237 = scalar_lea.sflag [#allocation4], 6
    // Predicated region
    $region74: #{tpu_custom_call.1} parent=1 // pred_check
      _
    $region75: #{tpu_custom_call.1} parent=1 // pred_check_branch
      %239 = sbr.rel target = $region77
    $region76: #{tpu_custom_call.1} parent=1 // pred_region
      %240 = sst [smem:[#allocation20]] [#allocation33]
      %241 = sst [smem:[#allocation21]] [#allocation32]
    $region77: #{tpu_custom_call.1} parent=1 // pred_fallthru
      _
    %243 = shalt.err (0)
    %s245 = sshll.u32 %s235, 4
    %s246 = int_to_ptr.hbm [resolvable:$true] %s245
    %s247 = sshll.u32 %s236, 4
    %s248 = int_to_ptr.vmem [resolvable:$true] %s247
    %250 = dma.hbm_to_vmem [thread:$0]  %s246, 16, %s248, %s237
    %s251 = sld [smem:[#allocation6 + $0x1]]
    %s252 = smul.u32 %s251, 8
    %s253 = sadd.s32 %s252, 3
    %s254 = sld [smem:[#allocation7 + %s253]]
    %s255 = scalar_lea.hbm %s2, %s254
    %s256 = scalar_lea.vmem [#allocation2], 25
    %s257 = scalar_lea.sflag [#allocation4], 7
    // Predicated region
    $region78: #{tpu_custom_call.1} parent=1 // pred_check
      _
    $region79: #{tpu_custom_call.1} parent=1 // pred_check_branch
      %259 = sbr.rel target = $region81
    $region80: #{tpu_custom_call.1} parent=1 // pred_region
      %260 = sst [smem:[#allocation20]] [#allocation35]
      %261 = sst [smem:[#allocation21]] [#allocation34]
    $region81: #{tpu_custom_call.1} parent=1 // pred_fallthru
      _
    %263 = shalt.err (0)
    %s265 = sshll.u32 %s255, 4
    %s266 = int_to_ptr.hbm [resolvable:$true] %s265
    %s267 = sshll.u32 %s256, 4
    %s268 = int_to_ptr.vmem [resolvable:$true] %s267
    %270 = dma.hbm_to_vmem [thread:$0]  %s266, 16, %s268, %s257
    %s271 = sld [smem:[#allocation6]]
    %s272 = smul.u32 %s271, 8
    %s273 = sadd.s32 %s272, 4
    %s274 = sld [smem:[#allocation7 + %s273]]
    %s275 = scalar_lea.hbm %s2, %s274
    %s276 = scalar_lea.vmem [#allocation2], 32
    %s277 = scalar_lea.sflag [#allocation4], 8
    // Predicated region
    $region82: #{tpu_custom_call.1} parent=1 // pred_check
      _
    $region83: #{tpu_custom_call.1} parent=1 // pred_check_branch
      %279 = sbr.rel target = $region85
    $region84: #{tpu_custom_call.1} parent=1 // pred_region
      %280 = sst [smem:[#allocation20]] [#allocation37]
      %281 = sst [smem:[#allocation21]] [#allocation36]
    $region85: #{tpu_custom_call.1} parent=1 // pred_fallthru
      _
    %283 = shalt.err (0)
    %s285 = sshll.u32 %s275, 4
    %s286 = int_to_ptr.hbm [resolvable:$true] %s285
    %s287 = sshll.u32 %s276, 4
    %s288 = int_to_ptr.vmem [resolvable:$true] %s287
    %290 = dma.hbm_to_vmem [thread:$0]  %s286, 16, %s288, %s277
    %s291 = sld [smem:[#allocation6 + $0x1]]
    %s292 = smul.u32 %s291, 8
    %s293 = sadd.s32 %s292, 4
    %s294 = sld [smem:[#allocation7 + %s293]]
    %s295 = scalar_lea.hbm %s2, %s294
    %s296 = scalar_lea.vmem [#allocation2], 33
    %s297 = scalar_lea.sflag [#allocation4], 9
    // Predicated region
    $region86: #{tpu_custom_call.1} parent=1 // pred_check
      _
    $region87: #{tpu_custom_call.1} parent=1 // pred_check_branch
      %299 = sbr.rel target = $region89
    $region88: #{tpu_custom_call.1} parent=1 // pred_region
      %300 = sst [smem:[#allocation20]] [#allocation39]
      %301 = sst [smem:[#allocation21]] [#allocation38]
    $region89: #{tpu_custom_call.1} parent=1 // pred_fallthru
      _
    %303 = shalt.err (0)
    %s305 = sshll.u32 %s295, 4
    %s306 = int_to_ptr.hbm [resolvable:$true] %s305
    %s307 = sshll.u32 %s296, 4
    %s308 = int_to_ptr.vmem [resolvable:$true] %s307
    %310 = dma.hbm_to_vmem [thread:$0]  %s306, 16, %s308, %s297
    %s311 = sld [smem:[#allocation6]]
    %s312 = smul.u32 %s311, 8
    %s313 = sadd.s32 %s312, 5
    %s314 = sld [smem:[#allocation7 + %s313]]
    %s315 = scalar_lea.hbm %s2, %s314
    %s316 = scalar_lea.vmem [#allocation2], 40
    %s317 = scalar_lea.sflag [#allocation4], 10
    // Predicated region
    $region90: #{tpu_custom_call.1} parent=1 // pred_check
      _
    $region91: #{tpu_custom_call.1} parent=1 // pred_check_branch
      %319 = sbr.rel target = $region93
    $region92: #{tpu_custom_call.1} parent=1 // pred_region
      %320 = sst [smem:[#allocation20]] [#allocation41]
      %321 = sst [smem:[#allocation21]] [#allocation40]
    $region93: #{tpu_custom_call.1} parent=1 // pred_fallthru
      _
    %323 = shalt.err (0)
    %s325 = sshll.u32 %s315, 4
    %s326 = int_to_ptr.hbm [resolvable:$true] %s325
    %s327 = sshll.u32 %s316, 4
    %s328 = int_to_ptr.vmem [resolvable:$true] %s327
    %330 = dma.hbm_to_vmem [thread:$0]  %s326, 16, %s328, %s317
    %s331 = sld [smem:[#allocation6 + $0x1]]
    %s332 = smul.u32 %s331, 8
    %s333 = sadd.s32 %s332, 5
    %s334 = sld [smem:[#allocation7 + %s333]]
    %s335 = scalar_lea.hbm %s2, %s334
    %s336 = scalar_lea.vmem [#allocation2], 41
    %s337 = scalar_lea.sflag [#allocation4], 11
    // Predicated region
    $region94: #{tpu_custom_call.1} parent=1 // pred_check
      _
    $region95: #{tpu_custom_call.1} parent=1 // pred_check_branch
      %339 = sbr.rel target = $region97
    $region96: #{tpu_custom_call.1} parent=1 // pred_region
      %340 = sst [smem:[#allocation20]] [#allocation43]
      %341 = sst [smem:[#allocation21]] [#allocation42]
    $region97: #{tpu_custom_call.1} parent=1 // pred_fallthru
      _
    %343 = shalt.err (0)
    %s345 = sshll.u32 %s335, 4
    %s346 = int_to_ptr.hbm [resolvable:$true] %s345
    %s347 = sshll.u32 %s336, 4
    %s348 = int_to_ptr.vmem [resolvable:$true] %s347
    %350 = dma.hbm_to_vmem [thread:$0]  %s346, 16, %s348, %s337
    %s351 = sld [smem:[#allocation6]]
    %s352 = smul.u32 %s351, 8
    %s353 = sadd.s32 %s352, 6
    %s354 = sld [smem:[#allocation7 + %s353]]
    %s355 = scalar_lea.hbm %s2, %s354
    %s356 = scalar_lea.vmem [#allocation2], 48
    %s357 = scalar_lea.sflag [#allocation4], 12
    // Predicated region
    $region98: #{tpu_custom_call.1} parent=1 // pred_check
      _
    $region99: #{tpu_custom_call.1} parent=1 // pred_check_branch
      %359 = sbr.rel target = $region101
    $region100: #{tpu_custom_call.1} parent=1 // pred_region
      %360 = sst [smem:[#allocation20]] [#allocation45]
      %361 = sst [smem:[#allocation21]] [#allocation44]
    $region101: #{tpu_custom_call.1} parent=1 // pred_fallthru
      _
    %363 = shalt.err (0)
    %s365 = sshll.u32 %s355, 4
    %s366 = int_to_ptr.hbm [resolvable:$true] %s365
    %s367 = sshll.u32 %s356, 4
    %s368 = int_to_ptr.vmem [resolvable:$true] %s367
    %370 = dma.hbm_to_vmem [thread:$0]  %s366, 16, %s368, %s357
    %s371 = sld [smem:[#allocation6 + $0x1]]
    %s372 = smul.u32 %s371, 8
    %s373 = sadd.s32 %s372, 6
    %s374 = sld [smem:[#allocation7 + %s373]]
    %s375 = scalar_lea.hbm %s2, %s374
    %s376 = scalar_lea.vmem [#allocation2], 49
    %s377 = scalar_lea.sflag [#allocation4], 13
    // Predicated region
    $region102: #{tpu_custom_call.1} parent=1 // pred_check
      _
    $region103: #{tpu_custom_call.1} parent=1 // pred_check_branch
      %379 = sbr.rel target = $region105
    $region104: #{tpu_custom_call.1} parent=1 // pred_region
      %380 = sst [smem:[#allocation20]] [#allocation47]
      %381 = sst [smem:[#allocation21]] [#allocation46]
    $region105: #{tpu_custom_call.1} parent=1 // pred_fallthru
      _
    %383 = shalt.err (0)
    %s385 = sshll.u32 %s375, 4
    %s386 = int_to_ptr.hbm [resolvable:$true] %s385
    %s387 = sshll.u32 %s376, 4
    %s388 = int_to_ptr.vmem [resolvable:$true] %s387
    %390 = dma.hbm_to_vmem [thread:$0]  %s386, 16, %s388, %s377
    %s391 = sld [smem:[#allocation6]]
    %s392 = smul.u32 %s391, 8
    %s393 = sadd.s32 %s392, 7
    %s394 = sld [smem:[#allocation7 + %s393]]
    %s395 = scalar_lea.hbm %s2, %s394
    %s396 = scalar_lea.vmem [#allocation2], 56
    %s397 = scalar_lea.sflag [#allocation4], 14
    // Predicated region
    $region106: #{tpu_custom_call.1} parent=1 // pred_check
      _
    $region107: #{tpu_custom_call.1} parent=1 // pred_check_branch
      %399 = sbr.rel target = $region109
    $region108: #{tpu_custom_call.1} parent=1 // pred_region
      %400 = sst [smem:[#allocation20]] [#allocation49]
      %401 = sst [smem:[#allocation21]] [#allocation48]
    $region109: #{tpu_custom_call.1} parent=1 // pred_fallthru
      _
    %403 = shalt.err (0)
    %s405 = sshll.u32 %s395, 4
    %s406 = int_to_ptr.hbm [resolvable:$true] %s405
    %s407 = sshll.u32 %s396, 4
    %s408 = int_to_ptr.vmem [resolvable:$true] %s407
    %410 = dma.hbm_to_vmem [thread:$0]  %s406, 16, %s408, %s397
    %s411 = sld [smem:[#allocation6 + $0x1]]
    %s412 = smul.u32 %s411, 8
    %s413 = sadd.s32 %s412, 7
    %s414 = sld [smem:[#allocation7 + %s413]]
    %s415 = scalar_lea.hbm %s2, %s414
    %s416 = scalar_lea.vmem [#allocation2], 57
    %s417 = scalar_lea.sflag [#allocation4], 15
    // Predicated region
    $region110: #{tpu_custom_call.1} parent=1 // pred_check
      _
    $region111: #{tpu_custom_call.1} parent=1 // pred_check_branch
      %419 = sbr.rel target = $region113
    $region112: #{tpu_custom_call.1} parent=1 // pred_region
      %420 = sst [smem:[#allocation20]] [#allocation51]
      %421 = sst [smem:[#allocation21]] [#allocation50]
    $region113: #{tpu_custom_call.1} parent=1 // pred_fallthru
      _
    %423 = shalt.err (0)
    %s425 = sshll.u32 %s415, 4
    %s426 = int_to_ptr.hbm [resolvable:$true] %s425
    %s427 = sshll.u32 %s416, 4
    %s428 = int_to_ptr.vmem [resolvable:$true] %s427
    %430 = dma.hbm_to_vmem [thread:$0]  %s426, 16, %s428, %s417
    %s431 = smul.u32 1, 1
    %s432 = sshll.u32 %s431, 4
    %433 = dma.done [#allocation4], %s432
    %s434 = sshll.u32 %s431, 4
    %435 = dma.done %s137, %s434
    %s436 = sshll.u32 %s431, 4
    %437 = dma.done %s157, %s436
    %s438 = sshll.u32 %s431, 4
    %439 = dma.done %s177, %s438
    %s440 = sshll.u32 %s431, 4
    %441 = dma.done %s197, %s440
    %s442 = sshll.u32 %s431, 4
    %443 = dma.done %s217, %s442
    %s444 = sshll.u32 %s431, 4
    %445 = dma.done %s237, %s444
    %s446 = sshll.u32 %s431, 4
    %447 = dma.done %s257, %s446
    %s448 = sshll.u32 %s431, 4
    %449 = dma.done %s277, %s448
    %s450 = sshll.u32 %s431, 4
    %451 = dma.done %s297, %s450
    %s452 = sshll.u32 %s431, 4
    %453 = dma.done %s317, %s452
    %s454 = sshll.u32 %s431, 4
    %455 = dma.done %s337, %s454
    %s456 = sshll.u32 %s431, 4
    %457 = dma.done %s357, %s456
    %s458 = sshll.u32 %s431, 4
    %459 = dma.done %s377, %s458
    %s460 = sshll.u32 %s431, 4
    %461 = dma.done %s397, %s460
    %s462 = sshll.u32 %s431, 4
    %463 = dma.done %s417, %s462
    %v464 = vld [vmem:[#allocation2] sm:$0xff]
    %v465 = vld [vmem:[#allocation2 + $0x8] sm:$0xff]
    %v466 = vld [vmem:[#allocation2 + $0x10] sm:$0xff]
    %v467 = vld [vmem:[#allocation2 + $0x18] sm:$0xff]
    %v468 = vld [vmem:[#allocation2 + $0x20] sm:$0xff]
    %v469 = vld [vmem:[#allocation2 + $0x28] sm:$0xff]
    %v470 = vld [vmem:[#allocation2 + $0x30] sm:$0xff]
    %v471 = vld [vmem:[#allocation2 + $0x38] sm:$0xff]
    %v472 = vld [vmem:[#allocation8] sm:$0xff]
    %v473 = vld [vmem:[#allocation8 + $0x8] sm:$0xff]
    %v474 = vld [vmem:[#allocation8 + $0x10] sm:$0xff]
    %v475 = vld [vmem:[#allocation8 + $0x18] sm:$0xff]
    %v476 = vld [vmem:[#allocation8 + $0x20] sm:$0xff]
    %v477 = vld [vmem:[#allocation8 + $0x28] sm:$0xff]
    %v478 = vld [vmem:[#allocation8 + $0x30] sm:$0xff]
    %v479 = vld [vmem:[#allocation8 + $0x38] sm:$0xff]
    %v480 = vld [vmem:[#allocation8 + $0x40] sm:$0xff]
    %v481 = vld [vmem:[#allocation8 + $0x48] sm:$0xff]
    %v482 = vld [vmem:[#allocation8 + $0x50] sm:$0xff]
    %v483 = vld [vmem:[#allocation8 + $0x58] sm:$0xff]
    %v484 = vld [vmem:[#allocation8 + $0x60] sm:$0xff]
    %v485 = vld [vmem:[#allocation8 + $0x68] sm:$0xff]
    %v486 = vld [vmem:[#allocation8 + $0x70] sm:$0xff]
    %v487 = vld [vmem:[#allocation8 + $0x78] sm:$0xff]
    %v488 = vld [vmem:[#allocation8 + $0x80] sm:$0xff]
    %v489 = vld [vmem:[#allocation8 + $0x88] sm:$0xff]
    %v490 = vld [vmem:[#allocation8 + $0x90] sm:$0xff]
    %v491 = vld [vmem:[#allocation8 + $0x98] sm:$0xff]
    %v492 = vld [vmem:[#allocation8 + $0xa0] sm:$0xff]
    %v493 = vld [vmem:[#allocation8 + $0xa8] sm:$0xff]
    %v494 = vld [vmem:[#allocation8 + $0xb0] sm:$0xff]
    %v495 = vld [vmem:[#allocation8 + $0xb8] sm:$0xff]
    %v496 = vld [vmem:[#allocation8 + $0xc0] sm:$0xff]
    %v497 = vld [vmem:[#allocation8 + $0xc8] sm:$0xff]
    %v498 = vld [vmem:[#allocation8 + $0xd0] sm:$0xff]
    %v499 = vld [vmem:[#allocation8 + $0xd8] sm:$0xff]
    %v500 = vld [vmem:[#allocation8 + $0xe0] sm:$0xff]
    %v501 = vld [vmem:[#allocation8 + $0xe8] sm:$0xff]
    %v502 = vld [vmem:[#allocation8 + $0xf0] sm:$0xff]
    %v503 = vld [vmem:[#allocation8 + $0xf8] sm:$0xff]
    %v504 = vunpack.c.l.bf16 %v472
    %v505 = vunpack.c.h.bf16 %v472
    %v506 = vunpack.c.l.bf16 %v473
    %v507 = vunpack.c.h.bf16 %v473
    %v508 = vunpack.c.l.bf16 %v474
    %v509 = vunpack.c.h.bf16 %v474
    %v510 = vunpack.c.l.bf16 %v475
    %v511 = vunpack.c.h.bf16 %v475
    %v512 = vunpack.c.l.bf16 %v476
    %v513 = vunpack.c.h.bf16 %v476
    %v514 = vunpack.c.l.bf16 %v477
    %v515 = vunpack.c.h.bf16 %v477
    %v516 = vunpack.c.l.bf16 %v478
    %v517 = vunpack.c.h.bf16 %v478
    %v518 = vunpack.c.l.bf16 %v479
    %v519 = vunpack.c.h.bf16 %v479
    %v520 = vunpack.c.l.bf16 %v480
    %v521 = vunpack.c.h.bf16 %v480
    %v522 = vunpack.c.l.bf16 %v481
    %v523 = vunpack.c.h.bf16 %v481
    %v524 = vunpack.c.l.bf16 %v482
    %v525 = vunpack.c.h.bf16 %v482
    %v526 = vunpack.c.l.bf16 %v483
    %v527 = vunpack.c.h.bf16 %v483
    %v528 = vunpack.c.l.bf16 %v484
    %v529 = vunpack.c.h.bf16 %v484
    %v530 = vunpack.c.l.bf16 %v485
    %v531 = vunpack.c.h.bf16 %v485
    %v532 = vunpack.c.l.bf16 %v486
    %v533 = vunpack.c.h.bf16 %v486
    %v534 = vunpack.c.l.bf16 %v487
    %v535 = vunpack.c.h.bf16 %v487
    %v536 = vunpack.c.l.bf16 %v488
    %v537 = vunpack.c.h.bf16 %v488
    %v538 = vunpack.c.l.bf16 %v489
    %v539 = vunpack.c.h.bf16 %v489
    %v540 = vunpack.c.l.bf16 %v490
    %v541 = vunpack.c.h.bf16 %v490
    %v542 = vunpack.c.l.bf16 %v491
    %v543 = vunpack.c.h.bf16 %v491
    %v544 = vunpack.c.l.bf16 %v492
    %v545 = vunpack.c.h.bf16 %v492
    %v546 = vunpack.c.l.bf16 %v493
    %v547 = vunpack.c.h.bf16 %v493
    %v548 = vunpack.c.l.bf16 %v494
    %v549 = vunpack.c.h.bf16 %v494
    %v550 = vunpack.c.l.bf16 %v495
    %v551 = vunpack.c.h.bf16 %v495
    %v552 = vunpack.c.l.bf16 %v496
    %v553 = vunpack.c.h.bf16 %v496
    %v554 = vunpack.c.l.bf16 %v497
    %v555 = vunpack.c.h.bf16 %v497
    %v556 = vunpack.c.l.bf16 %v498
    %v557 = vunpack.c.h.bf16 %v498
    %v558 = vunpack.c.l.bf16 %v499
    %v559 = vunpack.c.h.bf16 %v499
    %v560 = vunpack.c.l.bf16 %v500
    %v561 = vunpack.c.h.bf16 %v500
    %v562 = vunpack.c.l.bf16 %v501
    %v563 = vunpack.c.h.bf16 %v501
    %v564 = vunpack.c.l.bf16 %v502
    %v565 = vunpack.c.h.bf16 %v502
    %v566 = vunpack.c.l.bf16 %v503
    %v567 = vunpack.c.h.bf16 %v503
    %v568 = vld [vmem:[#allocation13] sm:$0xf]
    %v570 = vperm.slane %v568, 0
    %v571 = vperm.slane %v568, 1
    %v572 = vperm.slane %v568, 2
    %v573 = vperm.slane %v568, 3
    %578 = vmatpush.msra.mxu0 %v564
    %579 = vmatpush.msra.mxu0 %v560
    %580 = vmatpush.msra.mxu0 %v556
    %581 = vmatpush.msra.mxu0 %v552
    %582 = vmatpush.msra.mxu0 %v548
    %583 = vmatpush.msra.mxu0 %v544
    %584 = vmatpush.msra.mxu0 %v540
    %585 = vmatpush.msra.mxu0 %v536
    %586 = vmatpush.msra.mxu0 %v532
    %587 = vmatpush.msra.mxu0 %v528
    %588 = vmatpush.msra.mxu0 %v524
    %589 = vmatpush.msra.mxu0 %v520
    %590 = vmatpush.msra.mxu0 %v516
    %591 = vmatpush.msra.mxu0 %v512
    %592 = vmatpush.msra.mxu0 %v508
    %593 = vmatpush.msra.mxu0 %v504
    %594 = vmatmul.f32.gmra.mxu0 %v464
    %v595 = vpop.f32.mrf.mxu0
    %v596 = vadd.f32 %v570, %v595
    %597 = vmatmul.f32.gmra.mxu0 %v465
    %v598 = vpop.f32.mrf.mxu0
    %v599 = vadd.f32 %v570, %v598
    %600 = vmatmul.f32.gmra.mxu0 %v466
    %v601 = vpop.f32.mrf.mxu0
    %v602 = vadd.f32 %v570, %v601
    %603 = vmatmul.f32.gmra.mxu0 %v467
    %v604 = vpop.f32.mrf.mxu0
    %v605 = vadd.f32 %v570, %v604
    %606 = vmatmul.f32.gmra.mxu0 %v468
    %v607 = vpop.f32.mrf.mxu0
    %v608 = vadd.f32 %v570, %v607
    %609 = vmatmul.f32.gmra.mxu0 %v469
    %v610 = vpop.f32.mrf.mxu0
    %v611 = vadd.f32 %v570, %v610
    %612 = vmatmul.f32.gmra.mxu0 %v470
    %v613 = vpop.f32.mrf.mxu0
    %v614 = vadd.f32 %v570, %v613
    %615 = vmatmul.f32.gmra.mxu0 %v471
    %v616 = vpop.f32.mrf.mxu0
    %v617 = vadd.f32 %v570, %v616
    %618 = vdwg.mxu0
    %619 = vmatpush.msra.mxu0 %v565
    %620 = vmatpush.msra.mxu0 %v561
    %621 = vmatpush.msra.mxu0 %v557
    %622 = vmatpush.msra.mxu0 %v553
    %623 = vmatpush.msra.mxu0 %v549
    %624 = vmatpush.msra.mxu0 %v545
    %625 = vmatpush.msra.mxu0 %v541
    %626 = vmatpush.msra.mxu0 %v537
    %627 = vmatpush.msra.mxu0 %v533
    %628 = vmatpush.msra.mxu0 %v529
    %629 = vmatpush.msra.mxu0 %v525
    %630 = vmatpush.msra.mxu0 %v521
    %631 = vmatpush.msra.mxu0 %v517
    %632 = vmatpush.msra.mxu0 %v513
    %633 = vmatpush.msra.mxu0 %v509
    %634 = vmatpush.msra.mxu0 %v505
    %635 = vmatmul.f32.gmra.mxu0 %v464
    %v636 = vpop.f32.mrf.mxu0
    %v637 = vadd.f32 %v571, %v636
    %638 = vmatmul.f32.gmra.mxu0 %v465
    %v639 = vpop.f32.mrf.mxu0
    %v640 = vadd.f32 %v571, %v639
    %641 = vmatmul.f32.gmra.mxu0 %v466
    %v642 = vpop.f32.mrf.mxu0
    %v643 = vadd.f32 %v571, %v642
    %644 = vmatmul.f32.gmra.mxu0 %v467
    %v645 = vpop.f32.mrf.mxu0
    %v646 = vadd.f32 %v571, %v645
    %647 = vmatmul.f32.gmra.mxu0 %v468
    %v648 = vpop.f32.mrf.mxu0
    %v649 = vadd.f32 %v571, %v648
    %650 = vmatmul.f32.gmra.mxu0 %v469
    %v651 = vpop.f32.mrf.mxu0
    %v652 = vadd.f32 %v571, %v651
    %653 = vmatmul.f32.gmra.mxu0 %v470
    %v654 = vpop.f32.mrf.mxu0
    %v655 = vadd.f32 %v571, %v654
    %656 = vmatmul.f32.gmra.mxu0 %v471
    %v657 = vpop.f32.mrf.mxu0
    %v658 = vadd.f32 %v571, %v657
    %659 = vdwg.mxu0
    %660 = vmatpush.msra.mxu0 %v566
    %661 = vmatpush.msra.mxu0 %v562
    %662 = vmatpush.msra.mxu0 %v558
    %663 = vmatpush.msra.mxu0 %v554
    %664 = vmatpush.msra.mxu0 %v550
    %665 = vmatpush.msra.mxu0 %v546
    %666 = vmatpush.msra.mxu0 %v542
    %667 = vmatpush.msra.mxu0 %v538
    %668 = vmatpush.msra.mxu0 %v534
    %669 = vmatpush.msra.mxu0 %v530
    %670 = vmatpush.msra.mxu0 %v526
    %671 = vmatpush.msra.mxu0 %v522
    %672 = vmatpush.msra.mxu0 %v518
    %673 = vmatpush.msra.mxu0 %v514
    %674 = vmatpush.msra.mxu0 %v510
    %675 = vmatpush.msra.mxu0 %v506
    %676 = vmatmul.f32.gmra.mxu0 %v464
    %v677 = vpop.f32.mrf.mxu0
    %v678 = vadd.f32 %v572, %v677
    %679 = vmatmul.f32.gmra.mxu0 %v465
    %v680 = vpop.f32.mrf.mxu0
    %v681 = vadd.f32 %v572, %v680
    %682 = vmatmul.f32.gmra.mxu0 %v466
    %v683 = vpop.f32.mrf.mxu0
    %v684 = vadd.f32 %v572, %v683
    %685 = vmatmul.f32.gmra.mxu0 %v467
    %v686 = vpop.f32.mrf.mxu0
    %v687 = vadd.f32 %v572, %v686
    %688 = vmatmul.f32.gmra.mxu0 %v468
    %v689 = vpop.f32.mrf.mxu0
    %v690 = vadd.f32 %v572, %v689
    %691 = vmatmul.f32.gmra.mxu0 %v469
    %v692 = vpop.f32.mrf.mxu0
    %v693 = vadd.f32 %v572, %v692
    %694 = vmatmul.f32.gmra.mxu0 %v470
    %v695 = vpop.f32.mrf.mxu0
    %v696 = vadd.f32 %v572, %v695
    %697 = vmatmul.f32.gmra.mxu0 %v471
    %v698 = vpop.f32.mrf.mxu0
    %v699 = vadd.f32 %v572, %v698
    %700 = vdwg.mxu0
    %701 = vmatpush.msra.mxu0 %v567
    %702 = vmatpush.msra.mxu0 %v563
    %703 = vmatpush.msra.mxu0 %v559
    %704 = vmatpush.msra.mxu0 %v555
    %705 = vmatpush.msra.mxu0 %v551
    %706 = vmatpush.msra.mxu0 %v547
    %707 = vmatpush.msra.mxu0 %v543
    %708 = vmatpush.msra.mxu0 %v539
    %709 = vmatpush.msra.mxu0 %v535
    %710 = vmatpush.msra.mxu0 %v531
    %711 = vmatpush.msra.mxu0 %v527
    %712 = vmatpush.msra.mxu0 %v523
    %713 = vmatpush.msra.mxu0 %v519
    %714 = vmatpush.msra.mxu0 %v515
    %715 = vmatpush.msra.mxu0 %v511
    %716 = vmatpush.msra.mxu0 %v507
    %717 = vmatmul.f32.gmra.mxu0 %v464
    %v718 = vpop.f32.mrf.mxu0
    %v719 = vadd.f32 %v573, %v718
    %720 = vmatmul.f32.gmra.mxu0 %v465
    %v721 = vpop.f32.mrf.mxu0
    %v722 = vadd.f32 %v573, %v721
    %723 = vmatmul.f32.gmra.mxu0 %v466
    %v724 = vpop.f32.mrf.mxu0
    %v725 = vadd.f32 %v573, %v724
    %726 = vmatmul.f32.gmra.mxu0 %v467
    %v727 = vpop.f32.mrf.mxu0
    %v728 = vadd.f32 %v573, %v727
    %729 = vmatmul.f32.gmra.mxu0 %v468
    %v730 = vpop.f32.mrf.mxu0
    %v731 = vadd.f32 %v573, %v730
    %732 = vmatmul.f32.gmra.mxu0 %v469
    %v733 = vpop.f32.mrf.mxu0
    %v734 = vadd.f32 %v573, %v733
    %735 = vmatmul.f32.gmra.mxu0 %v470
    %v736 = vpop.f32.mrf.mxu0
    %v737 = vadd.f32 %v573, %v736
    %738 = vmatmul.f32.gmra.mxu0 %v471
    %v739 = vpop.f32.mrf.mxu0
    %v740 = vadd.f32 %v573, %v739
    %741 = vdwg.mxu0
    %742 = vst [vmem:[#allocation3] sm:$0xff] %v596
    %743 = vst [vmem:[#allocation3 + $0x8] sm:$0xff] %v637
    %744 = vst [vmem:[#allocation3 + $0x10] sm:$0xff] %v678
    %745 = vst [vmem:[#allocation3 + $0x18] sm:$0xff] %v719
    %746 = vst [vmem:[#allocation3 + $0x20] sm:$0xff] %v599
    %747 = vst [vmem:[#allocation3 + $0x28] sm:$0xff] %v640
    %748 = vst [vmem:[#allocation3 + $0x30] sm:$0xff] %v681
    %749 = vst [vmem:[#allocation3 + $0x38] sm:$0xff] %v722
    %750 = vst [vmem:[#allocation3 + $0x40] sm:$0xff] %v602
    %751 = vst [vmem:[#allocation3 + $0x48] sm:$0xff] %v643
    %752 = vst [vmem:[#allocation3 + $0x50] sm:$0xff] %v684
    %753 = vst [vmem:[#allocation3 + $0x58] sm:$0xff] %v725
    %754 = vst [vmem:[#allocation3 + $0x60] sm:$0xff] %v605
    %755 = vst [vmem:[#allocation3 + $0x68] sm:$0xff] %v646
    %756 = vst [vmem:[#allocation3 + $0x70] sm:$0xff] %v687
    %757 = vst [vmem:[#allocation3 + $0x78] sm:$0xff] %v728
    %758 = vst [vmem:[#allocation3 + $0x80] sm:$0xff] %v608
    %759 = vst [vmem:[#allocation3 + $0x88] sm:$0xff] %v649
    %760 = vst [vmem:[#allocation3 + $0x90] sm:$0xff] %v690
    %761 = vst [vmem:[#allocation3 + $0x98] sm:$0xff] %v731
    %762 = vst [vmem:[#allocation3 + $0xa0] sm:$0xff] %v611
    %763 = vst [vmem:[#allocation3 + $0xa8] sm:$0xff] %v652
    %764 = vst [vmem:[#allocation3 + $0xb0] sm:$0xff] %v693
    %765 = vst [vmem:[#allocation3 + $0xb8] sm:$0xff] %v734
    %766 = vst [vmem:[#allocation3 + $0xc0] sm:$0xff] %v614
    %767 = vst [vmem:[#allocation3 + $0xc8] sm:$0xff] %v655
    %768 = vst [vmem:[#allocation3 + $0xd0] sm:$0xff] %v696
    %769 = vst [vmem:[#allocation3 + $0xd8] sm:$0xff] %v737
    %770 = vst [vmem:[#allocation3 + $0xe0] sm:$0xff] %v617
    %771 = vst [vmem:[#allocation3 + $0xe8] sm:$0xff] %v658
    %772 = vst [vmem:[#allocation3 + $0xf0] sm:$0xff] %v699
    %773 = vst [vmem:[#allocation3 + $0xf8] sm:$0xff] %v740
    %v774 = vld [vmem:[#allocation11] sm:$0xff]
    %v775 = vld [vmem:[#allocation11 + $0x8] sm:$0xff]
    %v776 = vld [vmem:[#allocation11 + $0x10] sm:$0xff]
    %v777 = vld [vmem:[#allocation11 + $0x18] sm:$0xff]
    %v778 = vld [vmem:[#allocation11 + $0x20] sm:$0xff]
    %v779 = vld [vmem:[#allocation11 + $0x28] sm:$0xff]
    %v780 = vld [vmem:[#allocation11 + $0x30] sm:$0xff]
    %v781 = vld [vmem:[#allocation11 + $0x38] sm:$0xff]
    %v782 = vld [vmem:[#allocation11 + $0x40] sm:$0xff]
    %v783 = vld [vmem:[#allocation11 + $0x48] sm:$0xff]
    %v784 = vld [vmem:[#allocation11 + $0x50] sm:$0xff]
    %v785 = vld [vmem:[#allocation11 + $0x58] sm:$0xff]
    %v786 = vld [vmem:[#allocation11 + $0x60] sm:$0xff]
    %v787 = vld [vmem:[#allocation11 + $0x68] sm:$0xff]
    %v788 = vld [vmem:[#allocation11 + $0x70] sm:$0xff]
    %v789 = vld [vmem:[#allocation11 + $0x78] sm:$0xff]
    %v790 = vunpack.c.l.bf16 %v774
    %v791 = vunpack.c.h.bf16 %v774
    %v792 = vunpack.c.l.bf16 %v775
    %v793 = vunpack.c.h.bf16 %v775
    %v794 = vunpack.c.l.bf16 %v776
    %v795 = vunpack.c.h.bf16 %v776
    %v796 = vunpack.c.l.bf16 %v777
    %v797 = vunpack.c.h.bf16 %v777
    %v798 = vunpack.c.l.bf16 %v778
    %v799 = vunpack.c.h.bf16 %v778
    %v800 = vunpack.c.l.bf16 %v779
    %v801 = vunpack.c.h.bf16 %v779
    %v802 = vunpack.c.l.bf16 %v780
    %v803 = vunpack.c.h.bf16 %v780
    %v804 = vunpack.c.l.bf16 %v781
    %v805 = vunpack.c.h.bf16 %v781
    %v806 = vunpack.c.l.bf16 %v782
    %v807 = vunpack.c.h.bf16 %v782
    %v808 = vunpack.c.l.bf16 %v783
    %v809 = vunpack.c.h.bf16 %v783
    %v810 = vunpack.c.l.bf16 %v784
    %v811 = vunpack.c.h.bf16 %v784
    %v812 = vunpack.c.l.bf16 %v785
    %v813 = vunpack.c.h.bf16 %v785
    %v814 = vunpack.c.l.bf16 %v786
    %v815 = vunpack.c.h.bf16 %v786
    %v816 = vunpack.c.l.bf16 %v787
    %v817 = vunpack.c.h.bf16 %v787
    %v818 = vunpack.c.l.bf16 %v788
    %v819 = vunpack.c.h.bf16 %v788
    %v820 = vunpack.c.l.bf16 %v789
    %v821 = vunpack.c.h.bf16 %v789
    %v822 = vld [vmem:[#allocation3] sm:$0xff]
    %v823 = vld [vmem:[#allocation3 + $0x8] sm:$0xff]
    %v824 = vld [vmem:[#allocation3 + $0x10] sm:$0xff]
    %v825 = vld [vmem:[#allocation3 + $0x18] sm:$0xff]
    %vm826 = vcmask 523264
    %v828 = vsel %vm826, 0.0, 0
    %830 = vmatpush.msra.mxu0 0.0
    %831 = vmatpush.msra.mxu0 0.0
    %832 = vmatpush.msra.mxu0 0.0
    %833 = vmatpush.msra.mxu0 0.0
    %834 = vmatpush.msra.mxu0 0.0
    %835 = vmatpush.msra.mxu0 0.0
    %836 = vmatpush.msra.mxu0 0.0
    %837 = vmatpush.msra.mxu0 0.0
    %838 = vmatpush.msra.mxu0 %v818
    %839 = vmatpush.msra.mxu0 %v814
    %840 = vmatpush.msra.mxu0 %v810
    %841 = vmatpush.msra.mxu0 %v806
    %842 = vmatpush.msra.mxu0 %v802
    %843 = vmatpush.msra.mxu0 %v798
    %844 = vmatpush.msra.mxu0 %v794
    %845 = vmatpush.msra.mxu0 %v790
    %846 = vmatmul.f32.gmra.mxu0 %v828
    %v847 = vpop.f32.mrf.mxu0
    %v848 = vadd.f32 %v822, %v847
    %849 = vdwg.mxu0
    %850 = vmatpush.msra.mxu0 0.0
    %851 = vmatpush.msra.mxu0 0.0
    %852 = vmatpush.msra.mxu0 0.0
    %853 = vmatpush.msra.mxu0 0.0
    %854 = vmatpush.msra.mxu0 0.0
    %855 = vmatpush.msra.mxu0 0.0
    %856 = vmatpush.msra.mxu0 0.0
    %857 = vmatpush.msra.mxu0 0.0
    %858 = vmatpush.msra.mxu0 %v819
    %859 = vmatpush.msra.mxu0 %v815
    %860 = vmatpush.msra.mxu0 %v811
    %861 = vmatpush.msra.mxu0 %v807
    %862 = vmatpush.msra.mxu0 %v803
    %863 = vmatpush.msra.mxu0 %v799
    %864 = vmatpush.msra.mxu0 %v795
    %865 = vmatpush.msra.mxu0 %v791
    %866 = vmatmul.f32.gmra.mxu0 %v828
    %v867 = vpop.f32.mrf.mxu0
    %v868 = vadd.f32 %v823, %v867
    %869 = vdwg.mxu0
    %870 = vmatpush.msra.mxu0 0.0
    %871 = vmatpush.msra.mxu0 0.0
    %872 = vmatpush.msra.mxu0 0.0
    %873 = vmatpush.msra.mxu0 0.0
    %874 = vmatpush.msra.mxu0 0.0
    %875 = vmatpush.msra.mxu0 0.0
    %876 = vmatpush.msra.mxu0 0.0
    %877 = vmatpush.msra.mxu0 0.0
    %878 = vmatpush.msra.mxu0 %v820
    %879 = vmatpush.msra.mxu0 %v816
    %880 = vmatpush.msra.mxu0 %v812
    %881 = vmatpush.msra.mxu0 %v808
    %882 = vmatpush.msra.mxu0 %v804
    %883 = vmatpush.msra.mxu0 %v800
    %884 = vmatpush.msra.mxu0 %v796
    %885 = vmatpush.msra.mxu0 %v792
    %886 = vmatmul.f32.gmra.mxu0 %v828
    %v887 = vpop.f32.mrf.mxu0
    %v888 = vadd.f32 %v824, %v887
    %889 = vdwg.mxu0
    %890 = vmatpush.msra.mxu0 0.0
    %891 = vmatpush.msra.mxu0 0.0
    %892 = vmatpush.msra.mxu0 0.0
    %893 = vmatpush.msra.mxu0 0.0
    %894 = vmatpush.msra.mxu0 0.0
    %895 = vmatpush.msra.mxu0 0.0
    %896 = vmatpush.msra.mxu0 0.0
    %897 = vmatpush.msra.mxu0 0.0
    %898 = vmatpush.msra.mxu0 %v821
    %899 = vmatpush.msra.mxu0 %v817
    %900 = vmatpush.msra.mxu0 %v813
    %901 = vmatpush.msra.mxu0 %v809
    %902 = vmatpush.msra.mxu0 %v805
    %903 = vmatpush.msra.mxu0 %v801
    %904 = vmatpush.msra.mxu0 %v797
    %905 = vmatpush.msra.mxu0 %v793
    %906 = vmatmul.f32.gmra.mxu0 %v828
    %v907 = vpop.f32.mrf.mxu0
    %v908 = vadd.f32 %v825, %v907
    %909 = vdwg.mxu0
    %v910 = vtanh.pop %v848
    %v911 = vadd.f32 %v910, 1.0
    %v912 = vmul.f32 %v911, 0.5
    %v913 = vtanh.pop %v868
    %v914 = vadd.f32 %v913, 1.0
    %v915 = vmul.f32 %v914, 0.5
    %v916 = vtanh.pop %v888
    %v917 = vadd.f32 %v916, 1.0
    %v918 = vmul.f32 %v917, 0.5
    %v919 = vtanh.pop %v908
    %v920 = vmul.f32 %v915, 0.0
    %v921 = vmul.f32 %v912, %v919
    %v922 = vadd.f32 %v920, %v921
    %v923 = vtanh.pop %v922
    %v924 = vmul.f32 %v918, %v923
    %v925 = vld [vmem:[#allocation3 + $0x20] sm:$0xff]
    %v926 = vld [vmem:[#allocation3 + $0x28] sm:$0xff]
    %v927 = vld [vmem:[#allocation3 + $0x30] sm:$0xff]
    %v928 = vld [vmem:[#allocation3 + $0x38] sm:$0xff]
    %v930 = vsel %vm826, %v924, 0
    %932 = vmatpush.msra.mxu0 0.0
    %933 = vmatpush.msra.mxu0 0.0
    %934 = vmatpush.msra.mxu0 0.0
    %935 = vmatpush.msra.mxu0 0.0
    %936 = vmatpush.msra.mxu0 0.0
    %937 = vmatpush.msra.mxu0 0.0
    %938 = vmatpush.msra.mxu0 0.0
    %939 = vmatpush.msra.mxu0 0.0
    %940 = vmatpush.msra.mxu0 %v818
    %941 = vmatpush.msra.mxu0 %v814
    %942 = vmatpush.msra.mxu0 %v810
    %943 = vmatpush.msra.mxu0 %v806
    %944 = vmatpush.msra.mxu0 %v802
    %945 = vmatpush.msra.mxu0 %v798
    %946 = vmatpush.msra.mxu0 %v794
    %947 = vmatpush.msra.mxu0 %v790
    %948 = vmatmul.f32.gmra.mxu0 %v930
    %v949 = vpop.f32.mrf.mxu0
    %v950 = vadd.f32 %v925, %v949
    %951 = vdwg.mxu0
    %952 = vmatpush.msra.mxu0 0.0
    %953 = vmatpush.msra.mxu0 0.0
    %954 = vmatpush.msra.mxu0 0.0
    %955 = vmatpush.msra.mxu0 0.0
    %956 = vmatpush.msra.mxu0 0.0
    %957 = vmatpush.msra.mxu0 0.0
    %958 = vmatpush.msra.mxu0 0.0
    %959 = vmatpush.msra.mxu0 0.0
    %960 = vmatpush.msra.mxu0 %v819
    %961 = vmatpush.msra.mxu0 %v815
    %962 = vmatpush.msra.mxu0 %v811
    %963 = vmatpush.msra.mxu0 %v807
    %964 = vmatpush.msra.mxu0 %v803
    %965 = vmatpush.msra.mxu0 %v799
    %966 = vmatpush.msra.mxu0 %v795
    %967 = vmatpush.msra.mxu0 %v791
    %968 = vmatmul.f32.gmra.mxu0 %v930
    %v969 = vpop.f32.mrf.mxu0
    %v970 = vadd.f32 %v926, %v969
    %971 = vdwg.mxu0
    %972 = vmatpush.msra.mxu0 0.0
    %973 = vmatpush.msra.mxu0 0.0
    %974 = vmatpush.msra.mxu0 0.0
    %975 = vmatpush.msra.mxu0 0.0
    %976 = vmatpush.msra.mxu0 0.0
    %977 = vmatpush.msra.mxu0 0.0
    %978 = vmatpush.msra.mxu0 0.0
    %979 = vmatpush.msra.mxu0 0.0
    %980 = vmatpush.msra.mxu0 %v820
    %981 = vmatpush.msra.mxu0 %v816
    %982 = vmatpush.msra.mxu0 %v812
    %983 = vmatpush.msra.mxu0 %v808
    %984 = vmatpush.msra.mxu0 %v804
    %985 = vmatpush.msra.mxu0 %v800
    %986 = vmatpush.msra.mxu0 %v796
    %987 = vmatpush.msra.mxu0 %v792
    %988 = vmatmul.f32.gmra.mxu0 %v930
    %v989 = vpop.f32.mrf.mxu0
    %v990 = vadd.f32 %v927, %v989
    %991 = vdwg.mxu0
    %992 = vmatpush.msra.mxu0 0.0
    %993 = vmatpush.msra.mxu0 0.0
    %994 = vmatpush.msra.mxu0 0.0
    %995 = vmatpush.msra.mxu0 0.0
    %996 = vmatpush.msra.mxu0 0.0
    %997 = vmatpush.msra.mxu0 0.0
    %998 = vmatpush.msra.mxu0 0.0
    %999 = vmatpush.msra.mxu0 0.0
    %1000 = vmatpush.msra.mxu0 %v821
    %1001 = vmatpush.msra.mxu0 %v817
    %1002 = vmatpush.msra.mxu0 %v813
    %1003 = vmatpush.msra.mxu0 %v809
    %1004 = vmatpush.msra.mxu0 %v805
    %1005 = vmatpush.msra.mxu0 %v801
    %1006 = vmatpush.msra.mxu0 %v797
    %1007 = vmatpush.msra.mxu0 %v793
    %1008 = vmatmul.f32.gmra.mxu0 %v930
    %v1009 = vpop.f32.mrf.mxu0
    %v1010 = vadd.f32 %v928, %v1009
    %1011 = vdwg.mxu0
    %v1012 = vtanh.pop %v950
    %v1013 = vadd.f32 %v1012, 1.0
    %v1014 = vmul.f32 %v1013, 0.5
    %v1015 = vtanh.pop %v970
    %v1016 = vadd.f32 %v1015, 1.0
    %v1017 = vmul.f32 %v1016, 0.5
    %v1018 = vtanh.pop %v990
    %v1019 = vadd.f32 %v1018, 1.0
    %v1020 = vmul.f32 %v1019, 0.5
    %v1021 = vtanh.pop %v1010
    %v1022 = vmul.f32 %v1017, %v922
    %v1023 = vmul.f32 %v1014, %v1021
    %v1024 = vadd.f32 %v1022, %v1023
    %v1025 = vtanh.pop %v1024
    %v1026 = vmul.f32 %v1020, %v1025
    %v1027 = vld [vmem:[#allocation3 + $0x40] sm:$0xff]
    %v1028 = vld [vmem:[#allocation3 + $0x48] sm:$0xff]
    %v1029 = vld [vmem:[#allocation3 + $0x50] sm:$0xff]
    %v1030 = vld [vmem:[#allocation3 + $0x58] sm:$0xff]
    %v1032 = vsel %vm826, %v1026, 0
    %1034 = vmatpush.msra.mxu0 0.0
    %1035 = vmatpush.msra.mxu0 0.0
    %1036 = vmatpush.msra.mxu0 0.0
    %1037 = vmatpush.msra.mxu0 0.0
    %1038 = vmatpush.msra.mxu0 0.0
    %1039 = vmatpush.msra.mxu0 0.0
    %1040 = vmatpush.msra.mxu0 0.0
    %1041 = vmatpush.msra.mxu0 0.0
    %1042 = vmatpush.msra.mxu0 %v818
    %1043 = vmatpush.msra.mxu0 %v814
    %1044 = vmatpush.msra.mxu0 %v810
    %1045 = vmatpush.msra.mxu0 %v806
    %1046 = vmatpush.msra.mxu0 %v802
    %1047 = vmatpush.msra.mxu0 %v798
    %1048 = vmatpush.msra.mxu0 %v794
    %1049 = vmatpush.msra.mxu0 %v790
    %1050 = vmatmul.f32.gmra.mxu0 %v1032
    %v1051 = vpop.f32.mrf.mxu0
    %v1052 = vadd.f32 %v1027, %v1051
    %1053 = vdwg.mxu0
    %1054 = vmatpush.msra.mxu0 0.0
    %1055 = vmatpush.msra.mxu0 0.0
    %1056 = vmatpush.msra.mxu0 0.0
    %1057 = vmatpush.msra.mxu0 0.0
    %1058 = vmatpush.msra.mxu0 0.0
    %1059 = vmatpush.msra.mxu0 0.0
    %1060 = vmatpush.msra.mxu0 0.0
    %1061 = vmatpush.msra.mxu0 0.0
    %1062 = vmatpush.msra.mxu0 %v819
    %1063 = vmatpush.msra.mxu0 %v815
    %1064 = vmatpush.msra.mxu0 %v811
    %1065 = vmatpush.msra.mxu0 %v807
    %1066 = vmatpush.msra.mxu0 %v803
    %1067 = vmatpush.msra.mxu0 %v799
    %1068 = vmatpush.msra.mxu0 %v795
    %1069 = vmatpush.msra.mxu0 %v791
    %1070 = vmatmul.f32.gmra.mxu0 %v1032
    %v1071 = vpop.f32.mrf.mxu0
    %v1072 = vadd.f32 %v1028, %v1071
    %1073 = vdwg.mxu0
    %1074 = vmatpush.msra.mxu0 0.0
    %1075 = vmatpush.msra.mxu0 0.0
    %1076 = vmatpush.msra.mxu0 0.0
    %1077 = vmatpush.msra.mxu0 0.0
    %1078 = vmatpush.msra.mxu0 0.0
    %1079 = vmatpush.msra.mxu0 0.0
    %1080 = vmatpush.msra.mxu0 0.0
    %1081 = vmatpush.msra.mxu0 0.0
    %1082 = vmatpush.msra.mxu0 %v820
    %1083 = vmatpush.msra.mxu0 %v816
    %1084 = vmatpush.msra.mxu0 %v812
    %1085 = vmatpush.msra.mxu0 %v808
    %1086 = vmatpush.msra.mxu0 %v804
    %1087 = vmatpush.msra.mxu0 %v800
    %1088 = vmatpush.msra.mxu0 %v796
    %1089 = vmatpush.msra.mxu0 %v792
    %1090 = vmatmul.f32.gmra.mxu0 %v1032
    %v1091 = vpop.f32.mrf.mxu0
    %v1092 = vadd.f32 %v1029, %v1091
    %1093 = vdwg.mxu0
    %1094 = vmatpush.msra.mxu0 0.0
    %1095 = vmatpush.msra.mxu0 0.0
    %1096 = vmatpush.msra.mxu0 0.0
    %1097 = vmatpush.msra.mxu0 0.0
    %1098 = vmatpush.msra.mxu0 0.0
    %1099 = vmatpush.msra.mxu0 0.0
    %1100 = vmatpush.msra.mxu0 0.0
    %1101 = vmatpush.msra.mxu0 0.0
    %1102 = vmatpush.msra.mxu0 %v821
    %1103 = vmatpush.msra.mxu0 %v817
    %1104 = vmatpush.msra.mxu0 %v813
    %1105 = vmatpush.msra.mxu0 %v809
    %1106 = vmatpush.msra.mxu0 %v805
    %1107 = vmatpush.msra.mxu0 %v801
    %1108 = vmatpush.msra.mxu0 %v797
    %1109 = vmatpush.msra.mxu0 %v793
    %1110 = vmatmul.f32.gmra.mxu0 %v1032
    %v1111 = vpop.f32.mrf.mxu0
    %v1112 = vadd.f32 %v1030, %v1111
    %1113 = vdwg.mxu0
    %v1114 = vtanh.pop %v1052
    %v1115 = vadd.f32 %v1114, 1.0
    %v1116 = vmul.f32 %v1115, 0.5
    %v1117 = vtanh.pop %v1072
    %v1118 = vadd.f32 %v1117, 1.0
    %v1119 = vmul.f32 %v1118, 0.5
    %v1120 = vtanh.pop %v1092
    %v1121 = vadd.f32 %v1120, 1.0
    %v1122 = vmul.f32 %v1121, 0.5
    %v1123 = vtanh.pop %v1112
    %v1124 = vmul.f32 %v1119, %v1024
    %v1125 = vmul.f32 %v1116, %v1123
    %v1126 = vadd.f32 %v1124, %v1125
    %v1127 = vtanh.pop %v1126
    %v1128 = vmul.f32 %v1122, %v1127
    %v1129 = vld [vmem:[#allocation3 + $0x60] sm:$0xff]
    %v1130 = vld [vmem:[#allocation3 + $0x68] sm:$0xff]
    %v1131 = vld [vmem:[#allocation3 + $0x70] sm:$0xff]
    %v1132 = vld [vmem:[#allocation3 + $0x78] sm:$0xff]
    %v1134 = vsel %vm826, %v1128, 0
    %1136 = vmatpush.msra.mxu0 0.0
    %1137 = vmatpush.msra.mxu0 0.0
    %1138 = vmatpush.msra.mxu0 0.0
    %1139 = vmatpush.msra.mxu0 0.0
    %1140 = vmatpush.msra.mxu0 0.0
    %1141 = vmatpush.msra.mxu0 0.0
    %1142 = vmatpush.msra.mxu0 0.0
    %1143 = vmatpush.msra.mxu0 0.0
    %1144 = vmatpush.msra.mxu0 %v818
    %1145 = vmatpush.msra.mxu0 %v814
    %1146 = vmatpush.msra.mxu0 %v810
    %1147 = vmatpush.msra.mxu0 %v806
    %1148 = vmatpush.msra.mxu0 %v802
    %1149 = vmatpush.msra.mxu0 %v798
    %1150 = vmatpush.msra.mxu0 %v794
    %1151 = vmatpush.msra.mxu0 %v790
    %1152 = vmatmul.f32.gmra.mxu0 %v1134
    %v1153 = vpop.f32.mrf.mxu0
    %v1154 = vadd.f32 %v1129, %v1153
    %1155 = vdwg.mxu0
    %1156 = vmatpush.msra.mxu0 0.0
    %1157 = vmatpush.msra.mxu0 0.0
    %1158 = vmatpush.msra.mxu0 0.0
    %1159 = vmatpush.msra.mxu0 0.0
    %1160 = vmatpush.msra.mxu0 0.0
    %1161 = vmatpush.msra.mxu0 0.0
    %1162 = vmatpush.msra.mxu0 0.0
    %1163 = vmatpush.msra.mxu0 0.0
    %1164 = vmatpush.msra.mxu0 %v819
    %1165 = vmatpush.msra.mxu0 %v815
    %1166 = vmatpush.msra.mxu0 %v811
    %1167 = vmatpush.msra.mxu0 %v807
    %1168 = vmatpush.msra.mxu0 %v803
    %1169 = vmatpush.msra.mxu0 %v799
    %1170 = vmatpush.msra.mxu0 %v795
    %1171 = vmatpush.msra.mxu0 %v791
    %1172 = vmatmul.f32.gmra.mxu0 %v1134
    %v1173 = vpop.f32.mrf.mxu0
    %v1174 = vadd.f32 %v1130, %v1173
    %1175 = vdwg.mxu0
    %1176 = vmatpush.msra.mxu0 0.0
    %1177 = vmatpush.msra.mxu0 0.0
    %1178 = vmatpush.msra.mxu0 0.0
    %1179 = vmatpush.msra.mxu0 0.0
    %1180 = vmatpush.msra.mxu0 0.0
    %1181 = vmatpush.msra.mxu0 0.0
    %1182 = vmatpush.msra.mxu0 0.0
    %1183 = vmatpush.msra.mxu0 0.0
    %1184 = vmatpush.msra.mxu0 %v820
    %1185 = vmatpush.msra.mxu0 %v816
    %1186 = vmatpush.msra.mxu0 %v812
    %1187 = vmatpush.msra.mxu0 %v808
    %1188 = vmatpush.msra.mxu0 %v804
    %1189 = vmatpush.msra.mxu0 %v800
    %1190 = vmatpush.msra.mxu0 %v796
    %1191 = vmatpush.msra.mxu0 %v792
    %1192 = vmatmul.f32.gmra.mxu0 %v1134
    %v1193 = vpop.f32.mrf.mxu0
    %v1194 = vadd.f32 %v1131, %v1193
    %1195 = vdwg.mxu0
    %1196 = vmatpush.msra.mxu0 0.0
    %1197 = vmatpush.msra.mxu0 0.0
    %1198 = vmatpush.msra.mxu0 0.0
    %1199 = vmatpush.msra.mxu0 0.0
    %1200 = vmatpush.msra.mxu0 0.0
    %1201 = vmatpush.msra.mxu0 0.0
    %1202 = vmatpush.msra.mxu0 0.0
    %1203 = vmatpush.msra.mxu0 0.0
    %1204 = vmatpush.msra.mxu0 %v821
    %1205 = vmatpush.msra.mxu0 %v817
    %1206 = vmatpush.msra.mxu0 %v813
    %1207 = vmatpush.msra.mxu0 %v809
    %1208 = vmatpush.msra.mxu0 %v805
    %1209 = vmatpush.msra.mxu0 %v801
    %1210 = vmatpush.msra.mxu0 %v797
    %1211 = vmatpush.msra.mxu0 %v793
    %1212 = vmatmul.f32.gmra.mxu0 %v1134
    %v1213 = vpop.f32.mrf.mxu0
    %v1214 = vadd.f32 %v1132, %v1213
    %1215 = vdwg.mxu0
    %v1216 = vtanh.pop %v1154
    %v1217 = vadd.f32 %v1216, 1.0
    %v1218 = vmul.f32 %v1217, 0.5
    %v1219 = vtanh.pop %v1174
    %v1220 = vadd.f32 %v1219, 1.0
    %v1221 = vmul.f32 %v1220, 0.5
    %v1222 = vtanh.pop %v1194
    %v1223 = vadd.f32 %v1222, 1.0
    %v1224 = vmul.f32 %v1223, 0.5
    %v1225 = vtanh.pop %v1214
    %v1226 = vmul.f32 %v1221, %v1126
    %v1227 = vmul.f32 %v1218, %v1225
    %v1228 = vadd.f32 %v1226, %v1227
    %v1229 = vtanh.pop %v1228
    %v1230 = vmul.f32 %v1224, %v1229
    %v1231 = vld [vmem:[#allocation3 + $0x80] sm:$0xff]
    %v1232 = vld [vmem:[#allocation3 + $0x88] sm:$0xff]
    %v1233 = vld [vmem:[#allocation3 + $0x90] sm:$0xff]
    %v1234 = vld [vmem:[#allocation3 + $0x98] sm:$0xff]
    %v1236 = vsel %vm826, %v1230, 0
    %1238 = vmatpush.msra.mxu0 0.0
    %1239 = vmatpush.msra.mxu0 0.0
    %1240 = vmatpush.msra.mxu0 0.0
    %1241 = vmatpush.msra.mxu0 0.0
    %1242 = vmatpush.msra.mxu0 0.0
    %1243 = vmatpush.msra.mxu0 0.0
    %1244 = vmatpush.msra.mxu0 0.0
    %1245 = vmatpush.msra.mxu0 0.0
    %1246 = vmatpush.msra.mxu0 %v818
    %1247 = vmatpush.msra.mxu0 %v814
    %1248 = vmatpush.msra.mxu0 %v810
    %1249 = vmatpush.msra.mxu0 %v806
    %1250 = vmatpush.msra.mxu0 %v802
    %1251 = vmatpush.msra.mxu0 %v798
    %1252 = vmatpush.msra.mxu0 %v794
    %1253 = vmatpush.msra.mxu0 %v790
    %1254 = vmatmul.f32.gmra.mxu0 %v1236
    %v1255 = vpop.f32.mrf.mxu0
    %v1256 = vadd.f32 %v1231, %v1255
    %1257 = vdwg.mxu0
    %1258 = vmatpush.msra.mxu0 0.0
    %1259 = vmatpush.msra.mxu0 0.0
    %1260 = vmatpush.msra.mxu0 0.0
    %1261 = vmatpush.msra.mxu0 0.0
    %1262 = vmatpush.msra.mxu0 0.0
    %1263 = vmatpush.msra.mxu0 0.0
    %1264 = vmatpush.msra.mxu0 0.0
    %1265 = vmatpush.msra.mxu0 0.0
    %1266 = vmatpush.msra.mxu0 %v819
    %1267 = vmatpush.msra.mxu0 %v815
    %1268 = vmatpush.msra.mxu0 %v811
    %1269 = vmatpush.msra.mxu0 %v807
    %1270 = vmatpush.msra.mxu0 %v803
    %1271 = vmatpush.msra.mxu0 %v799
    %1272 = vmatpush.msra.mxu0 %v795
    %1273 = vmatpush.msra.mxu0 %v791
    %1274 = vmatmul.f32.gmra.mxu0 %v1236
    %v1275 = vpop.f32.mrf.mxu0
    %v1276 = vadd.f32 %v1232, %v1275
    %1277 = vdwg.mxu0
    %1278 = vmatpush.msra.mxu0 0.0
    %1279 = vmatpush.msra.mxu0 0.0
    %1280 = vmatpush.msra.mxu0 0.0
    %1281 = vmatpush.msra.mxu0 0.0
    %1282 = vmatpush.msra.mxu0 0.0
    %1283 = vmatpush.msra.mxu0 0.0
    %1284 = vmatpush.msra.mxu0 0.0
    %1285 = vmatpush.msra.mxu0 0.0
    %1286 = vmatpush.msra.mxu0 %v820
    %1287 = vmatpush.msra.mxu0 %v816
    %1288 = vmatpush.msra.mxu0 %v812
    %1289 = vmatpush.msra.mxu0 %v808
    %1290 = vmatpush.msra.mxu0 %v804
    %1291 = vmatpush.msra.mxu0 %v800
    %1292 = vmatpush.msra.mxu0 %v796
    %1293 = vmatpush.msra.mxu0 %v792
    %1294 = vmatmul.f32.gmra.mxu0 %v1236
    %v1295 = vpop.f32.mrf.mxu0
    %v1296 = vadd.f32 %v1233, %v1295
    %1297 = vdwg.mxu0
    %1298 = vmatpush.msra.mxu0 0.0
    %1299 = vmatpush.msra.mxu0 0.0
    %1300 = vmatpush.msra.mxu0 0.0
    %1301 = vmatpush.msra.mxu0 0.0
    %1302 = vmatpush.msra.mxu0 0.0
    %1303 = vmatpush.msra.mxu0 0.0
    %1304 = vmatpush.msra.mxu0 0.0
    %1305 = vmatpush.msra.mxu0 0.0
    %1306 = vmatpush.msra.mxu0 %v821
    %1307 = vmatpush.msra.mxu0 %v817
    %1308 = vmatpush.msra.mxu0 %v813
    %1309 = vmatpush.msra.mxu0 %v809
    %1310 = vmatpush.msra.mxu0 %v805
    %1311 = vmatpush.msra.mxu0 %v801
    %1312 = vmatpush.msra.mxu0 %v797
    %1313 = vmatpush.msra.mxu0 %v793
    %1314 = vmatmul.f32.gmra.mxu0 %v1236
    %v1315 = vpop.f32.mrf.mxu0
    %v1316 = vadd.f32 %v1234, %v1315
    %1317 = vdwg.mxu0
    %v1318 = vtanh.pop %v1256
    %v1319 = vadd.f32 %v1318, 1.0
    %v1320 = vmul.f32 %v1319, 0.5
    %v1321 = vtanh.pop %v1276
    %v1322 = vadd.f32 %v1321, 1.0
    %v1323 = vmul.f32 %v1322, 0.5
    %v1324 = vtanh.pop %v1296
    %v1325 = vadd.f32 %v1324, 1.0
    %v1326 = vmul.f32 %v1325, 0.5
    %v1327 = vtanh.pop %v1316
    %v1328 = vmul.f32 %v1323, %v1228
    %v1329 = vmul.f32 %v1320, %v1327
    %v1330 = vadd.f32 %v1328, %v1329
    %v1331 = vtanh.pop %v1330
    %v1332 = vmul.f32 %v1326, %v1331
    %v1333 = vld [vmem:[#allocation3 + $0xa0] sm:$0xff]
    %v1334 = vld [vmem:[#allocation3 + $0xa8] sm:$0xff]
    %v1335 = vld [vmem:[#allocation3 + $0xb0] sm:$0xff]
    %v1336 = vld [vmem:[#allocation3 + $0xb8] sm:$0xff]
    %v1338 = vsel %vm826, %v1332, 0
    %1340 = vmatpush.msra.mxu0 0.0
    %1341 = vmatpush.msra.mxu0 0.0
    %1342 = vmatpush.msra.mxu0 0.0
    %1343 = vmatpush.msra.mxu0 0.0
    %1344 = vmatpush.msra.mxu0 0.0
    %1345 = vmatpush.msra.mxu0 0.0
    %1346 = vmatpush.msra.mxu0 0.0
    %1347 = vmatpush.msra.mxu0 0.0
    %1348 = vmatpush.msra.mxu0 %v818
    %1349 = vmatpush.msra.mxu0 %v814
    %1350 = vmatpush.msra.mxu0 %v810
    %1351 = vmatpush.msra.mxu0 %v806
    %1352 = vmatpush.msra.mxu0 %v802
    %1353 = vmatpush.msra.mxu0 %v798
    %1354 = vmatpush.msra.mxu0 %v794
    %1355 = vmatpush.msra.mxu0 %v790
    %1356 = vmatmul.f32.gmra.mxu0 %v1338
    %v1357 = vpop.f32.mrf.mxu0
    %v1358 = vadd.f32 %v1333, %v1357
    %1359 = vdwg.mxu0
    %1360 = vmatpush.msra.mxu0 0.0
    %1361 = vmatpush.msra.mxu0 0.0
    %1362 = vmatpush.msra.mxu0 0.0
    %1363 = vmatpush.msra.mxu0 0.0
    %1364 = vmatpush.msra.mxu0 0.0
    %1365 = vmatpush.msra.mxu0 0.0
    %1366 = vmatpush.msra.mxu0 0.0
    %1367 = vmatpush.msra.mxu0 0.0
    %1368 = vmatpush.msra.mxu0 %v819
    %1369 = vmatpush.msra.mxu0 %v815
    %1370 = vmatpush.msra.mxu0 %v811
    %1371 = vmatpush.msra.mxu0 %v807
    %1372 = vmatpush.msra.mxu0 %v803
    %1373 = vmatpush.msra.mxu0 %v799
    %1374 = vmatpush.msra.mxu0 %v795
    %1375 = vmatpush.msra.mxu0 %v791
    %1376 = vmatmul.f32.gmra.mxu0 %v1338
    %v1377 = vpop.f32.mrf.mxu0
    %v1378 = vadd.f32 %v1334, %v1377
    %1379 = vdwg.mxu0
    %1380 = vmatpush.msra.mxu0 0.0
    %1381 = vmatpush.msra.mxu0 0.0
    %1382 = vmatpush.msra.mxu0 0.0
    %1383 = vmatpush.msra.mxu0 0.0
    %1384 = vmatpush.msra.mxu0 0.0
    %1385 = vmatpush.msra.mxu0 0.0
    %1386 = vmatpush.msra.mxu0 0.0
    %1387 = vmatpush.msra.mxu0 0.0
    %1388 = vmatpush.msra.mxu0 %v820
    %1389 = vmatpush.msra.mxu0 %v816
    %1390 = vmatpush.msra.mxu0 %v812
    %1391 = vmatpush.msra.mxu0 %v808
    %1392 = vmatpush.msra.mxu0 %v804
    %1393 = vmatpush.msra.mxu0 %v800
    %1394 = vmatpush.msra.mxu0 %v796
    %1395 = vmatpush.msra.mxu0 %v792
    %1396 = vmatmul.f32.gmra.mxu0 %v1338
    %v1397 = vpop.f32.mrf.mxu0
    %v1398 = vadd.f32 %v1335, %v1397
    %1399 = vdwg.mxu0
    %1400 = vmatpush.msra.mxu0 0.0
    %1401 = vmatpush.msra.mxu0 0.0
    %1402 = vmatpush.msra.mxu0 0.0
    %1403 = vmatpush.msra.mxu0 0.0
    %1404 = vmatpush.msra.mxu0 0.0
    %1405 = vmatpush.msra.mxu0 0.0
    %1406 = vmatpush.msra.mxu0 0.0
    %1407 = vmatpush.msra.mxu0 0.0
    %1408 = vmatpush.msra.mxu0 %v821
    %1409 = vmatpush.msra.mxu0 %v817
    %1410 = vmatpush.msra.mxu0 %v813
    %1411 = vmatpush.msra.mxu0 %v809
    %1412 = vmatpush.msra.mxu0 %v805
    %1413 = vmatpush.msra.mxu0 %v801
    %1414 = vmatpush.msra.mxu0 %v797
    %1415 = vmatpush.msra.mxu0 %v793
    %1416 = vmatmul.f32.gmra.mxu0 %v1338
    %v1417 = vpop.f32.mrf.mxu0
    %v1418 = vadd.f32 %v1336, %v1417
    %1419 = vdwg.mxu0
    %v1420 = vtanh.pop %v1358
    %v1421 = vadd.f32 %v1420, 1.0
    %v1422 = vmul.f32 %v1421, 0.5
    %v1423 = vtanh.pop %v1378
    %v1424 = vadd.f32 %v1423, 1.0
    %v1425 = vmul.f32 %v1424, 0.5
    %v1426 = vtanh.pop %v1398
    %v1427 = vadd.f32 %v1426, 1.0
    %v1428 = vmul.f32 %v1427, 0.5
    %v1429 = vtanh.pop %v1418
    %v1430 = vmul.f32 %v1425, %v1330
    %v1431 = vmul.f32 %v1422, %v1429
    %v1432 = vadd.f32 %v1430, %v1431
    %v1433 = vtanh.pop %v1432
    %v1434 = vmul.f32 %v1428, %v1433
    %v1435 = vld [vmem:[#allocation3 + $0xc0] sm:$0xff]
    %v1436 = vld [vmem:[#allocation3 + $0xc8] sm:$0xff]
    %v1437 = vld [vmem:[#allocation3 + $0xd0] sm:$0xff]
    %v1438 = vld [vmem:[#allocation3 + $0xd8] sm:$0xff]
    %v1440 = vsel %vm826, %v1434, 0
    %1442 = vmatpush.msra.mxu0 0.0
    %1443 = vmatpush.msra.mxu0 0.0
    %1444 = vmatpush.msra.mxu0 0.0
    %1445 = vmatpush.msra.mxu0 0.0
    %1446 = vmatpush.msra.mxu0 0.0
    %1447 = vmatpush.msra.mxu0 0.0
    %1448 = vmatpush.msra.mxu0 0.0
    %1449 = vmatpush.msra.mxu0 0.0
    %1450 = vmatpush.msra.mxu0 %v818
    %1451 = vmatpush.msra.mxu0 %v814
    %1452 = vmatpush.msra.mxu0 %v810
    %1453 = vmatpush.msra.mxu0 %v806
    %1454 = vmatpush.msra.mxu0 %v802
    %1455 = vmatpush.msra.mxu0 %v798
    %1456 = vmatpush.msra.mxu0 %v794
    %1457 = vmatpush.msra.mxu0 %v790
    %1458 = vmatmul.f32.gmra.mxu0 %v1440
    %v1459 = vpop.f32.mrf.mxu0
    %v1460 = vadd.f32 %v1435, %v1459
    %1461 = vdwg.mxu0
    %1462 = vmatpush.msra.mxu0 0.0
    %1463 = vmatpush.msra.mxu0 0.0
    %1464 = vmatpush.msra.mxu0 0.0
    %1465 = vmatpush.msra.mxu0 0.0
    %1466 = vmatpush.msra.mxu0 0.0
    %1467 = vmatpush.msra.mxu0 0.0
    %1468 = vmatpush.msra.mxu0 0.0
    %1469 = vmatpush.msra.mxu0 0.0
    %1470 = vmatpush.msra.mxu0 %v819
    %1471 = vmatpush.msra.mxu0 %v815
    %1472 = vmatpush.msra.mxu0 %v811
    %1473 = vmatpush.msra.mxu0 %v807
    %1474 = vmatpush.msra.mxu0 %v803
    %1475 = vmatpush.msra.mxu0 %v799
    %1476 = vmatpush.msra.mxu0 %v795
    %1477 = vmatpush.msra.mxu0 %v791
    %1478 = vmatmul.f32.gmra.mxu0 %v1440
    %v1479 = vpop.f32.mrf.mxu0
    %v1480 = vadd.f32 %v1436, %v1479
    %1481 = vdwg.mxu0
    %1482 = vmatpush.msra.mxu0 0.0
    %1483 = vmatpush.msra.mxu0 0.0
    %1484 = vmatpush.msra.mxu0 0.0
    %1485 = vmatpush.msra.mxu0 0.0
    %1486 = vmatpush.msra.mxu0 0.0
    %1487 = vmatpush.msra.mxu0 0.0
    %1488 = vmatpush.msra.mxu0 0.0
    %1489 = vmatpush.msra.mxu0 0.0
    %1490 = vmatpush.msra.mxu0 %v820
    %1491 = vmatpush.msra.mxu0 %v816
    %1492 = vmatpush.msra.mxu0 %v812
    %1493 = vmatpush.msra.mxu0 %v808
    %1494 = vmatpush.msra.mxu0 %v804
    %1495 = vmatpush.msra.mxu0 %v800
    %1496 = vmatpush.msra.mxu0 %v796
    %1497 = vmatpush.msra.mxu0 %v792
    %1498 = vmatmul.f32.gmra.mxu0 %v1440
    %v1499 = vpop.f32.mrf.mxu0
    %v1500 = vadd.f32 %v1437, %v1499
    %1501 = vdwg.mxu0
    %1502 = vmatpush.msra.mxu0 0.0
    %1503 = vmatpush.msra.mxu0 0.0
    %1504 = vmatpush.msra.mxu0 0.0
    %1505 = vmatpush.msra.mxu0 0.0
    %1506 = vmatpush.msra.mxu0 0.0
    %1507 = vmatpush.msra.mxu0 0.0
    %1508 = vmatpush.msra.mxu0 0.0
    %1509 = vmatpush.msra.mxu0 0.0
    %1510 = vmatpush.msra.mxu0 %v821
    %1511 = vmatpush.msra.mxu0 %v817
    %1512 = vmatpush.msra.mxu0 %v813
    %1513 = vmatpush.msra.mxu0 %v809
    %1514 = vmatpush.msra.mxu0 %v805
    %1515 = vmatpush.msra.mxu0 %v801
    %1516 = vmatpush.msra.mxu0 %v797
    %1517 = vmatpush.msra.mxu0 %v793
    %1518 = vmatmul.f32.gmra.mxu0 %v1440
    %v1519 = vpop.f32.mrf.mxu0
    %v1520 = vadd.f32 %v1438, %v1519
    %1521 = vdwg.mxu0
    %v1522 = vtanh.pop %v1460
    %v1523 = vadd.f32 %v1522, 1.0
    %v1524 = vmul.f32 %v1523, 0.5
    %v1525 = vtanh.pop %v1480
    %v1526 = vadd.f32 %v1525, 1.0
    %v1527 = vmul.f32 %v1526, 0.5
    %v1528 = vtanh.pop %v1500
    %v1529 = vadd.f32 %v1528, 1.0
    %v1530 = vmul.f32 %v1529, 0.5
    %v1531 = vtanh.pop %v1520
    %v1532 = vmul.f32 %v1527, %v1432
    %v1533 = vmul.f32 %v1524, %v1531
    %v1534 = vadd.f32 %v1532, %v1533
    %v1535 = vtanh.pop %v1534
    %v1536 = vmul.f32 %v1530, %v1535
    %v1537 = vld [vmem:[#allocation3 + $0xe0] sm:$0xff]
    %v1538 = vld [vmem:[#allocation3 + $0xe8] sm:$0xff]
    %v1539 = vld [vmem:[#allocation3 + $0xf0] sm:$0xff]
    %v1540 = vld [vmem:[#allocation3 + $0xf8] sm:$0xff]
    %v1542 = vsel %vm826, %v1536, 0
    %1544 = vmatpush.msra.mxu0 0.0
    %1545 = vmatpush.msra.mxu0 0.0
    %1546 = vmatpush.msra.mxu0 0.0
    %1547 = vmatpush.msra.mxu0 0.0
    %1548 = vmatpush.msra.mxu0 0.0
    %1549 = vmatpush.msra.mxu0 0.0
    %1550 = vmatpush.msra.mxu0 0.0
    %1551 = vmatpush.msra.mxu0 0.0
    %1552 = vmatpush.msra.mxu0 %v818
    %1553 = vmatpush.msra.mxu0 %v814
    %1554 = vmatpush.msra.mxu0 %v810
    %1555 = vmatpush.msra.mxu0 %v806
    %1556 = vmatpush.msra.mxu0 %v802
    %1557 = vmatpush.msra.mxu0 %v798
    %1558 = vmatpush.msra.mxu0 %v794
    %1559 = vmatpush.msra.mxu0 %v790
    %1560 = vmatmul.f32.gmra.mxu0 %v1542
    %v1561 = vpop.f32.mrf.mxu0
    %v1562 = vadd.f32 %v1537, %v1561
    %1563 = vdwg.mxu0
    %1564 = vmatpush.msra.mxu0 0.0
    %1565 = vmatpush.msra.mxu0 0.0
    %1566 = vmatpush.msra.mxu0 0.0
    %1567 = vmatpush.msra.mxu0 0.0
    %1568 = vmatpush.msra.mxu0 0.0
    %1569 = vmatpush.msra.mxu0 0.0
    %1570 = vmatpush.msra.mxu0 0.0
    %1571 = vmatpush.msra.mxu0 0.0
    %1572 = vmatpush.msra.mxu0 %v819
    %1573 = vmatpush.msra.mxu0 %v815
    %1574 = vmatpush.msra.mxu0 %v811
    %1575 = vmatpush.msra.mxu0 %v807
    %1576 = vmatpush.msra.mxu0 %v803
    %1577 = vmatpush.msra.mxu0 %v799
    %1578 = vmatpush.msra.mxu0 %v795
    %1579 = vmatpush.msra.mxu0 %v791
    %1580 = vmatmul.f32.gmra.mxu0 %v1542
    %v1581 = vpop.f32.mrf.mxu0
    %v1582 = vadd.f32 %v1538, %v1581
    %1583 = vdwg.mxu0
    %1584 = vmatpush.msra.mxu0 0.0
    %1585 = vmatpush.msra.mxu0 0.0
    %1586 = vmatpush.msra.mxu0 0.0
    %1587 = vmatpush.msra.mxu0 0.0
    %1588 = vmatpush.msra.mxu0 0.0
    %1589 = vmatpush.msra.mxu0 0.0
    %1590 = vmatpush.msra.mxu0 0.0
    %1591 = vmatpush.msra.mxu0 0.0
    %1592 = vmatpush.msra.mxu0 %v820
    %1593 = vmatpush.msra.mxu0 %v816
    %1594 = vmatpush.msra.mxu0 %v812
    %1595 = vmatpush.msra.mxu0 %v808
    %1596 = vmatpush.msra.mxu0 %v804
    %1597 = vmatpush.msra.mxu0 %v800
    %1598 = vmatpush.msra.mxu0 %v796
    %1599 = vmatpush.msra.mxu0 %v792
    %1600 = vmatmul.f32.gmra.mxu0 %v1542
    %v1601 = vpop.f32.mrf.mxu0
    %v1602 = vadd.f32 %v1539, %v1601
    %1603 = vdwg.mxu0
    %1604 = vmatpush.msra.mxu0 0.0
    %1605 = vmatpush.msra.mxu0 0.0
    %1606 = vmatpush.msra.mxu0 0.0
    %1607 = vmatpush.msra.mxu0 0.0
    %1608 = vmatpush.msra.mxu0 0.0
    %1609 = vmatpush.msra.mxu0 0.0
    %1610 = vmatpush.msra.mxu0 0.0
    %1611 = vmatpush.msra.mxu0 0.0
    %1612 = vmatpush.msra.mxu0 %v821
    %1613 = vmatpush.msra.mxu0 %v817
    %1614 = vmatpush.msra.mxu0 %v813
    %1615 = vmatpush.msra.mxu0 %v809
    %1616 = vmatpush.msra.mxu0 %v805
    %1617 = vmatpush.msra.mxu0 %v801
    %1618 = vmatpush.msra.mxu0 %v797
    %1619 = vmatpush.msra.mxu0 %v793
    %1620 = vmatmul.f32.gmra.mxu0 %v1542
    %v1621 = vpop.f32.mrf.mxu0
    %v1622 = vadd.f32 %v1540, %v1621
    %1623 = vdwg.mxu0
    %v1624 = vtanh.pop %v1562
    %v1625 = vadd.f32 %v1624, 1.0
    %v1626 = vmul.f32 %v1625, 0.5
    %v1627 = vtanh.pop %v1582
    %v1628 = vadd.f32 %v1627, 1.0
    %v1629 = vmul.f32 %v1628, 0.5
    %v1630 = vtanh.pop %v1602
    %v1631 = vadd.f32 %v1630, 1.0
    %v1632 = vmul.f32 %v1631, 0.5
    %v1633 = vtanh.pop %v1622
    %v1634 = vmul.f32 %v1629, %v1534
    %v1635 = vmul.f32 %v1626, %v1633
    %v1636 = vadd.f32 %v1634, %v1635
    %v1637 = vtanh.pop %v1636
    %v1638 = vmul.f32 %v1632, %v1637
    %v1639 = vld [vmem:[%s6] sm:$0xff]
    %v1640 = vld [vmem:[%s6 + $0x8] sm:$0xff]
    %v1641 = vld [vmem:[%s6 + $0x10] sm:$0xff]
    %v1642 = vld [vmem:[%s6 + $0x18] sm:$0xff]
    %v1643 = vld [vmem:[%s6 + $0x20] sm:$0xff]
    %v1644 = vld [vmem:[%s6 + $0x28] sm:$0xff]
    %v1645 = vld [vmem:[%s6 + $0x30] sm:$0xff]
    %v1646 = vld [vmem:[%s6 + $0x38] sm:$0xff]
    %v1647 = vld [vmem:[#allocation14] sm:$0x1]
    %v1649 = vperm.slane %v1647, 0
    %v1652 = vsel %vm826, %v1638, 0
    %1654 = vmatpush.msra.mxu0 0.0
    %1655 = vmatpush.msra.mxu0 0.0
    %1656 = vmatpush.msra.mxu0 0.0
    %1657 = vmatpush.msra.mxu0 0.0
    %1658 = vmatpush.msra.mxu0 0.0
    %1659 = vmatpush.msra.mxu0 0.0
    %1660 = vmatpush.msra.mxu0 0.0
    %1661 = vmatpush.msra.mxu0 0.0
    %1662 = vmatpush.msra.mxu0 %v1646
    %1663 = vmatpush.msra.mxu0 %v1645
    %1664 = vmatpush.msra.mxu0 %v1644
    %1665 = vmatpush.msra.mxu0 %v1643
    %1666 = vmatpush.msra.mxu0 %v1642
    %1667 = vmatpush.msra.mxu0 %v1641
    %1668 = vmatpush.msra.mxu0 %v1640
    %1669 = vmatpush.msra.mxu0 %v1639
    %1670 = vmatmul.f32.gmra.mxu0 %v1652
    %v1671 = vpop.f32.mrf.mxu0
    %v1672 = vadd.f32 %v1649, %v1671
    %1673 = vdwg.mxu0
    %v1674 = vmax.f32 %v1672, 0.0
    %v1675 = vld [vmem:[%s8] sm:$0xff]
    %v1676 = vld [vmem:[%s8 + $0x8] sm:$0xff]
    %v1677 = vld [vmem:[%s8 + $0x10] sm:$0xff]
    %v1678 = vld [vmem:[%s8 + $0x18] sm:$0xff]
    %v1679 = vld [vmem:[#allocation16] sm:$0x1]
    %v1681 = vperm.slane %v1679, 0
    %vm1683 = vcmask 261120
    %v1685 = vsel %vm1683, %v1674, 0
    %1687 = vmatpush.msra.mxu0 0.0
    %1688 = vmatpush.msra.mxu0 0.0
    %1689 = vmatpush.msra.mxu0 0.0
    %1690 = vmatpush.msra.mxu0 0.0
    %1691 = vmatpush.msra.mxu0 0.0
    %1692 = vmatpush.msra.mxu0 0.0
    %1693 = vmatpush.msra.mxu0 0.0
    %1694 = vmatpush.msra.mxu0 0.0
    %1695 = vmatpush.msra.mxu0 0.0
    %1696 = vmatpush.msra.mxu0 0.0
    %1697 = vmatpush.msra.mxu0 0.0
    %1698 = vmatpush.msra.mxu0 0.0
    %1699 = vmatpush.msra.mxu0 %v1678
    %1700 = vmatpush.msra.mxu0 %v1677
    %1701 = vmatpush.msra.mxu0 %v1676
    %1702 = vmatpush.msra.mxu0 %v1675
    %1703 = vmatmul.f32.gmra.mxu0 %v1685
    %v1704 = vpop.f32.mrf.mxu0
    %v1705 = vadd.f32 %v1681, %v1704
    %1706 = vdwg.mxu0
    %v1707 = vxor.u32 %v1705, 2147483648
    %v1708 = vmul.f32 %v1707, 1.442695
    %v1709 = vpow.pop %v1708
    %v1710 = vadd.f32 %v1709, 1.0
    %v1711 = vrcp.pop %v1710
    %v1712 = vmul.f32 %v1710, %v1711
    %v1713 = vsub.f32 1.0, %v1712
    %v1714 = vmul.f32 %v1711, %v1713
    %v1715 = vadd.f32 %v1711, %v1714
    %vm1716 = vweird.f32 %v1710
    %vm1717 = vweird.f32 %v1711
    %vm1718 = vmor %vm1716, %vm1717
    %v1719 = vsel %vm1718, %v1711, %v1715
    %v1720 = vand.u32 2147483647, %v1710
    %vm1721 = vcmp.eq.f32.partialorder %v1720, 8.507059e+37
    %v1722 = vand.u32 %v1710, 2147483648
    %v1723 = vor.u32 1.1754944e-38, %v1722
    %v1724 = vsel %vm1721, %v1723, %v1719
    %v1725 = vmul.f32 1.0, %v1724
    %vm1726 = vcmask 39936
    %1727 = vst.msk [vmem:[#allocation17] sm:$0xff] %vm1726, %v1725
    // Predicated region
    $region114: #{tpu_custom_call.1} parent=1 // pred_check
      _
    $region115: #{tpu_custom_call.1} parent=1 // pred_check_branch
      %1729 = sbr.rel (0) target = $region117
    $region116: #{tpu_custom_call.1} parent=1 // pred_region
      %1731 = vsyncadd [#allocation10], 0
      %s1733 = sshll.u32 [#allocation17], 4
      %s1734 = int_to_ptr.vmem [resolvable:$true] %s1733
      %s1735 = sshll.u32 %s10, 4
      %s1736 = int_to_ptr.hbm [resolvable:$true] %s1735
      %1738 = dma.vmem_to_hbm [thread:$0]  %s1734, 128, %s1736, [#allocation10]
    $region117: #{tpu_custom_call.1} parent=1 // pred_fallthru
      _
    // Predicated region
    $region118: #{tpu_custom_call.1} parent=1 // pred_check
      _
    $region119: #{tpu_custom_call.1} parent=1 // pred_check_branch
      %1740 = sbr.rel (0) target = $region121
    $region120: #{tpu_custom_call.1} parent=1 // pred_region
      %1742 = dma.done [#allocation10], 128
    $region121: #{tpu_custom_call.1} parent=1 // pred_fallthru
      _
    %1743 = vsyncpa [#allocation9], 1
    %1744 = vsyncpa [#allocation12], 1
    %1745 = vsyncpa [#allocation15], 1
    %1746 = vsyncpa [#allocation10], 1
  %1747 = vsyncmov [#allocation4]
  %s1748 = vpop.sfrf %1747
  %p1749 = scmp.eq.s32.totalorder %s1748, 0
  %p1750 = pneg %p1749
  %1752 = shalt.err (%p1750)
  %s1753 = scalar_lea.sflag [#allocation4], 1
  %1754 = vsyncmov %s1753
  %s1755 = vpop.sfrf %1754
  %p1756 = scmp.eq.s32.totalorder %s1755, 0
  %p1757 = pneg %p1756
  %1759 = shalt.err (%p1757)
  %s1760 = scalar_lea.sflag [#allocation4], 2
  %1761 = vsyncmov %s1760
  %s1762 = vpop.sfrf %1761
  %p1763 = scmp.eq.s32.totalorder %s1762, 0
  %p1764 = pneg %p1763
  %1766 = shalt.err (%p1764)
  %s1767 = scalar_lea.sflag [#allocation4], 3
  %1768 = vsyncmov %s1767
  %s1769 = vpop.sfrf %1768
  %p1770 = scmp.eq.s32.totalorder %s1769, 0
  %p1771 = pneg %p1770
  %1773 = shalt.err (%p1771)
  %s1774 = scalar_lea.sflag [#allocation4], 4
  %1775 = vsyncmov %s1774
  %s1776 = vpop.sfrf %1775
  %p1777 = scmp.eq.s32.totalorder %s1776, 0
  %p1778 = pneg %p1777
  %1780 = shalt.err (%p1778)
  %s1781 = scalar_lea.sflag [#allocation4], 5
  %1782 = vsyncmov %s1781
  %s1783 = vpop.sfrf %1782
  %p1784 = scmp.eq.s32.totalorder %s1783, 0
  %p1785 = pneg %p1784
  %1787 = shalt.err (%p1785)
  %s1788 = scalar_lea.sflag [#allocation4], 6
  %1789 = vsyncmov %s1788
  %s1790 = vpop.sfrf %1789
  %p1791 = scmp.eq.s32.totalorder %s1790, 0
  %p1792 = pneg %p1791
  %1794 = shalt.err (%p1792)
  %s1795 = scalar_lea.sflag [#allocation4], 7
  %1796 = vsyncmov %s1795
  %s1797 = vpop.sfrf %1796
  %p1798 = scmp.eq.s32.totalorder %s1797, 0
  %p1799 = pneg %p1798
  %1801 = shalt.err (%p1799)
  %s1802 = scalar_lea.sflag [#allocation4], 8
  %1803 = vsyncmov %s1802
  %s1804 = vpop.sfrf %1803
  %p1805 = scmp.eq.s32.totalorder %s1804, 0
  %p1806 = pneg %p1805
  %1808 = shalt.err (%p1806)
  %s1809 = scalar_lea.sflag [#allocation4], 9
  %1810 = vsyncmov %s1809
  %s1811 = vpop.sfrf %1810
  %p1812 = scmp.eq.s32.totalorder %s1811, 0
  %p1813 = pneg %p1812
  %1815 = shalt.err (%p1813)
  %s1816 = scalar_lea.sflag [#allocation4], 10
  %1817 = vsyncmov %s1816
  %s1818 = vpop.sfrf %1817
  %p1819 = scmp.eq.s32.totalorder %s1818, 0
  %p1820 = pneg %p1819
  %1822 = shalt.err (%p1820)
  %s1823 = scalar_lea.sflag [#allocation4], 11
  %1824 = vsyncmov %s1823
  %s1825 = vpop.sfrf %1824
  %p1826 = scmp.eq.s32.totalorder %s1825, 0
  %p1827 = pneg %p1826
  %1829 = shalt.err (%p1827)
  %s1830 = scalar_lea.sflag [#allocation4], 12
  %1831 = vsyncmov %s1830
  %s1832 = vpop.sfrf %1831
  %p1833 = scmp.eq.s32.totalorder %s1832, 0
  %p1834 = pneg %p1833
  %1836 = shalt.err (%p1834)
  %s1837 = scalar_lea.sflag [#allocation4], 13
  %1838 = vsyncmov %s1837
  %s1839 = vpop.sfrf %1838
  %p1840 = scmp.eq.s32.totalorder %s1839, 0
  %p1841 = pneg %p1840
  %1843 = shalt.err (%p1841)
  %s1844 = scalar_lea.sflag [#allocation4], 14
  %1845 = vsyncmov %s1844
  %s1846 = vpop.sfrf %1845
  %p1847 = scmp.eq.s32.totalorder %s1846, 0
  %p1848 = pneg %p1847
  %1850 = shalt.err (%p1848)
  %s1851 = scalar_lea.sflag [#allocation4], 15
  %1852 = vsyncmov %s1851
  %s1853 = vpop.sfrf %1852
  %p1854 = scmp.eq.s32.totalorder %s1853, 0
  %p1855 = pneg %p1854
  %1857 = shalt.err (%p1855)

</llo_original>
